<compile_context>
chip_gen: v5e
topology: v5e:2x2
jax: 0.10.0
libtpu: 0.0.40
codegen_flags: <defaults>
</compile_context>

<pallas_src>
import functools
import math

import jax
import jax.numpy as jnp
from jax import lax
from jax.experimental import pallas as pl
from jax.experimental.pallas import tpu as pltpu

DECAY = 0.9
THRESH = 1.0


def _round_up(x: int, m: int) -> int:
    return ((x + m - 1) // m) * m


def _physical_vmem_bytes() -> int:
    """Generation-aware VMEM capacity; assume the smallest (v7x: 64 MiB/TC) if unknown."""
    try:
        info = pltpu.get_tpu_info()
        return int(getattr(info, "vmem_capacity_bytes", 64 * 1024 * 1024))
    except Exception:
        return 64 * 1024 * 1024


def _vmem_need_bytes(t_blk, cin, cout, kk, l_in, l_out) -> int:
    return (2 * t_blk * cin * l_in * 2          # double-buffered bf16 input block
            + kk * cin * t_blk * l_out * 2      # shifted-RHS scratch (bf16)
            + cout * t_blk * l_out * 4          # f32 conv slab scratch
            + cout * l_out * 4                  # f32 membrane scratch
            + 2 * t_blk * cout * l_out * 2      # double-buffered bf16 output block
            + t_blk * l_out * 4                 # mask
            + cout * kk * cin * 2)              # fused weights


def _choose_t_blk(T, cin, cout, kk, l_in, l_out, budget_bytes) -> int:
    best = 1
    for tb in range(1, T + 1):
        if T % tb != 0:
            continue
        if _vmem_need_bytes(tb, cin, cout, kk, l_in, l_out) <= budget_bytes:
            best = tb
    return best


def conv_lif_kernel(x_ref, w_ref, mask_ref, out_ref, max_ref,
                    xs_ref, conv_ref, v_ref, *,
                    k_size, cin, cout, wp, l_out, t_blk):
    """One (batch, timestep-block) grid step.

    x_ref   : (T_blk*Cin, L_in)        bf16  padded+flattened activations (lane = spatial)
    w_ref   : (Cout, K*K*Cin)          bf16  fused tap weights, col = (kh*K+kw)*Cin + ci
    mask_ref: (1, T_blk*L_out)         f32   1.0 at valid output lanes
    out_ref : (T_blk*Cout, L_out)      bf16  spikes, rows t*Cout .. (t+1)*Cout
    max_ref : (1, 1)                   f32   per-batch running max of pre-dynamics conv
    xs_ref  : (K*K*Cin, T_blk*L_out)   bf16  shifted-RHS scratch
    conv_ref: (Cout, T_blk*L_out)      f32   conv slab scratch
    v_ref   : (Cout, L_out)            f32   membrane potential (persists over tb)
    """
    tb = pl.program_id(1)

    @pl.when(tb == 0)
    def _init():
        v_ref[...] = jnp.zeros_like(v_ref)
        max_ref[...] = jnp.full_like(max_ref, -jnp.inf)

    # Gather the K*K shifted tap slices for all T_blk timesteps into the RHS scratch.
    # All offsets are static -> plain vreg copies; XLU/VPU work overlaps the DMA/MXU.
    for t in range(t_blk):
        for kh in range(k_size):
            for kw in range(k_size):
                tap = kh * k_size + kw
                delta = kh * wp + kw
                xs_ref[pl.ds(tap * cin, cin), pl.ds(t * l_out, l_out)] = (
                    x_ref[pl.ds(t * cin, cin), pl.ds(delta, l_out)])

    # One fused contraction: (Cout, K^2*Cin) @ (K^2*Cin, T_blk*L_out), f32 accumulation.
    conv_ref[...] = jnp.dot(w_ref[...], xs_ref[...],
                            preferred_element_type=jnp.float32)

    # Running max of the pre-dynamics conv over valid output lanes, all timesteps at once.
    masked = jnp.where(mask_ref[...] > 0.5, conv_ref[...], -jnp.inf)
    max_ref[...] = jnp.maximum(max_ref[...], jnp.max(masked))

    # Sequential LIF recurrence over the slab (cheap VPU sweep).
    def lif_step(t, carry):
        col = pl.multiple_of(t * l_out, 128)
        conv_t = conv_ref[:, pl.ds(col, l_out)]
        v = DECAY * v_ref[...] + conv_t
        spike = (v >= THRESH).astype(jnp.float32)
        v_ref[...] = v - spike * THRESH
        row = pl.multiple_of(t * cout, cout)
        out_ref[pl.ds(row, cout), :] = spike.astype(out_ref.dtype)
        return carry

    lax.fori_loop(0, t_blk, lif_step, 0, unroll=True)


def conv2d_layer_forward(x, weight, k_size, padding, *, compute_dtype=jnp.bfloat16):
    """x: (B, T, Cin, H, W) like PyTorch. weight: (Cout, Cin, K, K).
    Returns (output (B, T, Cout, H, W) in `compute_dtype` (spikes are exactly 0/1),
             max_activation scalar f32)."""
    B, T, Cin, H, W = x.shape
    Cout = weight.shape[0]
    assert padding == (k_size - 1) // 2, "forward() requires same-spatial output (stride=1)"

    Hp, Wp = H + 2 * padding, W + 2 * padding
    KK = k_size * k_size
    delta_max = (k_size - 1) * Wp + (k_size - 1)       # largest tap shift
    L_out = _round_up(Hp * Wp, 128)                    # lane-dense output length
    L_in = _round_up(L_out + delta_max, 128)           # input length incl. tap tail

    phys_vmem = _physical_vmem_bytes()
    t_blk = _choose_t_blk(T, Cin, Cout, KK, L_in, L_out, budget_bytes=phys_vmem // 4)
    num_tb = T // t_blk

    # Zero-pad spatially, flatten padded spatial onto the lane axis, add a zero tail so
    # every tap slice [delta, delta + L_out) is in-bounds; pack timesteps onto the sublane
    # axis: (B, num_tb, T_blk*Cin, L_in) (>=16 rows for bf16 vreg density).
    xp = jnp.pad(x, ((0, 0), (0, 0), (0, 0), (padding, padding), (padding, padding)))
    x_flat = xp.reshape(B, T, Cin, Hp * Wp)
    x_flat = jnp.pad(x_flat, ((0, 0), (0, 0), (0, 0), (0, L_in - Hp * Wp)))
    x_flat = x_flat.reshape(B, num_tb, t_blk * Cin, L_in).astype(compute_dtype)

    # Fused tap weights: (Cout, K*K*Cin), column = (kh*K + kw)*Cin + ci.
    w_fused = jnp.transpose(weight, (0, 2, 3, 1)).reshape(Cout, KK * Cin)
    w_fused = w_fused.astype(compute_dtype)

    # Valid-output-lane mask in padded flat coords g = h*Wp + w, tiled across T_blk.
    g = jnp.arange(L_out)
    valid = (g < Hp * Wp) & ((g // Wp) < H) & ((g % Wp) < W)
    mask = jnp.tile(valid.astype(jnp.float32)[None, :], (1, t_blk))   # (1, T_blk*L_out)

    need = _vmem_need_bytes(t_blk, Cin, Cout, KK, L_in, L_out)
    vmem_limit = min(int(phys_vmem * 0.75),
                     max(32 * 1024 * 1024, 2 * need + 4 * 1024 * 1024))

    kernel = functools.partial(conv_lif_kernel, k_size=k_size, cin=Cin, cout=Cout,
                               wp=Wp, l_out=L_out, t_blk=t_blk)

    out_flat, max_out = pl.pallas_call(
        kernel,
        out_shape=(
            jax.ShapeDtypeStruct((B, num_tb, t_blk * Cout, L_out), compute_dtype),
            jax.ShapeDtypeStruct((B, 1, 1), jnp.float32),
        ),
        grid_spec=pltpu.PrefetchScalarGridSpec(
            num_scalar_prefetch=0,
            grid=(B, num_tb),                           # tb innermost = sequential LIF
            in_specs=[
                pl.BlockSpec((pl.Squeezed(), pl.Squeezed(), t_blk * Cin, L_in),
                             lambda b, tb: (b, tb, 0, 0)),
                pl.BlockSpec((Cout, KK * Cin),
                             lambda b, tb: (0, 0)),     # resident (tiny)
                pl.BlockSpec((1, t_blk * L_out),
                             lambda b, tb: (0, 0)),     # resident (tiny)
            ],
            out_specs=[
                pl.BlockSpec((pl.Squeezed(), pl.Squeezed(), t_blk * Cout, L_out),
                             lambda b, tb: (b, tb, 0, 0)),
                pl.BlockSpec((pl.Squeezed(), 1, 1),
                             lambda b, tb: (b, 0, 0)),  # per-batch max accumulator
            ],
            scratch_shapes=[
                pltpu.VMEM((KK * Cin, t_blk * L_out), compute_dtype),  # shifted RHS
                pltpu.VMEM((Cout, t_blk * L_out), jnp.float32),        # conv slab
                pltpu.VMEM((Cout, L_out), jnp.float32),                # membrane state
            ],
        ),
        compiler_params=pltpu.CompilerParams(
            dimension_semantics=("parallel", "arbitrary"),
            vmem_limit_bytes=vmem_limit,
        ),
    )(x_flat, w_fused, mask)

    # (B, num_tb, T_blk*Cout, L_out) -> (B, T, Cout, H, W); spikes stay in bf16 (0/1,
    # lossless) — no f32 up-cast pass (review: output HBM traffic dominates).
    out = out_flat.reshape(B, T, Cout, L_out)
    out = out[:, :, :, :Hp * Wp].reshape(B, T, Cout, Hp, Wp)[:, :, :, :H, :W]
    max_act = jnp.max(max_out)
    return out, max_act


def reference_forward(x, weight, k_size, padding, *, compute_dtype=jnp.bfloat16):
    """Pure-JAX reference with the same numerics (bf16-quantized operands, f32 accum,
    fused (kh, kw, ci) contraction order to mirror the kernel)."""
    B, T, Cin, H, W = x.shape
    Cout = weight.shape[0]
    xp = jnp.pad(x, ((0, 0), (0, 0), (0, 0), (padding, padding), (padding, padding)))
    xq = xp.astype(compute_dtype).astype(jnp.float32)
    wq = weight.astype(compute_dtype).astype(jnp.float32)

    patches = jnp.stack([xq[:, :, :, kh:kh + H, kw:kw + W]
                         for kh in range(k_size) for kw in range(k_size)],
                        axis=2)                                  # (B,T,KK,Cin,H,W)
    patches = patches.reshape(B, T, k_size * k_size * Cin, H, W)
    wf = jnp.transpose(wq, (0, 2, 3, 1)).reshape(Cout, k_size * k_size * Cin)
    conv = jnp.einsum("ok,btkhw->btohw", wf, patches)
    max_act = jnp.max(conv)

    v = jnp.zeros((B, Cout, H, W), jnp.float32)
    outs = []
    for t in range(T):
        v = DECAY * v + conv[:, t]
        spike = (v >= THRESH).astype(jnp.float32)
        v = v - spike * THRESH
        outs.append(spike)
    return jnp.stack(outs, axis=1), max_act


if __name__ == "__main__":
    # Module config (stride=1 so spatial size is preserved, as forward() assumes).
    fan_in, fan_out, k_size, padding = 4, 8, 3, 1
    B, T, H, W = 2, 8, 16, 16

    key = jax.random.PRNGKey(0)
    kx, kw = jax.random.split(key)
    x = jax.random.normal(kx, (B, T, fan_in, H, W), dtype=jnp.float32)

    # xavier_uniform_ with gain=sqrt(2) on the Conv2d weight (Cout, Cin, K, K).
    fan_in_w = fan_in * k_size * k_size
    fan_out_w = fan_out * k_size * k_size
    bound = math.sqrt(2.0) * math.sqrt(6.0 / (fan_in_w + fan_out_w))
    weight = jax.random.uniform(kw, (fan_out, fan_in, k_size, k_size),
                                minval=-bound, maxval=bound, dtype=jnp.float32)

    out, max_act = conv2d_layer_forward(x, weight, k_size, padding)
    out = jax.block_until_ready(out)
    max_act = jax.block_until_ready(max_act)

    ref_out, ref_max = reference_forward(x, weight, k_size, padding)
    assert out.shape == (B, T, fan_out, H, W), out.shape
    assert jnp.allclose(max_act, ref_max, atol=1e-4, rtol=1e-4), (max_act, ref_max)

    # Spikes are exactly 0/1; a spike can only differ if the membrane lands within float
    # rounding of the threshold (accumulation-order artifact, not a kernel bug), so allow
    # a vanishing mismatch fraction instead of a brittle exact-match test.
    diff = jnp.abs(out.astype(jnp.float32) - ref_out)
    mismatch_frac = float(jnp.mean((diff > 0.5).astype(jnp.float32)))
    assert mismatch_frac < 1e-3, mismatch_frac

    print("KERNEL_OK")
</pallas_src>

<mosaic_0001>
module attributes {stable_mosaic.version = 11 : i64} {
  func.func @conv_lif_kernel(%arg0: i32, %arg1: i32, %arg2: memref<1x1x32x512xbf16, #tpu.memory_space<vmem>>, %arg3: memref<8x36xbf16, #tpu.memory_space<vmem>>, %arg4: memref<1x3072xf32, #tpu.memory_space<vmem>>, %arg5: memref<1x1x64x384xbf16, #tpu.memory_space<vmem>>, %arg6: memref<1x1x1xf32, #tpu.memory_space<vmem>>, %arg7: memref<36x3072xbf16, #tpu.memory_space<vmem>>, %arg8: memref<8x3072xf32, #tpu.memory_space<vmem>>, %arg9: memref<8x384xf32, #tpu.memory_space<vmem>>) attributes {dimension_semantics = [#tpu.dimension_semantics<parallel>, #tpu.dimension_semantics<arbitrary>], iteration_bounds = array<i64: 2, 1>, scalar_prefetch = 0 : i64, scratch_operands = 3 : i64, tpu.core_type = #tpu.core_type<tc>, window_params = [{transform_indices = @transform_0, window_bounds = array<i64: 1, 1, 32, 512>}, {pipeline_mode = #tpu.pipeline_mode<synchronous>, transform_indices = @transform_1, window_bounds = array<i64: 8, 36>}, {pipeline_mode = #tpu.pipeline_mode<synchronous>, transform_indices = @transform_2, window_bounds = array<i64: 1, 3072>}, {transform_indices = @transform_3, window_bounds = array<i64: 1, 1, 64, 384>}, {transform_indices = @transform_4, window_bounds = array<i64: 1, 1, 1>}]} {
    %c0_i32 = arith.constant 0 : i32
    %0 = arith.cmpi eq, %arg1, %c0_i32 : i32
    %1 = arith.extui %0 : i1 to i32
    %c0_i32_0 = arith.constant 0 : i32
    %2 = arith.cmpi ne, %1, %c0_i32_0 : i32
    scf.if %2 {
      %cst_533 = arith.constant 0.000000e+00 : f32
      %426 = vector.broadcast %cst_533 : f32 to vector<8x384xf32>
      %c0_534 = arith.constant 0 : index
      %c0_535 = arith.constant 0 : index
      %427 = vector.load %arg9[%c0_534, %c0_535] : memref<8x384xf32, #tpu.memory_space<vmem>>, vector<8x384xf32>
      tpu.vector_store %arg9[%c0_534, %c0_535], %426 {strides = array<i32>} : memref<8x384xf32, #tpu.memory_space<vmem>>, vector<8x384xf32>,
      %cst_536 = arith.constant 0xFF800000 : f32
      %428 = vector.broadcast %cst_536 : f32 to vector<1x1xf32>
      %c0_537 = arith.constant 0 : index
      %c0_538 = arith.constant 0 : index
      %c0_539 = arith.constant 0 : index
      %429 = vector.load %arg6[%c0_537, %c0_538, %c0_539] : memref<1x1x1xf32, #tpu.memory_space<vmem>>, vector<1x1x1xf32>
      %430 = vector.shape_cast %429 : vector<1x1x1xf32> to vector<1x1xf32>
      %431 = vector.shape_cast %428 : vector<1x1xf32> to vector<1x1x1xf32>
      tpu.vector_store %arg6[%c0_537, %c0_538, %c0_539], %431 {strides = array<i32>} : memref<1x1x1xf32, #tpu.memory_space<vmem>>, vector<1x1x1xf32>,
    } else {
    }
    %c0 = arith.constant 0 : index
    %c0_1 = arith.constant 0 : index
    %c0_2 = arith.constant 0 : index
    %c0_3 = arith.constant 0 : index
    %3 = vector.load %arg2[%c0, %c0_1, %c0_2, %c0_3] : memref<1x1x32x512xbf16, #tpu.memory_space<vmem>>, vector<1x1x4x384xbf16>
    %4 = vector.shape_cast %3 : vector<1x1x4x384xbf16> to vector<4x384xbf16>
    %c0_4 = arith.constant 0 : index
    %c0_5 = arith.constant 0 : index
    %5 = vector.load %arg7[%c0_4, %c0_5] : memref<36x3072xbf16, #tpu.memory_space<vmem>>, vector<4x384xbf16>
    tpu.vector_store %arg7[%c0_4, %c0_5], %4 {strides = array<i32>} : memref<36x3072xbf16, #tpu.memory_space<vmem>>, vector<4x384xbf16>,
    %c0_6 = arith.constant 0 : index
    %c0_7 = arith.constant 0 : index
    %c0_8 = arith.constant 0 : index
    %c1 = arith.constant 1 : index
    %6 = vector.load %arg2[%c0_6, %c0_7, %c0_8, %c1] : memref<1x1x32x512xbf16, #tpu.memory_space<vmem>>, vector<1x1x4x384xbf16>
    %7 = vector.shape_cast %6 : vector<1x1x4x384xbf16> to vector<4x384xbf16>
    %c4 = arith.constant 4 : index
    %c0_9 = arith.constant 0 : index
    %8 = vector.load %arg7[%c4, %c0_9] : memref<36x3072xbf16, #tpu.memory_space<vmem>>, vector<4x384xbf16>
    tpu.vector_store %arg7[%c4, %c0_9], %7 {strides = array<i32>} : memref<36x3072xbf16, #tpu.memory_space<vmem>>, vector<4x384xbf16>,
    %c0_10 = arith.constant 0 : index
    %c0_11 = arith.constant 0 : index
    %c0_12 = arith.constant 0 : index
    %c2 = arith.constant 2 : index
    %9 = vector.load %arg2[%c0_10, %c0_11, %c0_12, %c2] : memref<1x1x32x512xbf16, #tpu.memory_space<vmem>>, vector<1x1x4x384xbf16>
    %10 = vector.shape_cast %9 : vector<1x1x4x384xbf16> to vector<4x384xbf16>
    %c8 = arith.constant 8 : index
    %c0_13 = arith.constant 0 : index
    %11 = vector.load %arg7[%c8, %c0_13] : memref<36x3072xbf16, #tpu.memory_space<vmem>>, vector<4x384xbf16>
    tpu.vector_store %arg7[%c8, %c0_13], %10 {strides = array<i32>} : memref<36x3072xbf16, #tpu.memory_space<vmem>>, vector<4x384xbf16>,
    %c0_14 = arith.constant 0 : index
    %c0_15 = arith.constant 0 : index
    %c0_16 = arith.constant 0 : index
    %c18 = arith.constant 18 : index
    %12 = vector.load %arg2[%c0_14, %c0_15, %c0_16, %c18] : memref<1x1x32x512xbf16, #tpu.memory_space<vmem>>, vector<1x1x4x384xbf16>
    %13 = vector.shape_cast %12 : vector<1x1x4x384xbf16> to vector<4x384xbf16>
    %c12 = arith.constant 12 : index
    %c0_17 = arith.constant 0 : index
    %14 = vector.load %arg7[%c12, %c0_17] : memref<36x3072xbf16, #tpu.memory_space<vmem>>, vector<4x384xbf16>
    tpu.vector_store %arg7[%c12, %c0_17], %13 {strides = array<i32>} : memref<36x3072xbf16, #tpu.memory_space<vmem>>, vector<4x384xbf16>,
    %c0_18 = arith.constant 0 : index
    %c0_19 = arith.constant 0 : index
    %c0_20 = arith.constant 0 : index
    %c19 = arith.constant 19 : index
    %15 = vector.load %arg2[%c0_18, %c0_19, %c0_20, %c19] : memref<1x1x32x512xbf16, #tpu.memory_space<vmem>>, vector<1x1x4x384xbf16>
    %16 = vector.shape_cast %15 : vector<1x1x4x384xbf16> to vector<4x384xbf16>
    %c16 = arith.constant 16 : index
    %c0_21 = arith.constant 0 : index
    %17 = vector.load %arg7[%c16, %c0_21] : memref<36x3072xbf16, #tpu.memory_space<vmem>>, vector<4x384xbf16>
    tpu.vector_store %arg7[%c16, %c0_21], %16 {strides = array<i32>} : memref<36x3072xbf16, #tpu.memory_space<vmem>>, vector<4x384xbf16>,
    %c0_22 = arith.constant 0 : index
    %c0_23 = arith.constant 0 : index
    %c0_24 = arith.constant 0 : index
    %c20 = arith.constant 20 : index
    %18 = vector.load %arg2[%c0_22, %c0_23, %c0_24, %c20] : memref<1x1x32x512xbf16, #tpu.memory_space<vmem>>, vector<1x1x4x384xbf16>
    %19 = vector.shape_cast %18 : vector<1x1x4x384xbf16> to vector<4x384xbf16>
    %c20_25 = arith.constant 20 : index
    %c0_26 = arith.constant 0 : index
    %20 = vector.load %arg7[%c20_25, %c0_26] : memref<36x3072xbf16, #tpu.memory_space<vmem>>, vector<4x384xbf16>
    tpu.vector_store %arg7[%c20_25, %c0_26], %19 {strides = array<i32>} : memref<36x3072xbf16, #tpu.memory_space<vmem>>, vector<4x384xbf16>,
    %c0_27 = arith.constant 0 : index
    %c0_28 = arith.constant 0 : index
    %c0_29 = arith.constant 0 : index
    %c36 = arith.constant 36 : index
    %21 = vector.load %arg2[%c0_27, %c0_28, %c0_29, %c36] : memref<1x1x32x512xbf16, #tpu.memory_space<vmem>>, vector<1x1x4x384xbf16>
    %22 = vector.shape_cast %21 : vector<1x1x4x384xbf16> to vector<4x384xbf16>
    %c24 = arith.constant 24 : index
    %c0_30 = arith.constant 0 : index
    %23 = vector.load %arg7[%c24, %c0_30] : memref<36x3072xbf16, #tpu.memory_space<vmem>>, vector<4x384xbf16>
    tpu.vector_store %arg7[%c24, %c0_30], %22 {strides = array<i32>} : memref<36x3072xbf16, #tpu.memory_space<vmem>>, vector<4x384xbf16>,
    %c0_31 = arith.constant 0 : index
    %c0_32 = arith.constant 0 : index
    %c0_33 = arith.constant 0 : index
    %c37 = arith.constant 37 : index
    %24 = vector.load %arg2[%c0_31, %c0_32, %c0_33, %c37] : memref<1x1x32x512xbf16, #tpu.memory_space<vmem>>, vector<1x1x4x384xbf16>
    %25 = vector.shape_cast %24 : vector<1x1x4x384xbf16> to vector<4x384xbf16>
    %c28 = arith.constant 28 : index
    %c0_34 = arith.constant 0 : index
    %26 = vector.load %arg7[%c28, %c0_34] : memref<36x3072xbf16, #tpu.memory_space<vmem>>, vector<4x384xbf16>
    tpu.vector_store %arg7[%c28, %c0_34], %25 {strides = array<i32>} : memref<36x3072xbf16, #tpu.memory_space<vmem>>, vector<4x384xbf16>,
    %c0_35 = arith.constant 0 : index
    %c0_36 = arith.constant 0 : index
    %c0_37 = arith.constant 0 : index
    %c38 = arith.constant 38 : index
    %27 = vector.load %arg2[%c0_35, %c0_36, %c0_37, %c38] : memref<1x1x32x512xbf16, #tpu.memory_space<vmem>>, vector<1x1x4x384xbf16>
    %28 = vector.shape_cast %27 : vector<1x1x4x384xbf16> to vector<4x384xbf16>
    %c32 = arith.constant 32 : index
    %c0_38 = arith.constant 0 : index
    %29 = vector.load %arg7[%c32, %c0_38] : memref<36x3072xbf16, #tpu.memory_space<vmem>>, vector<4x384xbf16>
    tpu.vector_store %arg7[%c32, %c0_38], %28 {strides = array<i32>} : memref<36x3072xbf16, #tpu.memory_space<vmem>>, vector<4x384xbf16>,
    %c0_39 = arith.constant 0 : index
    %c0_40 = arith.constant 0 : index
    %c4_41 = arith.constant 4 : index
    %c0_42 = arith.constant 0 : index
    %30 = vector.load %arg2[%c0_39, %c0_40, %c4_41, %c0_42] : memref<1x1x32x512xbf16, #tpu.memory_space<vmem>>, vector<1x1x4x384xbf16>
    %31 = vector.shape_cast %30 : vector<1x1x4x384xbf16> to vector<4x384xbf16>
    %c0_43 = arith.constant 0 : index
    %c384 = arith.constant 384 : index
    %32 = vector.load %arg7[%c0_43, %c384] : memref<36x3072xbf16, #tpu.memory_space<vmem>>, vector<4x384xbf16>
    tpu.vector_store %arg7[%c0_43, %c384], %31 {strides = array<i32>} : memref<36x3072xbf16, #tpu.memory_space<vmem>>, vector<4x384xbf16>,
    %c0_44 = arith.constant 0 : index
    %c0_45 = arith.constant 0 : index
    %c4_46 = arith.constant 4 : index
    %c1_47 = arith.constant 1 : index
    %33 = vector.load %arg2[%c0_44, %c0_45, %c4_46, %c1_47] : memref<1x1x32x512xbf16, #tpu.memory_space<vmem>>, vector<1x1x4x384xbf16>
    %34 = vector.shape_cast %33 : vector<1x1x4x384xbf16> to vector<4x384xbf16>
    %c4_48 = arith.constant 4 : index
    %c384_49 = arith.constant 384 : index
    %35 = vector.load %arg7[%c4_48, %c384_49] : memref<36x3072xbf16, #tpu.memory_space<vmem>>, vector<4x384xbf16>
    tpu.vector_store %arg7[%c4_48, %c384_49], %34 {strides = array<i32>} : memref<36x3072xbf16, #tpu.memory_space<vmem>>, vector<4x384xbf16>,
    %c0_50 = arith.constant 0 : index
    %c0_51 = arith.constant 0 : index
    %c4_52 = arith.constant 4 : index
    %c2_53 = arith.constant 2 : index
    %36 = vector.load %arg2[%c0_50, %c0_51, %c4_52, %c2_53] : memref<1x1x32x512xbf16, #tpu.memory_space<vmem>>, vector<1x1x4x384xbf16>
    %37 = vector.shape_cast %36 : vector<1x1x4x384xbf16> to vector<4x384xbf16>
    %c8_54 = arith.constant 8 : index
    %c384_55 = arith.constant 384 : index
    %38 = vector.load %arg7[%c8_54, %c384_55] : memref<36x3072xbf16, #tpu.memory_space<vmem>>, vector<4x384xbf16>
    tpu.vector_store %arg7[%c8_54, %c384_55], %37 {strides = array<i32>} : memref<36x3072xbf16, #tpu.memory_space<vmem>>, vector<4x384xbf16>,
    %c0_56 = arith.constant 0 : index
    %c0_57 = arith.constant 0 : index
    %c4_58 = arith.constant 4 : index
    %c18_59 = arith.constant 18 : index
    %39 = vector.load %arg2[%c0_56, %c0_57, %c4_58, %c18_59] : memref<1x1x32x512xbf16, #tpu.memory_space<vmem>>, vector<1x1x4x384xbf16>
    %40 = vector.shape_cast %39 : vector<1x1x4x384xbf16> to vector<4x384xbf16>
    %c12_60 = arith.constant 12 : index
    %c384_61 = arith.constant 384 : index
    %41 = vector.load %arg7[%c12_60, %c384_61] : memref<36x3072xbf16, #tpu.memory_space<vmem>>, vector<4x384xbf16>
    tpu.vector_store %arg7[%c12_60, %c384_61], %40 {strides = array<i32>} : memref<36x3072xbf16, #tpu.memory_space<vmem>>, vector<4x384xbf16>,
    %c0_62 = arith.constant 0 : index
    %c0_63 = arith.constant 0 : index
    %c4_64 = arith.constant 4 : index
    %c19_65 = arith.constant 19 : index
    %42 = vector.load %arg2[%c0_62, %c0_63, %c4_64, %c19_65] : memref<1x1x32x512xbf16, #tpu.memory_space<vmem>>, vector<1x1x4x384xbf16>
    %43 = vector.shape_cast %42 : vector<1x1x4x384xbf16> to vector<4x384xbf16>
    %c16_66 = arith.constant 16 : index
    %c384_67 = arith.constant 384 : index
    %44 = vector.load %arg7[%c16_66, %c384_67] : memref<36x3072xbf16, #tpu.memory_space<vmem>>, vector<4x384xbf16>
    tpu.vector_store %arg7[%c16_66, %c384_67], %43 {strides = array<i32>} : memref<36x3072xbf16, #tpu.memory_space<vmem>>, vector<4x384xbf16>,
    %c0_68 = arith.constant 0 : index
    %c0_69 = arith.constant 0 : index
    %c4_70 = arith.constant 4 : index
    %c20_71 = arith.constant 20 : index
    %45 = vector.load %arg2[%c0_68, %c0_69, %c4_70, %c20_71] : memref<1x1x32x512xbf16, #tpu.memory_space<vmem>>, vector<1x1x4x384xbf16>
    %46 = vector.shape_cast %45 : vector<1x1x4x384xbf16> to vector<4x384xbf16>
    %c20_72 = arith.constant 20 : index
    %c384_73 = arith.constant 384 : index
    %47 = vector.load %arg7[%c20_72, %c384_73] : memref<36x3072xbf16, #tpu.memory_space<vmem>>, vector<4x384xbf16>
    tpu.vector_store %arg7[%c20_72, %c384_73], %46 {strides = array<i32>} : memref<36x3072xbf16, #tpu.memory_space<vmem>>, vector<4x384xbf16>,
    %c0_74 = arith.constant 0 : index
    %c0_75 = arith.constant 0 : index
    %c4_76 = arith.constant 4 : index
    %c36_77 = arith.constant 36 : index
    %48 = vector.load %arg2[%c0_74, %c0_75, %c4_76, %c36_77] : memref<1x1x32x512xbf16, #tpu.memory_space<vmem>>, vector<1x1x4x384xbf16>
    %49 = vector.shape_cast %48 : vector<1x1x4x384xbf16> to vector<4x384xbf16>
    %c24_78 = arith.constant 24 : index
    %c384_79 = arith.constant 384 : index
    %50 = vector.load %arg7[%c24_78, %c384_79] : memref<36x3072xbf16, #tpu.memory_space<vmem>>, vector<4x384xbf16>
    tpu.vector_store %arg7[%c24_78, %c384_79], %49 {strides = array<i32>} : memref<36x3072xbf16, #tpu.memory_space<vmem>>, vector<4x384xbf16>,
    %c0_80 = arith.constant 0 : index
    %c0_81 = arith.constant 0 : index
    %c4_82 = arith.constant 4 : index
    %c37_83 = arith.constant 37 : index
    %51 = vector.load %arg2[%c0_80, %c0_81, %c4_82, %c37_83] : memref<1x1x32x512xbf16, #tpu.memory_space<vmem>>, vector<1x1x4x384xbf16>
    %52 = vector.shape_cast %51 : vector<1x1x4x384xbf16> to vector<4x384xbf16>
    %c28_84 = arith.constant 28 : index
    %c384_85 = arith.constant 384 : index
    %53 = vector.load %arg7[%c28_84, %c384_85] : memref<36x3072xbf16, #tpu.memory_space<vmem>>, vector<4x384xbf16>
    tpu.vector_store %arg7[%c28_84, %c384_85], %52 {strides = array<i32>} : memref<36x3072xbf16, #tpu.memory_space<vmem>>, vector<4x384xbf16>,
    %c0_86 = arith.constant 0 : index
    %c0_87 = arith.constant 0 : index
    %c4_88 = arith.constant 4 : index
    %c38_89 = arith.constant 38 : index
    %54 = vector.load %arg2[%c0_86, %c0_87, %c4_88, %c38_89] : memref<1x1x32x512xbf16, #tpu.memory_space<vmem>>, vector<1x1x4x384xbf16>
    %55 = vector.shape_cast %54 : vector<1x1x4x384xbf16> to vector<4x384xbf16>
    %c32_90 = arith.constant 32 : index
    %c384_91 = arith.constant 384 : index
    %56 = vector.load %arg7[%c32_90, %c384_91] : memref<36x3072xbf16, #tpu.memory_space<vmem>>, vector<4x384xbf16>
    tpu.vector_store %arg7[%c32_90, %c384_91], %55 {strides = array<i32>} : memref<36x3072xbf16, #tpu.memory_space<vmem>>, vector<4x384xbf16>,
    %c0_92 = arith.constant 0 : index
    %c0_93 = arith.constant 0 : index
    %c8_94 = arith.constant 8 : index
    %c0_95 = arith.constant 0 : index
    %57 = vector.load %arg2[%c0_92, %c0_93, %c8_94, %c0_95] : memref<1x1x32x512xbf16, #tpu.memory_space<vmem>>, vector<1x1x4x384xbf16>
    %58 = vector.shape_cast %57 : vector<1x1x4x384xbf16> to vector<4x384xbf16>
    %c0_96 = arith.constant 0 : index
    %c768 = arith.constant 768 : index
    %59 = vector.load %arg7[%c0_96, %c768] : memref<36x3072xbf16, #tpu.memory_space<vmem>>, vector<4x384xbf16>
    tpu.vector_store %arg7[%c0_96, %c768], %58 {strides = array<i32>} : memref<36x3072xbf16, #tpu.memory_space<vmem>>, vector<4x384xbf16>,
    %c0_97 = arith.constant 0 : index
    %c0_98 = arith.constant 0 : index
    %c8_99 = arith.constant 8 : index
    %c1_100 = arith.constant 1 : index
    %60 = vector.load %arg2[%c0_97, %c0_98, %c8_99, %c1_100] : memref<1x1x32x512xbf16, #tpu.memory_space<vmem>>, vector<1x1x4x384xbf16>
    %61 = vector.shape_cast %60 : vector<1x1x4x384xbf16> to vector<4x384xbf16>
    %c4_101 = arith.constant 4 : index
    %c768_102 = arith.constant 768 : index
    %62 = vector.load %arg7[%c4_101, %c768_102] : memref<36x3072xbf16, #tpu.memory_space<vmem>>, vector<4x384xbf16>
    tpu.vector_store %arg7[%c4_101, %c768_102], %61 {strides = array<i32>} : memref<36x3072xbf16, #tpu.memory_space<vmem>>, vector<4x384xbf16>,
    %c0_103 = arith.constant 0 : index
    %c0_104 = arith.constant 0 : index
    %c8_105 = arith.constant 8 : index
    %c2_106 = arith.constant 2 : index
    %63 = vector.load %arg2[%c0_103, %c0_104, %c8_105, %c2_106] : memref<1x1x32x512xbf16, #tpu.memory_space<vmem>>, vector<1x1x4x384xbf16>
    %64 = vector.shape_cast %63 : vector<1x1x4x384xbf16> to vector<4x384xbf16>
    %c8_107 = arith.constant 8 : index
    %c768_108 = arith.constant 768 : index
    %65 = vector.load %arg7[%c8_107, %c768_108] : memref<36x3072xbf16, #tpu.memory_space<vmem>>, vector<4x384xbf16>
    tpu.vector_store %arg7[%c8_107, %c768_108], %64 {strides = array<i32>} : memref<36x3072xbf16, #tpu.memory_space<vmem>>, vector<4x384xbf16>,
    %c0_109 = arith.constant 0 : index
    %c0_110 = arith.constant 0 : index
    %c8_111 = arith.constant 8 : index
    %c18_112 = arith.constant 18 : index
    %66 = vector.load %arg2[%c0_109, %c0_110, %c8_111, %c18_112] : memref<1x1x32x512xbf16, #tpu.memory_space<vmem>>, vector<1x1x4x384xbf16>
    %67 = vector.shape_cast %66 : vector<1x1x4x384xbf16> to vector<4x384xbf16>
    %c12_113 = arith.constant 12 : index
    %c768_114 = arith.constant 768 : index
    %68 = vector.load %arg7[%c12_113, %c768_114] : memref<36x3072xbf16, #tpu.memory_space<vmem>>, vector<4x384xbf16>
    tpu.vector_store %arg7[%c12_113, %c768_114], %67 {strides = array<i32>} : memref<36x3072xbf16, #tpu.memory_space<vmem>>, vector<4x384xbf16>,
    %c0_115 = arith.constant 0 : index
    %c0_116 = arith.constant 0 : index
    %c8_117 = arith.constant 8 : index
    %c19_118 = arith.constant 19 : index
    %69 = vector.load %arg2[%c0_115, %c0_116, %c8_117, %c19_118] : memref<1x1x32x512xbf16, #tpu.memory_space<vmem>>, vector<1x1x4x384xbf16>
    %70 = vector.shape_cast %69 : vector<1x1x4x384xbf16> to vector<4x384xbf16>
    %c16_119 = arith.constant 16 : index
    %c768_120 = arith.constant 768 : index
    %71 = vector.load %arg7[%c16_119, %c768_120] : memref<36x3072xbf16, #tpu.memory_space<vmem>>, vector<4x384xbf16>
    tpu.vector_store %arg7[%c16_119, %c768_120], %70 {strides = array<i32>} : memref<36x3072xbf16, #tpu.memory_space<vmem>>, vector<4x384xbf16>,
    %c0_121 = arith.constant 0 : index
    %c0_122 = arith.constant 0 : index
    %c8_123 = arith.constant 8 : index
    %c20_124 = arith.constant 20 : index
    %72 = vector.load %arg2[%c0_121, %c0_122, %c8_123, %c20_124] : memref<1x1x32x512xbf16, #tpu.memory_space<vmem>>, vector<1x1x4x384xbf16>
    %73 = vector.shape_cast %72 : vector<1x1x4x384xbf16> to vector<4x384xbf16>
    %c20_125 = arith.constant 20 : index
    %c768_126 = arith.constant 768 : index
    %74 = vector.load %arg7[%c20_125, %c768_126] : memref<36x3072xbf16, #tpu.memory_space<vmem>>, vector<4x384xbf16>
    tpu.vector_store %arg7[%c20_125, %c768_126], %73 {strides = array<i32>} : memref<36x3072xbf16, #tpu.memory_space<vmem>>, vector<4x384xbf16>,
    %c0_127 = arith.constant 0 : index
    %c0_128 = arith.constant 0 : index
    %c8_129 = arith.constant 8 : index
    %c36_130 = arith.constant 36 : index
    %75 = vector.load %arg2[%c0_127, %c0_128, %c8_129, %c36_130] : memref<1x1x32x512xbf16, #tpu.memory_space<vmem>>, vector<1x1x4x384xbf16>
    %76 = vector.shape_cast %75 : vector<1x1x4x384xbf16> to vector<4x384xbf16>
    %c24_131 = arith.constant 24 : index
    %c768_132 = arith.constant 768 : index
    %77 = vector.load %arg7[%c24_131, %c768_132] : memref<36x3072xbf16, #tpu.memory_space<vmem>>, vector<4x384xbf16>
    tpu.vector_store %arg7[%c24_131, %c768_132], %76 {strides = array<i32>} : memref<36x3072xbf16, #tpu.memory_space<vmem>>, vector<4x384xbf16>,
    %c0_133 = arith.constant 0 : index
    %c0_134 = arith.constant 0 : index
    %c8_135 = arith.constant 8 : index
    %c37_136 = arith.constant 37 : index
    %78 = vector.load %arg2[%c0_133, %c0_134, %c8_135, %c37_136] : memref<1x1x32x512xbf16, #tpu.memory_space<vmem>>, vector<1x1x4x384xbf16>
    %79 = vector.shape_cast %78 : vector<1x1x4x384xbf16> to vector<4x384xbf16>
    %c28_137 = arith.constant 28 : index
    %c768_138 = arith.constant 768 : index
    %80 = vector.load %arg7[%c28_137, %c768_138] : memref<36x3072xbf16, #tpu.memory_space<vmem>>, vector<4x384xbf16>
    tpu.vector_store %arg7[%c28_137, %c768_138], %79 {strides = array<i32>} : memref<36x3072xbf16, #tpu.memory_space<vmem>>, vector<4x384xbf16>,
    %c0_139 = arith.constant 0 : index
    %c0_140 = arith.constant 0 : index
    %c8_141 = arith.constant 8 : index
    %c38_142 = arith.constant 38 : index
    %81 = vector.load %arg2[%c0_139, %c0_140, %c8_141, %c38_142] : memref<1x1x32x512xbf16, #tpu.memory_space<vmem>>, vector<1x1x4x384xbf16>
    %82 = vector.shape_cast %81 : vector<1x1x4x384xbf16> to vector<4x384xbf16>
    %c32_143 = arith.constant 32 : index
    %c768_144 = arith.constant 768 : index
    %83 = vector.load %arg7[%c32_143, %c768_144] : memref<36x3072xbf16, #tpu.memory_space<vmem>>, vector<4x384xbf16>
    tpu.vector_store %arg7[%c32_143, %c768_144], %82 {strides = array<i32>} : memref<36x3072xbf16, #tpu.memory_space<vmem>>, vector<4x384xbf16>,
    %c0_145 = arith.constant 0 : index
    %c0_146 = arith.constant 0 : index
    %c12_147 = arith.constant 12 : index
    %c0_148 = arith.constant 0 : index
    %84 = vector.load %arg2[%c0_145, %c0_146, %c12_147, %c0_148] : memref<1x1x32x512xbf16, #tpu.memory_space<vmem>>, vector<1x1x4x384xbf16>
    %85 = vector.shape_cast %84 : vector<1x1x4x384xbf16> to vector<4x384xbf16>
    %c0_149 = arith.constant 0 : index
    %c1152 = arith.constant 1152 : index
    %86 = vector.load %arg7[%c0_149, %c1152] : memref<36x3072xbf16, #tpu.memory_space<vmem>>, vector<4x384xbf16>
    tpu.vector_store %arg7[%c0_149, %c1152], %85 {strides = array<i32>} : memref<36x3072xbf16, #tpu.memory_space<vmem>>, vector<4x384xbf16>,
    %c0_150 = arith.constant 0 : index
    %c0_151 = arith.constant 0 : index
    %c12_152 = arith.constant 12 : index
    %c1_153 = arith.constant 1 : index
    %87 = vector.load %arg2[%c0_150, %c0_151, %c12_152, %c1_153] : memref<1x1x32x512xbf16, #tpu.memory_space<vmem>>, vector<1x1x4x384xbf16>
    %88 = vector.shape_cast %87 : vector<1x1x4x384xbf16> to vector<4x384xbf16>
    %c4_154 = arith.constant 4 : index
    %c1152_155 = arith.constant 1152 : index
    %89 = vector.load %arg7[%c4_154, %c1152_155] : memref<36x3072xbf16, #tpu.memory_space<vmem>>, vector<4x384xbf16>
    tpu.vector_store %arg7[%c4_154, %c1152_155], %88 {strides = array<i32>} : memref<36x3072xbf16, #tpu.memory_space<vmem>>, vector<4x384xbf16>,
    %c0_156 = arith.constant 0 : index
    %c0_157 = arith.constant 0 : index
    %c12_158 = arith.constant 12 : index
    %c2_159 = arith.constant 2 : index
    %90 = vector.load %arg2[%c0_156, %c0_157, %c12_158, %c2_159] : memref<1x1x32x512xbf16, #tpu.memory_space<vmem>>, vector<1x1x4x384xbf16>
    %91 = vector.shape_cast %90 : vector<1x1x4x384xbf16> to vector<4x384xbf16>
    %c8_160 = arith.constant 8 : index
    %c1152_161 = arith.constant 1152 : index
    %92 = vector.load %arg7[%c8_160, %c1152_161] : memref<36x3072xbf16, #tpu.memory_space<vmem>>, vector<4x384xbf16>
    tpu.vector_store %arg7[%c8_160, %c1152_161], %91 {strides = array<i32>} : memref<36x3072xbf16, #tpu.memory_space<vmem>>, vector<4x384xbf16>,
    %c0_162 = arith.constant 0 : index
    %c0_163 = arith.constant 0 : index
    %c12_164 = arith.constant 12 : index
    %c18_165 = arith.constant 18 : index
    %93 = vector.load %arg2[%c0_162, %c0_163, %c12_164, %c18_165] : memref<1x1x32x512xbf16, #tpu.memory_space<vmem>>, vector<1x1x4x384xbf16>
    %94 = vector.shape_cast %93 : vector<1x1x4x384xbf16> to vector<4x384xbf16>
    %c12_166 = arith.constant 12 : index
    %c1152_167 = arith.constant 1152 : index
    %95 = vector.load %arg7[%c12_166, %c1152_167] : memref<36x3072xbf16, #tpu.memory_space<vmem>>, vector<4x384xbf16>
    tpu.vector_store %arg7[%c12_166, %c1152_167], %94 {strides = array<i32>} : memref<36x3072xbf16, #tpu.memory_space<vmem>>, vector<4x384xbf16>,
    %c0_168 = arith.constant 0 : index
    %c0_169 = arith.constant 0 : index
    %c12_170 = arith.constant 12 : index
    %c19_171 = arith.constant 19 : index
    %96 = vector.load %arg2[%c0_168, %c0_169, %c12_170, %c19_171] : memref<1x1x32x512xbf16, #tpu.memory_space<vmem>>, vector<1x1x4x384xbf16>
    %97 = vector.shape_cast %96 : vector<1x1x4x384xbf16> to vector<4x384xbf16>
    %c16_172 = arith.constant 16 : index
    %c1152_173 = arith.constant 1152 : index
    %98 = vector.load %arg7[%c16_172, %c1152_173] : memref<36x3072xbf16, #tpu.memory_space<vmem>>, vector<4x384xbf16>
    tpu.vector_store %arg7[%c16_172, %c1152_173], %97 {strides = array<i32>} : memref<36x3072xbf16, #tpu.memory_space<vmem>>, vector<4x384xbf16>,
    %c0_174 = arith.constant 0 : index
    %c0_175 = arith.constant 0 : index
    %c12_176 = arith.constant 12 : index
    %c20_177 = arith.constant 20 : index
    %99 = vector.load %arg2[%c0_174, %c0_175, %c12_176, %c20_177] : memref<1x1x32x512xbf16, #tpu.memory_space<vmem>>, vector<1x1x4x384xbf16>
    %100 = vector.shape_cast %99 : vector<1x1x4x384xbf16> to vector<4x384xbf16>
    %c20_178 = arith.constant 20 : index
    %c1152_179 = arith.constant 1152 : index
    %101 = vector.load %arg7[%c20_178, %c1152_179] : memref<36x3072xbf16, #tpu.memory_space<vmem>>, vector<4x384xbf16>
    tpu.vector_store %arg7[%c20_178, %c1152_179], %100 {strides = array<i32>} : memref<36x3072xbf16, #tpu.memory_space<vmem>>, vector<4x384xbf16>,
    %c0_180 = arith.constant 0 : index
    %c0_181 = arith.constant 0 : index
    %c12_182 = arith.constant 12 : index
    %c36_183 = arith.constant 36 : index
    %102 = vector.load %arg2[%c0_180, %c0_181, %c12_182, %c36_183] : memref<1x1x32x512xbf16, #tpu.memory_space<vmem>>, vector<1x1x4x384xbf16>
    %103 = vector.shape_cast %102 : vector<1x1x4x384xbf16> to vector<4x384xbf16>
    %c24_184 = arith.constant 24 : index
    %c1152_185 = arith.constant 1152 : index
    %104 = vector.load %arg7[%c24_184, %c1152_185] : memref<36x3072xbf16, #tpu.memory_space<vmem>>, vector<4x384xbf16>
    tpu.vector_store %arg7[%c24_184, %c1152_185], %103 {strides = array<i32>} : memref<36x3072xbf16, #tpu.memory_space<vmem>>, vector<4x384xbf16>,
    %c0_186 = arith.constant 0 : index
    %c0_187 = arith.constant 0 : index
    %c12_188 = arith.constant 12 : index
    %c37_189 = arith.constant 37 : index
    %105 = vector.load %arg2[%c0_186, %c0_187, %c12_188, %c37_189] : memref<1x1x32x512xbf16, #tpu.memory_space<vmem>>, vector<1x1x4x384xbf16>
    %106 = vector.shape_cast %105 : vector<1x1x4x384xbf16> to vector<4x384xbf16>
    %c28_190 = arith.constant 28 : index
    %c1152_191 = arith.constant 1152 : index
    %107 = vector.load %arg7[%c28_190, %c1152_191] : memref<36x3072xbf16, #tpu.memory_space<vmem>>, vector<4x384xbf16>
    tpu.vector_store %arg7[%c28_190, %c1152_191], %106 {strides = array<i32>} : memref<36x3072xbf16, #tpu.memory_space<vmem>>, vector<4x384xbf16>,
    %c0_192 = arith.constant 0 : index
    %c0_193 = arith.constant 0 : index
    %c12_194 = arith.constant 12 : index
    %c38_195 = arith.constant 38 : index
    %108 = vector.load %arg2[%c0_192, %c0_193, %c12_194, %c38_195] : memref<1x1x32x512xbf16, #tpu.memory_space<vmem>>, vector<1x1x4x384xbf16>
    %109 = vector.shape_cast %108 : vector<1x1x4x384xbf16> to vector<4x384xbf16>
    %c32_196 = arith.constant 32 : index
    %c1152_197 = arith.constant 1152 : index
    %110 = vector.load %arg7[%c32_196, %c1152_197] : memref<36x3072xbf16, #tpu.memory_space<vmem>>, vector<4x384xbf16>
    tpu.vector_store %arg7[%c32_196, %c1152_197], %109 {strides = array<i32>} : memref<36x3072xbf16, #tpu.memory_space<vmem>>, vector<4x384xbf16>,
    %c0_198 = arith.constant 0 : index
    %c0_199 = arith.constant 0 : index
    %c16_200 = arith.constant 16 : index
    %c0_201 = arith.constant 0 : index
    %111 = vector.load %arg2[%c0_198, %c0_199, %c16_200, %c0_201] : memref<1x1x32x512xbf16, #tpu.memory_space<vmem>>, vector<1x1x4x384xbf16>
    %112 = vector.shape_cast %111 : vector<1x1x4x384xbf16> to vector<4x384xbf16>
    %c0_202 = arith.constant 0 : index
    %c1536 = arith.constant 1536 : index
    %113 = vector.load %arg7[%c0_202, %c1536] : memref<36x3072xbf16, #tpu.memory_space<vmem>>, vector<4x384xbf16>
    tpu.vector_store %arg7[%c0_202, %c1536], %112 {strides = array<i32>} : memref<36x3072xbf16, #tpu.memory_space<vmem>>, vector<4x384xbf16>,
    %c0_203 = arith.constant 0 : index
    %c0_204 = arith.constant 0 : index
    %c16_205 = arith.constant 16 : index
    %c1_206 = arith.constant 1 : index
    %114 = vector.load %arg2[%c0_203, %c0_204, %c16_205, %c1_206] : memref<1x1x32x512xbf16, #tpu.memory_space<vmem>>, vector<1x1x4x384xbf16>
    %115 = vector.shape_cast %114 : vector<1x1x4x384xbf16> to vector<4x384xbf16>
    %c4_207 = arith.constant 4 : index
    %c1536_208 = arith.constant 1536 : index
    %116 = vector.load %arg7[%c4_207, %c1536_208] : memref<36x3072xbf16, #tpu.memory_space<vmem>>, vector<4x384xbf16>
    tpu.vector_store %arg7[%c4_207, %c1536_208], %115 {strides = array<i32>} : memref<36x3072xbf16, #tpu.memory_space<vmem>>, vector<4x384xbf16>,
    %c0_209 = arith.constant 0 : index
    %c0_210 = arith.constant 0 : index
    %c16_211 = arith.constant 16 : index
    %c2_212 = arith.constant 2 : index
    %117 = vector.load %arg2[%c0_209, %c0_210, %c16_211, %c2_212] : memref<1x1x32x512xbf16, #tpu.memory_space<vmem>>, vector<1x1x4x384xbf16>
    %118 = vector.shape_cast %117 : vector<1x1x4x384xbf16> to vector<4x384xbf16>
    %c8_213 = arith.constant 8 : index
    %c1536_214 = arith.constant 1536 : index
    %119 = vector.load %arg7[%c8_213, %c1536_214] : memref<36x3072xbf16, #tpu.memory_space<vmem>>, vector<4x384xbf16>
    tpu.vector_store %arg7[%c8_213, %c1536_214], %118 {strides = array<i32>} : memref<36x3072xbf16, #tpu.memory_space<vmem>>, vector<4x384xbf16>,
    %c0_215 = arith.constant 0 : index
    %c0_216 = arith.constant 0 : index
    %c16_217 = arith.constant 16 : index
    %c18_218 = arith.constant 18 : index
    %120 = vector.load %arg2[%c0_215, %c0_216, %c16_217, %c18_218] : memref<1x1x32x512xbf16, #tpu.memory_space<vmem>>, vector<1x1x4x384xbf16>
    %121 = vector.shape_cast %120 : vector<1x1x4x384xbf16> to vector<4x384xbf16>
    %c12_219 = arith.constant 12 : index
    %c1536_220 = arith.constant 1536 : index
    %122 = vector.load %arg7[%c12_219, %c1536_220] : memref<36x3072xbf16, #tpu.memory_space<vmem>>, vector<4x384xbf16>
    tpu.vector_store %arg7[%c12_219, %c1536_220], %121 {strides = array<i32>} : memref<36x3072xbf16, #tpu.memory_space<vmem>>, vector<4x384xbf16>,
    %c0_221 = arith.constant 0 : index
    %c0_222 = arith.constant 0 : index
    %c16_223 = arith.constant 16 : index
    %c19_224 = arith.constant 19 : index
    %123 = vector.load %arg2[%c0_221, %c0_222, %c16_223, %c19_224] : memref<1x1x32x512xbf16, #tpu.memory_space<vmem>>, vector<1x1x4x384xbf16>
    %124 = vector.shape_cast %123 : vector<1x1x4x384xbf16> to vector<4x384xbf16>
    %c16_225 = arith.constant 16 : index
    %c1536_226 = arith.constant 1536 : index
    %125 = vector.load %arg7[%c16_225, %c1536_226] : memref<36x3072xbf16, #tpu.memory_space<vmem>>, vector<4x384xbf16>
    tpu.vector_store %arg7[%c16_225, %c1536_226], %124 {strides = array<i32>} : memref<36x3072xbf16, #tpu.memory_space<vmem>>, vector<4x384xbf16>,
    %c0_227 = arith.constant 0 : index
    %c0_228 = arith.constant 0 : index
    %c16_229 = arith.constant 16 : index
    %c20_230 = arith.constant 20 : index
    %126 = vector.load %arg2[%c0_227, %c0_228, %c16_229, %c20_230] : memref<1x1x32x512xbf16, #tpu.memory_space<vmem>>, vector<1x1x4x384xbf16>
    %127 = vector.shape_cast %126 : vector<1x1x4x384xbf16> to vector<4x384xbf16>
    %c20_231 = arith.constant 20 : index
    %c1536_232 = arith.constant 1536 : index
    %128 = vector.load %arg7[%c20_231, %c1536_232] : memref<36x3072xbf16, #tpu.memory_space<vmem>>, vector<4x384xbf16>
    tpu.vector_store %arg7[%c20_231, %c1536_232], %127 {strides = array<i32>} : memref<36x3072xbf16, #tpu.memory_space<vmem>>, vector<4x384xbf16>,
    %c0_233 = arith.constant 0 : index
    %c0_234 = arith.constant 0 : index
    %c16_235 = arith.constant 16 : index
    %c36_236 = arith.constant 36 : index
    %129 = vector.load %arg2[%c0_233, %c0_234, %c16_235, %c36_236] : memref<1x1x32x512xbf16, #tpu.memory_space<vmem>>, vector<1x1x4x384xbf16>
    %130 = vector.shape_cast %129 : vector<1x1x4x384xbf16> to vector<4x384xbf16>
    %c24_237 = arith.constant 24 : index
    %c1536_238 = arith.constant 1536 : index
    %131 = vector.load %arg7[%c24_237, %c1536_238] : memref<36x3072xbf16, #tpu.memory_space<vmem>>, vector<4x384xbf16>
    tpu.vector_store %arg7[%c24_237, %c1536_238], %130 {strides = array<i32>} : memref<36x3072xbf16, #tpu.memory_space<vmem>>, vector<4x384xbf16>,
    %c0_239 = arith.constant 0 : index
    %c0_240 = arith.constant 0 : index
    %c16_241 = arith.constant 16 : index
    %c37_242 = arith.constant 37 : index
    %132 = vector.load %arg2[%c0_239, %c0_240, %c16_241, %c37_242] : memref<1x1x32x512xbf16, #tpu.memory_space<vmem>>, vector<1x1x4x384xbf16>
    %133 = vector.shape_cast %132 : vector<1x1x4x384xbf16> to vector<4x384xbf16>
    %c28_243 = arith.constant 28 : index
    %c1536_244 = arith.constant 1536 : index
    %134 = vector.load %arg7[%c28_243, %c1536_244] : memref<36x3072xbf16, #tpu.memory_space<vmem>>, vector<4x384xbf16>
    tpu.vector_store %arg7[%c28_243, %c1536_244], %133 {strides = array<i32>} : memref<36x3072xbf16, #tpu.memory_space<vmem>>, vector<4x384xbf16>,
    %c0_245 = arith.constant 0 : index
    %c0_246 = arith.constant 0 : index
    %c16_247 = arith.constant 16 : index
    %c38_248 = arith.constant 38 : index
    %135 = vector.load %arg2[%c0_245, %c0_246, %c16_247, %c38_248] : memref<1x1x32x512xbf16, #tpu.memory_space<vmem>>, vector<1x1x4x384xbf16>
    %136 = vector.shape_cast %135 : vector<1x1x4x384xbf16> to vector<4x384xbf16>
    %c32_249 = arith.constant 32 : index
    %c1536_250 = arith.constant 1536 : index
    %137 = vector.load %arg7[%c32_249, %c1536_250] : memref<36x3072xbf16, #tpu.memory_space<vmem>>, vector<4x384xbf16>
    tpu.vector_store %arg7[%c32_249, %c1536_250], %136 {strides = array<i32>} : memref<36x3072xbf16, #tpu.memory_space<vmem>>, vector<4x384xbf16>,
    %c0_251 = arith.constant 0 : index
    %c0_252 = arith.constant 0 : index
    %c20_253 = arith.constant 20 : index
    %c0_254 = arith.constant 0 : index
    %138 = vector.load %arg2[%c0_251, %c0_252, %c20_253, %c0_254] : memref<1x1x32x512xbf16, #tpu.memory_space<vmem>>, vector<1x1x4x384xbf16>
    %139 = vector.shape_cast %138 : vector<1x1x4x384xbf16> to vector<4x384xbf16>
    %c0_255 = arith.constant 0 : index
    %c1920 = arith.constant 1920 : index
    %140 = vector.load %arg7[%c0_255, %c1920] : memref<36x3072xbf16, #tpu.memory_space<vmem>>, vector<4x384xbf16>
    tpu.vector_store %arg7[%c0_255, %c1920], %139 {strides = array<i32>} : memref<36x3072xbf16, #tpu.memory_space<vmem>>, vector<4x384xbf16>,
    %c0_256 = arith.constant 0 : index
    %c0_257 = arith.constant 0 : index
    %c20_258 = arith.constant 20 : index
    %c1_259 = arith.constant 1 : index
    %141 = vector.load %arg2[%c0_256, %c0_257, %c20_258, %c1_259] : memref<1x1x32x512xbf16, #tpu.memory_space<vmem>>, vector<1x1x4x384xbf16>
    %142 = vector.shape_cast %141 : vector<1x1x4x384xbf16> to vector<4x384xbf16>
    %c4_260 = arith.constant 4 : index
    %c1920_261 = arith.constant 1920 : index
    %143 = vector.load %arg7[%c4_260, %c1920_261] : memref<36x3072xbf16, #tpu.memory_space<vmem>>, vector<4x384xbf16>
    tpu.vector_store %arg7[%c4_260, %c1920_261], %142 {strides = array<i32>} : memref<36x3072xbf16, #tpu.memory_space<vmem>>, vector<4x384xbf16>,
    %c0_262 = arith.constant 0 : index
    %c0_263 = arith.constant 0 : index
    %c20_264 = arith.constant 20 : index
    %c2_265 = arith.constant 2 : index
    %144 = vector.load %arg2[%c0_262, %c0_263, %c20_264, %c2_265] : memref<1x1x32x512xbf16, #tpu.memory_space<vmem>>, vector<1x1x4x384xbf16>
    %145 = vector.shape_cast %144 : vector<1x1x4x384xbf16> to vector<4x384xbf16>
    %c8_266 = arith.constant 8 : index
    %c1920_267 = arith.constant 1920 : index
    %146 = vector.load %arg7[%c8_266, %c1920_267] : memref<36x3072xbf16, #tpu.memory_space<vmem>>, vector<4x384xbf16>
    tpu.vector_store %arg7[%c8_266, %c1920_267], %145 {strides = array<i32>} : memref<36x3072xbf16, #tpu.memory_space<vmem>>, vector<4x384xbf16>,
    %c0_268 = arith.constant 0 : index
    %c0_269 = arith.constant 0 : index
    %c20_270 = arith.constant 20 : index
    %c18_271 = arith.constant 18 : index
    %147 = vector.load %arg2[%c0_268, %c0_269, %c20_270, %c18_271] : memref<1x1x32x512xbf16, #tpu.memory_space<vmem>>, vector<1x1x4x384xbf16>
    %148 = vector.shape_cast %147 : vector<1x1x4x384xbf16> to vector<4x384xbf16>
    %c12_272 = arith.constant 12 : index
    %c1920_273 = arith.constant 1920 : index
    %149 = vector.load %arg7[%c12_272, %c1920_273] : memref<36x3072xbf16, #tpu.memory_space<vmem>>, vector<4x384xbf16>
    tpu.vector_store %arg7[%c12_272, %c1920_273], %148 {strides = array<i32>} : memref<36x3072xbf16, #tpu.memory_space<vmem>>, vector<4x384xbf16>,
    %c0_274 = arith.constant 0 : index
    %c0_275 = arith.constant 0 : index
    %c20_276 = arith.constant 20 : index
    %c19_277 = arith.constant 19 : index
    %150 = vector.load %arg2[%c0_274, %c0_275, %c20_276, %c19_277] : memref<1x1x32x512xbf16, #tpu.memory_space<vmem>>, vector<1x1x4x384xbf16>
    %151 = vector.shape_cast %150 : vector<1x1x4x384xbf16> to vector<4x384xbf16>
    %c16_278 = arith.constant 16 : index
    %c1920_279 = arith.constant 1920 : index
    %152 = vector.load %arg7[%c16_278, %c1920_279] : memref<36x3072xbf16, #tpu.memory_space<vmem>>, vector<4x384xbf16>
    tpu.vector_store %arg7[%c16_278, %c1920_279], %151 {strides = array<i32>} : memref<36x3072xbf16, #tpu.memory_space<vmem>>, vector<4x384xbf16>,
    %c0_280 = arith.constant 0 : index
    %c0_281 = arith.constant 0 : index
    %c20_282 = arith.constant 20 : index
    %c20_283 = arith.constant 20 : index
    %153 = vector.load %arg2[%c0_280, %c0_281, %c20_282, %c20_283] : memref<1x1x32x512xbf16, #tpu.memory_space<vmem>>, vector<1x1x4x384xbf16>
    %154 = vector.shape_cast %153 : vector<1x1x4x384xbf16> to vector<4x384xbf16>
    %c20_284 = arith.constant 20 : index
    %c1920_285 = arith.constant 1920 : index
    %155 = vector.load %arg7[%c20_284, %c1920_285] : memref<36x3072xbf16, #tpu.memory_space<vmem>>, vector<4x384xbf16>
    tpu.vector_store %arg7[%c20_284, %c1920_285], %154 {strides = array<i32>} : memref<36x3072xbf16, #tpu.memory_space<vmem>>, vector<4x384xbf16>,
    %c0_286 = arith.constant 0 : index
    %c0_287 = arith.constant 0 : index
    %c20_288 = arith.constant 20 : index
    %c36_289 = arith.constant 36 : index
    %156 = vector.load %arg2[%c0_286, %c0_287, %c20_288, %c36_289] : memref<1x1x32x512xbf16, #tpu.memory_space<vmem>>, vector<1x1x4x384xbf16>
    %157 = vector.shape_cast %156 : vector<1x1x4x384xbf16> to vector<4x384xbf16>
    %c24_290 = arith.constant 24 : index
    %c1920_291 = arith.constant 1920 : index
    %158 = vector.load %arg7[%c24_290, %c1920_291] : memref<36x3072xbf16, #tpu.memory_space<vmem>>, vector<4x384xbf16>
    tpu.vector_store %arg7[%c24_290, %c1920_291], %157 {strides = array<i32>} : memref<36x3072xbf16, #tpu.memory_space<vmem>>, vector<4x384xbf16>,
    %c0_292 = arith.constant 0 : index
    %c0_293 = arith.constant 0 : index
    %c20_294 = arith.constant 20 : index
    %c37_295 = arith.constant 37 : index
    %159 = vector.load %arg2[%c0_292, %c0_293, %c20_294, %c37_295] : memref<1x1x32x512xbf16, #tpu.memory_space<vmem>>, vector<1x1x4x384xbf16>
    %160 = vector.shape_cast %159 : vector<1x1x4x384xbf16> to vector<4x384xbf16>
    %c28_296 = arith.constant 28 : index
    %c1920_297 = arith.constant 1920 : index
    %161 = vector.load %arg7[%c28_296, %c1920_297] : memref<36x3072xbf16, #tpu.memory_space<vmem>>, vector<4x384xbf16>
    tpu.vector_store %arg7[%c28_296, %c1920_297], %160 {strides = array<i32>} : memref<36x3072xbf16, #tpu.memory_space<vmem>>, vector<4x384xbf16>,
    %c0_298 = arith.constant 0 : index
    %c0_299 = arith.constant 0 : index
    %c20_300 = arith.constant 20 : index
    %c38_301 = arith.constant 38 : index
    %162 = vector.load %arg2[%c0_298, %c0_299, %c20_300, %c38_301] : memref<1x1x32x512xbf16, #tpu.memory_space<vmem>>, vector<1x1x4x384xbf16>
    %163 = vector.shape_cast %162 : vector<1x1x4x384xbf16> to vector<4x384xbf16>
    %c32_302 = arith.constant 32 : index
    %c1920_303 = arith.constant 1920 : index
    %164 = vector.load %arg7[%c32_302, %c1920_303] : memref<36x3072xbf16, #tpu.memory_space<vmem>>, vector<4x384xbf16>
    tpu.vector_store %arg7[%c32_302, %c1920_303], %163 {strides = array<i32>} : memref<36x3072xbf16, #tpu.memory_space<vmem>>, vector<4x384xbf16>,
    %c0_304 = arith.constant 0 : index
    %c0_305 = arith.constant 0 : index
    %c24_306 = arith.constant 24 : index
    %c0_307 = arith.constant 0 : index
    %165 = vector.load %arg2[%c0_304, %c0_305, %c24_306, %c0_307] : memref<1x1x32x512xbf16, #tpu.memory_space<vmem>>, vector<1x1x4x384xbf16>
    %166 = vector.shape_cast %165 : vector<1x1x4x384xbf16> to vector<4x384xbf16>
    %c0_308 = arith.constant 0 : index
    %c2304 = arith.constant 2304 : index
    %167 = vector.load %arg7[%c0_308, %c2304] : memref<36x3072xbf16, #tpu.memory_space<vmem>>, vector<4x384xbf16>
    tpu.vector_store %arg7[%c0_308, %c2304], %166 {strides = array<i32>} : memref<36x3072xbf16, #tpu.memory_space<vmem>>, vector<4x384xbf16>,
    %c0_309 = arith.constant 0 : index
    %c0_310 = arith.constant 0 : index
    %c24_311 = arith.constant 24 : index
    %c1_312 = arith.constant 1 : index
    %168 = vector.load %arg2[%c0_309, %c0_310, %c24_311, %c1_312] : memref<1x1x32x512xbf16, #tpu.memory_space<vmem>>, vector<1x1x4x384xbf16>
    %169 = vector.shape_cast %168 : vector<1x1x4x384xbf16> to vector<4x384xbf16>
    %c4_313 = arith.constant 4 : index
    %c2304_314 = arith.constant 2304 : index
    %170 = vector.load %arg7[%c4_313, %c2304_314] : memref<36x3072xbf16, #tpu.memory_space<vmem>>, vector<4x384xbf16>
    tpu.vector_store %arg7[%c4_313, %c2304_314], %169 {strides = array<i32>} : memref<36x3072xbf16, #tpu.memory_space<vmem>>, vector<4x384xbf16>,
    %c0_315 = arith.constant 0 : index
    %c0_316 = arith.constant 0 : index
    %c24_317 = arith.constant 24 : index
    %c2_318 = arith.constant 2 : index
    %171 = vector.load %arg2[%c0_315, %c0_316, %c24_317, %c2_318] : memref<1x1x32x512xbf16, #tpu.memory_space<vmem>>, vector<1x1x4x384xbf16>
    %172 = vector.shape_cast %171 : vector<1x1x4x384xbf16> to vector<4x384xbf16>
    %c8_319 = arith.constant 8 : index
    %c2304_320 = arith.constant 2304 : index
    %173 = vector.load %arg7[%c8_319, %c2304_320] : memref<36x3072xbf16, #tpu.memory_space<vmem>>, vector<4x384xbf16>
    tpu.vector_store %arg7[%c8_319, %c2304_320], %172 {strides = array<i32>} : memref<36x3072xbf16, #tpu.memory_space<vmem>>, vector<4x384xbf16>,
    %c0_321 = arith.constant 0 : index
    %c0_322 = arith.constant 0 : index
    %c24_323 = arith.constant 24 : index
    %c18_324 = arith.constant 18 : index
    %174 = vector.load %arg2[%c0_321, %c0_322, %c24_323, %c18_324] : memref<1x1x32x512xbf16, #tpu.memory_space<vmem>>, vector<1x1x4x384xbf16>
    %175 = vector.shape_cast %174 : vector<1x1x4x384xbf16> to vector<4x384xbf16>
    %c12_325 = arith.constant 12 : index
    %c2304_326 = arith.constant 2304 : index
    %176 = vector.load %arg7[%c12_325, %c2304_326] : memref<36x3072xbf16, #tpu.memory_space<vmem>>, vector<4x384xbf16>
    tpu.vector_store %arg7[%c12_325, %c2304_326], %175 {strides = array<i32>} : memref<36x3072xbf16, #tpu.memory_space<vmem>>, vector<4x384xbf16>,
    %c0_327 = arith.constant 0 : index
    %c0_328 = arith.constant 0 : index
    %c24_329 = arith.constant 24 : index
    %c19_330 = arith.constant 19 : index
    %177 = vector.load %arg2[%c0_327, %c0_328, %c24_329, %c19_330] : memref<1x1x32x512xbf16, #tpu.memory_space<vmem>>, vector<1x1x4x384xbf16>
    %178 = vector.shape_cast %177 : vector<1x1x4x384xbf16> to vector<4x384xbf16>
    %c16_331 = arith.constant 16 : index
    %c2304_332 = arith.constant 2304 : index
    %179 = vector.load %arg7[%c16_331, %c2304_332] : memref<36x3072xbf16, #tpu.memory_space<vmem>>, vector<4x384xbf16>
    tpu.vector_store %arg7[%c16_331, %c2304_332], %178 {strides = array<i32>} : memref<36x3072xbf16, #tpu.memory_space<vmem>>, vector<4x384xbf16>,
    %c0_333 = arith.constant 0 : index
    %c0_334 = arith.constant 0 : index
    %c24_335 = arith.constant 24 : index
    %c20_336 = arith.constant 20 : index
    %180 = vector.load %arg2[%c0_333, %c0_334, %c24_335, %c20_336] : memref<1x1x32x512xbf16, #tpu.memory_space<vmem>>, vector<1x1x4x384xbf16>
    %181 = vector.shape_cast %180 : vector<1x1x4x384xbf16> to vector<4x384xbf16>
    %c20_337 = arith.constant 20 : index
    %c2304_338 = arith.constant 2304 : index
    %182 = vector.load %arg7[%c20_337, %c2304_338] : memref<36x3072xbf16, #tpu.memory_space<vmem>>, vector<4x384xbf16>
    tpu.vector_store %arg7[%c20_337, %c2304_338], %181 {strides = array<i32>} : memref<36x3072xbf16, #tpu.memory_space<vmem>>, vector<4x384xbf16>,
    %c0_339 = arith.constant 0 : index
    %c0_340 = arith.constant 0 : index
    %c24_341 = arith.constant 24 : index
    %c36_342 = arith.constant 36 : index
    %183 = vector.load %arg2[%c0_339, %c0_340, %c24_341, %c36_342] : memref<1x1x32x512xbf16, #tpu.memory_space<vmem>>, vector<1x1x4x384xbf16>
    %184 = vector.shape_cast %183 : vector<1x1x4x384xbf16> to vector<4x384xbf16>
    %c24_343 = arith.constant 24 : index
    %c2304_344 = arith.constant 2304 : index
    %185 = vector.load %arg7[%c24_343, %c2304_344] : memref<36x3072xbf16, #tpu.memory_space<vmem>>, vector<4x384xbf16>
    tpu.vector_store %arg7[%c24_343, %c2304_344], %184 {strides = array<i32>} : memref<36x3072xbf16, #tpu.memory_space<vmem>>, vector<4x384xbf16>,
    %c0_345 = arith.constant 0 : index
    %c0_346 = arith.constant 0 : index
    %c24_347 = arith.constant 24 : index
    %c37_348 = arith.constant 37 : index
    %186 = vector.load %arg2[%c0_345, %c0_346, %c24_347, %c37_348] : memref<1x1x32x512xbf16, #tpu.memory_space<vmem>>, vector<1x1x4x384xbf16>
    %187 = vector.shape_cast %186 : vector<1x1x4x384xbf16> to vector<4x384xbf16>
    %c28_349 = arith.constant 28 : index
    %c2304_350 = arith.constant 2304 : index
    %188 = vector.load %arg7[%c28_349, %c2304_350] : memref<36x3072xbf16, #tpu.memory_space<vmem>>, vector<4x384xbf16>
    tpu.vector_store %arg7[%c28_349, %c2304_350], %187 {strides = array<i32>} : memref<36x3072xbf16, #tpu.memory_space<vmem>>, vector<4x384xbf16>,
    %c0_351 = arith.constant 0 : index
    %c0_352 = arith.constant 0 : index
    %c24_353 = arith.constant 24 : index
    %c38_354 = arith.constant 38 : index
    %189 = vector.load %arg2[%c0_351, %c0_352, %c24_353, %c38_354] : memref<1x1x32x512xbf16, #tpu.memory_space<vmem>>, vector<1x1x4x384xbf16>
    %190 = vector.shape_cast %189 : vector<1x1x4x384xbf16> to vector<4x384xbf16>
    %c32_355 = arith.constant 32 : index
    %c2304_356 = arith.constant 2304 : index
    %191 = vector.load %arg7[%c32_355, %c2304_356] : memref<36x3072xbf16, #tpu.memory_space<vmem>>, vector<4x384xbf16>
    tpu.vector_store %arg7[%c32_355, %c2304_356], %190 {strides = array<i32>} : memref<36x3072xbf16, #tpu.memory_space<vmem>>, vector<4x384xbf16>,
    %c0_357 = arith.constant 0 : index
    %c0_358 = arith.constant 0 : index
    %c28_359 = arith.constant 28 : index
    %c0_360 = arith.constant 0 : index
    %192 = vector.load %arg2[%c0_357, %c0_358, %c28_359, %c0_360] : memref<1x1x32x512xbf16, #tpu.memory_space<vmem>>, vector<1x1x4x384xbf16>
    %193 = vector.shape_cast %192 : vector<1x1x4x384xbf16> to vector<4x384xbf16>
    %c0_361 = arith.constant 0 : index
    %c2688 = arith.constant 2688 : index
    %194 = vector.load %arg7[%c0_361, %c2688] : memref<36x3072xbf16, #tpu.memory_space<vmem>>, vector<4x384xbf16>
    tpu.vector_store %arg7[%c0_361, %c2688], %193 {strides = array<i32>} : memref<36x3072xbf16, #tpu.memory_space<vmem>>, vector<4x384xbf16>,
    %c0_362 = arith.constant 0 : index
    %c0_363 = arith.constant 0 : index
    %c28_364 = arith.constant 28 : index
    %c1_365 = arith.constant 1 : index
    %195 = vector.load %arg2[%c0_362, %c0_363, %c28_364, %c1_365] : memref<1x1x32x512xbf16, #tpu.memory_space<vmem>>, vector<1x1x4x384xbf16>
    %196 = vector.shape_cast %195 : vector<1x1x4x384xbf16> to vector<4x384xbf16>
    %c4_366 = arith.constant 4 : index
    %c2688_367 = arith.constant 2688 : index
    %197 = vector.load %arg7[%c4_366, %c2688_367] : memref<36x3072xbf16, #tpu.memory_space<vmem>>, vector<4x384xbf16>
    tpu.vector_store %arg7[%c4_366, %c2688_367], %196 {strides = array<i32>} : memref<36x3072xbf16, #tpu.memory_space<vmem>>, vector<4x384xbf16>,
    %c0_368 = arith.constant 0 : index
    %c0_369 = arith.constant 0 : index
    %c28_370 = arith.constant 28 : index
    %c2_371 = arith.constant 2 : index
    %198 = vector.load %arg2[%c0_368, %c0_369, %c28_370, %c2_371] : memref<1x1x32x512xbf16, #tpu.memory_space<vmem>>, vector<1x1x4x384xbf16>
    %199 = vector.shape_cast %198 : vector<1x1x4x384xbf16> to vector<4x384xbf16>
    %c8_372 = arith.constant 8 : index
    %c2688_373 = arith.constant 2688 : index
    %200 = vector.load %arg7[%c8_372, %c2688_373] : memref<36x3072xbf16, #tpu.memory_space<vmem>>, vector<4x384xbf16>
    tpu.vector_store %arg7[%c8_372, %c2688_373], %199 {strides = array<i32>} : memref<36x3072xbf16, #tpu.memory_space<vmem>>, vector<4x384xbf16>,
    %c0_374 = arith.constant 0 : index
    %c0_375 = arith.constant 0 : index
    %c28_376 = arith.constant 28 : index
    %c18_377 = arith.constant 18 : index
    %201 = vector.load %arg2[%c0_374, %c0_375, %c28_376, %c18_377] : memref<1x1x32x512xbf16, #tpu.memory_space<vmem>>, vector<1x1x4x384xbf16>
    %202 = vector.shape_cast %201 : vector<1x1x4x384xbf16> to vector<4x384xbf16>
    %c12_378 = arith.constant 12 : index
    %c2688_379 = arith.constant 2688 : index
    %203 = vector.load %arg7[%c12_378, %c2688_379] : memref<36x3072xbf16, #tpu.memory_space<vmem>>, vector<4x384xbf16>
    tpu.vector_store %arg7[%c12_378, %c2688_379], %202 {strides = array<i32>} : memref<36x3072xbf16, #tpu.memory_space<vmem>>, vector<4x384xbf16>,
    %c0_380 = arith.constant 0 : index
    %c0_381 = arith.constant 0 : index
    %c28_382 = arith.constant 28 : index
    %c19_383 = arith.constant 19 : index
    %204 = vector.load %arg2[%c0_380, %c0_381, %c28_382, %c19_383] : memref<1x1x32x512xbf16, #tpu.memory_space<vmem>>, vector<1x1x4x384xbf16>
    %205 = vector.shape_cast %204 : vector<1x1x4x384xbf16> to vector<4x384xbf16>
    %c16_384 = arith.constant 16 : index
    %c2688_385 = arith.constant 2688 : index
    %206 = vector.load %arg7[%c16_384, %c2688_385] : memref<36x3072xbf16, #tpu.memory_space<vmem>>, vector<4x384xbf16>
    tpu.vector_store %arg7[%c16_384, %c2688_385], %205 {strides = array<i32>} : memref<36x3072xbf16, #tpu.memory_space<vmem>>, vector<4x384xbf16>,
    %c0_386 = arith.constant 0 : index
    %c0_387 = arith.constant 0 : index
    %c28_388 = arith.constant 28 : index
    %c20_389 = arith.constant 20 : index
    %207 = vector.load %arg2[%c0_386, %c0_387, %c28_388, %c20_389] : memref<1x1x32x512xbf16, #tpu.memory_space<vmem>>, vector<1x1x4x384xbf16>
    %208 = vector.shape_cast %207 : vector<1x1x4x384xbf16> to vector<4x384xbf16>
    %c20_390 = arith.constant 20 : index
    %c2688_391 = arith.constant 2688 : index
    %209 = vector.load %arg7[%c20_390, %c2688_391] : memref<36x3072xbf16, #tpu.memory_space<vmem>>, vector<4x384xbf16>
    tpu.vector_store %arg7[%c20_390, %c2688_391], %208 {strides = array<i32>} : memref<36x3072xbf16, #tpu.memory_space<vmem>>, vector<4x384xbf16>,
    %c0_392 = arith.constant 0 : index
    %c0_393 = arith.constant 0 : index
    %c28_394 = arith.constant 28 : index
    %c36_395 = arith.constant 36 : index
    %210 = vector.load %arg2[%c0_392, %c0_393, %c28_394, %c36_395] : memref<1x1x32x512xbf16, #tpu.memory_space<vmem>>, vector<1x1x4x384xbf16>
    %211 = vector.shape_cast %210 : vector<1x1x4x384xbf16> to vector<4x384xbf16>
    %c24_396 = arith.constant 24 : index
    %c2688_397 = arith.constant 2688 : index
    %212 = vector.load %arg7[%c24_396, %c2688_397] : memref<36x3072xbf16, #tpu.memory_space<vmem>>, vector<4x384xbf16>
    tpu.vector_store %arg7[%c24_396, %c2688_397], %211 {strides = array<i32>} : memref<36x3072xbf16, #tpu.memory_space<vmem>>, vector<4x384xbf16>,
    %c0_398 = arith.constant 0 : index
    %c0_399 = arith.constant 0 : index
    %c28_400 = arith.constant 28 : index
    %c37_401 = arith.constant 37 : index
    %213 = vector.load %arg2[%c0_398, %c0_399, %c28_400, %c37_401] : memref<1x1x32x512xbf16, #tpu.memory_space<vmem>>, vector<1x1x4x384xbf16>
    %214 = vector.shape_cast %213 : vector<1x1x4x384xbf16> to vector<4x384xbf16>
    %c28_402 = arith.constant 28 : index
    %c2688_403 = arith.constant 2688 : index
    %215 = vector.load %arg7[%c28_402, %c2688_403] : memref<36x3072xbf16, #tpu.memory_space<vmem>>, vector<4x384xbf16>
    tpu.vector_store %arg7[%c28_402, %c2688_403], %214 {strides = array<i32>} : memref<36x3072xbf16, #tpu.memory_space<vmem>>, vector<4x384xbf16>,
    %c0_404 = arith.constant 0 : index
    %c0_405 = arith.constant 0 : index
    %c28_406 = arith.constant 28 : index
    %c38_407 = arith.constant 38 : index
    %216 = vector.load %arg2[%c0_404, %c0_405, %c28_406, %c38_407] : memref<1x1x32x512xbf16, #tpu.memory_space<vmem>>, vector<1x1x4x384xbf16>
    %217 = vector.shape_cast %216 : vector<1x1x4x384xbf16> to vector<4x384xbf16>
    %c32_408 = arith.constant 32 : index
    %c2688_409 = arith.constant 2688 : index
    %218 = vector.load %arg7[%c32_408, %c2688_409] : memref<36x3072xbf16, #tpu.memory_space<vmem>>, vector<4x384xbf16>
    tpu.vector_store %arg7[%c32_408, %c2688_409], %217 {strides = array<i32>} : memref<36x3072xbf16, #tpu.memory_space<vmem>>, vector<4x384xbf16>,
    %c0_410 = arith.constant 0 : index
    %c0_411 = arith.constant 0 : index
    %219 = vector.load %arg3[%c0_410, %c0_411] : memref<8x36xbf16, #tpu.memory_space<vmem>>, vector<8x36xbf16>
    %c0_412 = arith.constant 0 : index
    %c0_413 = arith.constant 0 : index
    %220 = vector.load %arg7[%c0_412, %c0_413] : memref<36x3072xbf16, #tpu.memory_space<vmem>>, vector<36x3072xbf16>
    %cst = arith.constant dense<0.000000e+00> : vector<8x3072xf32>
    %221 = tpu.matmul %219, %220, %cst {dimension_numbers = #tpu.dot_dimension_numbers<[1], [0], [0], [1], [0, 0, 1, 1], [], []>} : vector<8x36xbf16>, vector<36x3072xbf16>, vector<8x3072xf32> -> vector<8x3072xf32>
    %c0_414 = arith.constant 0 : index
    %c0_415 = arith.constant 0 : index
    %222 = vector.load %arg8[%c0_414, %c0_415] : memref<8x3072xf32, #tpu.memory_space<vmem>>, vector<8x3072xf32>
    tpu.vector_store %arg8[%c0_414, %c0_415], %221 {strides = array<i32>} : memref<8x3072xf32, #tpu.memory_space<vmem>>, vector<8x3072xf32>,
    %c0_416 = arith.constant 0 : index
    %c0_417 = arith.constant 0 : index
    %223 = vector.load %arg4[%c0_416, %c0_417] : memref<1x3072xf32, #tpu.memory_space<vmem>>, vector<1x3072xf32>
    %cst_418 = arith.constant 5.000000e-01 : f32
    %224 = vector.broadcast %cst_418 : f32 to vector<1x3072xf32>
    %225 = arith.cmpf ogt, %223, %224 : vector<1x3072xf32>
    %c0_419 = arith.constant 0 : index
    %c0_420 = arith.constant 0 : index
    %226 = vector.load %arg8[%c0_419, %c0_420] : memref<8x3072xf32, #tpu.memory_space<vmem>>, vector<8x3072xf32>
    %cst_421 = arith.constant 0xFF800000 : f32
    %227 = vector.shape_cast %225 : vector<1x3072xi1> to vector<1x3072xi1>
    %228 = vector.broadcast %227 : vector<1x3072xi1> to vector<8x3072xi1>
    %229 = vector.broadcast %cst_421 : f32 to vector<8x3072xf32>
    %230 = arith.select %228, %226, %229 : vector<8x3072xi1>, vector<8x3072xf32>
    %c0_422 = arith.constant 0 : index
    %c0_423 = arith.constant 0 : index
    %c0_424 = arith.constant 0 : index
    %231 = vector.load %arg6[%c0_422, %c0_423, %c0_424] : memref<1x1x1xf32, #tpu.memory_space<vmem>>, vector<1x1x1xf32>
    %232 = vector.shape_cast %231 : vector<1x1x1xf32> to vector<1x1xf32>
    %233 = vector.shape_cast %230 : vector<8x3072xf32> to vector<1x8x3072xf32>
    %cst_425 = arith.constant dense<0xFF800000> : vector<1xf32>
    %234 = vector.multi_reduction <maximumf>, %233, %cst_425 [1, 2] : vector<1x8x3072xf32> to vector<1xf32>
    %235 = vector.shape_cast %234 : vector<1xf32> to vector<1x1x1xf32>
    %236 = vector.extract %235[0, 0, 0] : f32 from vector<1x1x1xf32>
    %237 = vector.broadcast %236 : f32 to vector<1x1xf32>
    %238 = arith.maximumf %232, %237 : vector<1x1xf32>
    %c0_426 = arith.constant 0 : index
    %c0_427 = arith.constant 0 : index
    %c0_428 = arith.constant 0 : index
    %239 = vector.load %arg6[%c0_426, %c0_427, %c0_428] : memref<1x1x1xf32, #tpu.memory_space<vmem>>, vector<1x1x1xf32>
    %240 = vector.shape_cast %239 : vector<1x1x1xf32> to vector<1x1xf32>
    %241 = vector.shape_cast %238 : vector<1x1xf32> to vector<1x1x1xf32>
    tpu.vector_store %arg6[%c0_426, %c0_427, %c0_428], %241 {strides = array<i32>} : memref<1x1x1xf32, #tpu.memory_space<vmem>>, vector<1x1x1xf32>,
    %c0_i32_429 = arith.constant 0 : i32
    %c384_i32 = arith.constant 384 : i32
    %242 = arith.muli %c0_i32_429, %c384_i32 : i32
    %243 = tpu.assume_multiple %242, 128 : i32
    %c0_430 = arith.constant 0 : index
    %244 = arith.index_cast %243 : i32 to index
    %245 = vector.load %arg8[%c0_430, %244] : memref<8x3072xf32, #tpu.memory_space<vmem>>, vector<8x384xf32>
    %c0_431 = arith.constant 0 : index
    %c0_432 = arith.constant 0 : index
    %246 = vector.load %arg9[%c0_431, %c0_432] : memref<8x384xf32, #tpu.memory_space<vmem>>, vector<8x384xf32>
    %cst_433 = arith.constant 0.899999976 : f32
    %247 = vector.broadcast %cst_433 : f32 to vector<8x384xf32>
    %248 = arith.mulf %247, %246 : vector<8x384xf32>
    %249 = arith.addf %248, %245 : vector<8x384xf32>
    %cst_434 = arith.constant 1.000000e+00 : f32
    %250 = vector.broadcast %cst_434 : f32 to vector<8x384xf32>
    %251 = arith.cmpf oge, %249, %250 : vector<8x384xf32>
    %252 = arith.extui %251 : vector<8x384xi1> to vector<8x384xi32>
    %253 = arith.sitofp %252 : vector<8x384xi32> to vector<8x384xf32>
    %cst_435 = arith.constant 1.000000e+00 : f32
    %254 = vector.broadcast %cst_435 : f32 to vector<8x384xf32>
    %255 = arith.mulf %253, %254 : vector<8x384xf32>
    %256 = arith.subf %249, %255 : vector<8x384xf32>
    %c0_436 = arith.constant 0 : index
    %c0_437 = arith.constant 0 : index
    %257 = vector.load %arg9[%c0_436, %c0_437] : memref<8x384xf32, #tpu.memory_space<vmem>>, vector<8x384xf32>
    tpu.vector_store %arg9[%c0_436, %c0_437], %256 {strides = array<i32>} : memref<8x384xf32, #tpu.memory_space<vmem>>, vector<8x384xf32>,
    %c8_i32 = arith.constant 8 : i32
    %258 = arith.muli %c0_i32_429, %c8_i32 : i32
    %259 = tpu.assume_multiple %258, 8 : i32
    %260 = arith.truncf %253 : vector<8x384xf32> to vector<8x384xbf16>
    %c0_438 = arith.constant 0 : index
    %c0_439 = arith.constant 0 : index
    %261 = arith.index_cast %259 : i32 to index
    %c0_440 = arith.constant 0 : index
    %262 = vector.load %arg5[%c0_438, %c0_439, %261, %c0_440] : memref<1x1x64x384xbf16, #tpu.memory_space<vmem>>, vector<1x1x8x384xbf16>
    %263 = vector.shape_cast %262 : vector<1x1x8x384xbf16> to vector<8x384xbf16>
    %264 = vector.shape_cast %260 : vector<8x384xbf16> to vector<1x1x8x384xbf16>
    tpu.vector_store %arg5[%c0_438, %c0_439, %261, %c0_440], %264 {strides = array<i32>} : memref<1x1x64x384xbf16, #tpu.memory_space<vmem>>, vector<1x1x8x384xbf16>,
    %c1_i32 = arith.constant 1 : i32
    %c384_i32_441 = arith.constant 384 : i32
    %265 = arith.muli %c1_i32, %c384_i32_441 : i32
    %266 = tpu.assume_multiple %265, 128 : i32
    %c0_442 = arith.constant 0 : index
    %267 = arith.index_cast %266 : i32 to index
    %268 = vector.load %arg8[%c0_442, %267] : memref<8x3072xf32, #tpu.memory_space<vmem>>, vector<8x384xf32>
    %c0_443 = arith.constant 0 : index
    %c0_444 = arith.constant 0 : index
    %269 = vector.load %arg9[%c0_443, %c0_444] : memref<8x384xf32, #tpu.memory_space<vmem>>, vector<8x384xf32>
    %cst_445 = arith.constant 0.899999976 : f32
    %270 = vector.broadcast %cst_445 : f32 to vector<8x384xf32>
    %271 = arith.mulf %270, %269 : vector<8x384xf32>
    %272 = arith.addf %271, %268 : vector<8x384xf32>
    %cst_446 = arith.constant 1.000000e+00 : f32
    %273 = vector.broadcast %cst_446 : f32 to vector<8x384xf32>
    %274 = arith.cmpf oge, %272, %273 : vector<8x384xf32>
    %275 = arith.extui %274 : vector<8x384xi1> to vector<8x384xi32>
    %276 = arith.sitofp %275 : vector<8x384xi32> to vector<8x384xf32>
    %cst_447 = arith.constant 1.000000e+00 : f32
    %277 = vector.broadcast %cst_447 : f32 to vector<8x384xf32>
    %278 = arith.mulf %276, %277 : vector<8x384xf32>
    %279 = arith.subf %272, %278 : vector<8x384xf32>
    %c0_448 = arith.constant 0 : index
    %c0_449 = arith.constant 0 : index
    %280 = vector.load %arg9[%c0_448, %c0_449] : memref<8x384xf32, #tpu.memory_space<vmem>>, vector<8x384xf32>
    tpu.vector_store %arg9[%c0_448, %c0_449], %279 {strides = array<i32>} : memref<8x384xf32, #tpu.memory_space<vmem>>, vector<8x384xf32>,
    %c8_i32_450 = arith.constant 8 : i32
    %281 = arith.muli %c1_i32, %c8_i32_450 : i32
    %282 = tpu.assume_multiple %281, 8 : i32
    %283 = arith.truncf %276 : vector<8x384xf32> to vector<8x384xbf16>
    %c0_451 = arith.constant 0 : index
    %c0_452 = arith.constant 0 : index
    %284 = arith.index_cast %282 : i32 to index
    %c0_453 = arith.constant 0 : index
    %285 = vector.load %arg5[%c0_451, %c0_452, %284, %c0_453] : memref<1x1x64x384xbf16, #tpu.memory_space<vmem>>, vector<1x1x8x384xbf16>
    %286 = vector.shape_cast %285 : vector<1x1x8x384xbf16> to vector<8x384xbf16>
    %287 = vector.shape_cast %283 : vector<8x384xbf16> to vector<1x1x8x384xbf16>
    tpu.vector_store %arg5[%c0_451, %c0_452, %284, %c0_453], %287 {strides = array<i32>} : memref<1x1x64x384xbf16, #tpu.memory_space<vmem>>, vector<1x1x8x384xbf16>,
    %c2_i32 = arith.constant 2 : i32
    %c384_i32_454 = arith.constant 384 : i32
    %288 = arith.muli %c2_i32, %c384_i32_454 : i32
    %289 = tpu.assume_multiple %288, 128 : i32
    %c0_455 = arith.constant 0 : index
    %290 = arith.index_cast %289 : i32 to index
    %291 = vector.load %arg8[%c0_455, %290] : memref<8x3072xf32, #tpu.memory_space<vmem>>, vector<8x384xf32>
    %c0_456 = arith.constant 0 : index
    %c0_457 = arith.constant 0 : index
    %292 = vector.load %arg9[%c0_456, %c0_457] : memref<8x384xf32, #tpu.memory_space<vmem>>, vector<8x384xf32>
    %cst_458 = arith.constant 0.899999976 : f32
    %293 = vector.broadcast %cst_458 : f32 to vector<8x384xf32>
    %294 = arith.mulf %293, %292 : vector<8x384xf32>
    %295 = arith.addf %294, %291 : vector<8x384xf32>
    %cst_459 = arith.constant 1.000000e+00 : f32
    %296 = vector.broadcast %cst_459 : f32 to vector<8x384xf32>
    %297 = arith.cmpf oge, %295, %296 : vector<8x384xf32>
    %298 = arith.extui %297 : vector<8x384xi1> to vector<8x384xi32>
    %299 = arith.sitofp %298 : vector<8x384xi32> to vector<8x384xf32>
    %cst_460 = arith.constant 1.000000e+00 : f32
    %300 = vector.broadcast %cst_460 : f32 to vector<8x384xf32>
    %301 = arith.mulf %299, %300 : vector<8x384xf32>
    %302 = arith.subf %295, %301 : vector<8x384xf32>
    %c0_461 = arith.constant 0 : index
    %c0_462 = arith.constant 0 : index
    %303 = vector.load %arg9[%c0_461, %c0_462] : memref<8x384xf32, #tpu.memory_space<vmem>>, vector<8x384xf32>
    tpu.vector_store %arg9[%c0_461, %c0_462], %302 {strides = array<i32>} : memref<8x384xf32, #tpu.memory_space<vmem>>, vector<8x384xf32>,
    %c8_i32_463 = arith.constant 8 : i32
    %304 = arith.muli %c2_i32, %c8_i32_463 : i32
    %305 = tpu.assume_multiple %304, 8 : i32
    %306 = arith.truncf %299 : vector<8x384xf32> to vector<8x384xbf16>
    %c0_464 = arith.constant 0 : index
    %c0_465 = arith.constant 0 : index
    %307 = arith.index_cast %305 : i32 to index
    %c0_466 = arith.constant 0 : index
    %308 = vector.load %arg5[%c0_464, %c0_465, %307, %c0_466] : memref<1x1x64x384xbf16, #tpu.memory_space<vmem>>, vector<1x1x8x384xbf16>
    %309 = vector.shape_cast %308 : vector<1x1x8x384xbf16> to vector<8x384xbf16>
    %310 = vector.shape_cast %306 : vector<8x384xbf16> to vector<1x1x8x384xbf16>
    tpu.vector_store %arg5[%c0_464, %c0_465, %307, %c0_466], %310 {strides = array<i32>} : memref<1x1x64x384xbf16, #tpu.memory_space<vmem>>, vector<1x1x8x384xbf16>,
    %c3_i32 = arith.constant 3 : i32
    %c384_i32_467 = arith.constant 384 : i32
    %311 = arith.muli %c3_i32, %c384_i32_467 : i32
    %312 = tpu.assume_multiple %311, 128 : i32
    %c0_468 = arith.constant 0 : index
    %313 = arith.index_cast %312 : i32 to index
    %314 = vector.load %arg8[%c0_468, %313] : memref<8x3072xf32, #tpu.memory_space<vmem>>, vector<8x384xf32>
    %c0_469 = arith.constant 0 : index
    %c0_470 = arith.constant 0 : index
    %315 = vector.load %arg9[%c0_469, %c0_470] : memref<8x384xf32, #tpu.memory_space<vmem>>, vector<8x384xf32>
    %cst_471 = arith.constant 0.899999976 : f32
    %316 = vector.broadcast %cst_471 : f32 to vector<8x384xf32>
    %317 = arith.mulf %316, %315 : vector<8x384xf32>
    %318 = arith.addf %317, %314 : vector<8x384xf32>
    %cst_472 = arith.constant 1.000000e+00 : f32
    %319 = vector.broadcast %cst_472 : f32 to vector<8x384xf32>
    %320 = arith.cmpf oge, %318, %319 : vector<8x384xf32>
    %321 = arith.extui %320 : vector<8x384xi1> to vector<8x384xi32>
    %322 = arith.sitofp %321 : vector<8x384xi32> to vector<8x384xf32>
    %cst_473 = arith.constant 1.000000e+00 : f32
    %323 = vector.broadcast %cst_473 : f32 to vector<8x384xf32>
    %324 = arith.mulf %322, %323 : vector<8x384xf32>
    %325 = arith.subf %318, %324 : vector<8x384xf32>
    %c0_474 = arith.constant 0 : index
    %c0_475 = arith.constant 0 : index
    %326 = vector.load %arg9[%c0_474, %c0_475] : memref<8x384xf32, #tpu.memory_space<vmem>>, vector<8x384xf32>
    tpu.vector_store %arg9[%c0_474, %c0_475], %325 {strides = array<i32>} : memref<8x384xf32, #tpu.memory_space<vmem>>, vector<8x384xf32>,
    %c8_i32_476 = arith.constant 8 : i32
    %327 = arith.muli %c3_i32, %c8_i32_476 : i32
    %328 = tpu.assume_multiple %327, 8 : i32
    %329 = arith.truncf %322 : vector<8x384xf32> to vector<8x384xbf16>
    %c0_477 = arith.constant 0 : index
    %c0_478 = arith.constant 0 : index
    %330 = arith.index_cast %328 : i32 to index
    %c0_479 = arith.constant 0 : index
    %331 = vector.load %arg5[%c0_477, %c0_478, %330, %c0_479] : memref<1x1x64x384xbf16, #tpu.memory_space<vmem>>, vector<1x1x8x384xbf16>
    %332 = vector.shape_cast %331 : vector<1x1x8x384xbf16> to vector<8x384xbf16>
    %333 = vector.shape_cast %329 : vector<8x384xbf16> to vector<1x1x8x384xbf16>
    tpu.vector_store %arg5[%c0_477, %c0_478, %330, %c0_479], %333 {strides = array<i32>} : memref<1x1x64x384xbf16, #tpu.memory_space<vmem>>, vector<1x1x8x384xbf16>,
    %c4_i32 = arith.constant 4 : i32
    %c384_i32_480 = arith.constant 384 : i32
    %334 = arith.muli %c4_i32, %c384_i32_480 : i32
    %335 = tpu.assume_multiple %334, 128 : i32
    %c0_481 = arith.constant 0 : index
    %336 = arith.index_cast %335 : i32 to index
    %337 = vector.load %arg8[%c0_481, %336] : memref<8x3072xf32, #tpu.memory_space<vmem>>, vector<8x384xf32>
    %c0_482 = arith.constant 0 : index
    %c0_483 = arith.constant 0 : index
    %338 = vector.load %arg9[%c0_482, %c0_483] : memref<8x384xf32, #tpu.memory_space<vmem>>, vector<8x384xf32>
    %cst_484 = arith.constant 0.899999976 : f32
    %339 = vector.broadcast %cst_484 : f32 to vector<8x384xf32>
    %340 = arith.mulf %339, %338 : vector<8x384xf32>
    %341 = arith.addf %340, %337 : vector<8x384xf32>
    %cst_485 = arith.constant 1.000000e+00 : f32
    %342 = vector.broadcast %cst_485 : f32 to vector<8x384xf32>
    %343 = arith.cmpf oge, %341, %342 : vector<8x384xf32>
    %344 = arith.extui %343 : vector<8x384xi1> to vector<8x384xi32>
    %345 = arith.sitofp %344 : vector<8x384xi32> to vector<8x384xf32>
    %cst_486 = arith.constant 1.000000e+00 : f32
    %346 = vector.broadcast %cst_486 : f32 to vector<8x384xf32>
    %347 = arith.mulf %345, %346 : vector<8x384xf32>
    %348 = arith.subf %341, %347 : vector<8x384xf32>
    %c0_487 = arith.constant 0 : index
    %c0_488 = arith.constant 0 : index
    %349 = vector.load %arg9[%c0_487, %c0_488] : memref<8x384xf32, #tpu.memory_space<vmem>>, vector<8x384xf32>
    tpu.vector_store %arg9[%c0_487, %c0_488], %348 {strides = array<i32>} : memref<8x384xf32, #tpu.memory_space<vmem>>, vector<8x384xf32>,
    %c8_i32_489 = arith.constant 8 : i32
    %350 = arith.muli %c4_i32, %c8_i32_489 : i32
    %351 = tpu.assume_multiple %350, 8 : i32
    %352 = arith.truncf %345 : vector<8x384xf32> to vector<8x384xbf16>
    %c0_490 = arith.constant 0 : index
    %c0_491 = arith.constant 0 : index
    %353 = arith.index_cast %351 : i32 to index
    %c0_492 = arith.constant 0 : index
    %354 = vector.load %arg5[%c0_490, %c0_491, %353, %c0_492] : memref<1x1x64x384xbf16, #tpu.memory_space<vmem>>, vector<1x1x8x384xbf16>
    %355 = vector.shape_cast %354 : vector<1x1x8x384xbf16> to vector<8x384xbf16>
    %356 = vector.shape_cast %352 : vector<8x384xbf16> to vector<1x1x8x384xbf16>
    tpu.vector_store %arg5[%c0_490, %c0_491, %353, %c0_492], %356 {strides = array<i32>} : memref<1x1x64x384xbf16, #tpu.memory_space<vmem>>, vector<1x1x8x384xbf16>,
    %c5_i32 = arith.constant 5 : i32
    %c384_i32_493 = arith.constant 384 : i32
    %357 = arith.muli %c5_i32, %c384_i32_493 : i32
    %358 = tpu.assume_multiple %357, 128 : i32
    %c0_494 = arith.constant 0 : index
    %359 = arith.index_cast %358 : i32 to index
    %360 = vector.load %arg8[%c0_494, %359] : memref<8x3072xf32, #tpu.memory_space<vmem>>, vector<8x384xf32>
    %c0_495 = arith.constant 0 : index
    %c0_496 = arith.constant 0 : index
    %361 = vector.load %arg9[%c0_495, %c0_496] : memref<8x384xf32, #tpu.memory_space<vmem>>, vector<8x384xf32>
    %cst_497 = arith.constant 0.899999976 : f32
    %362 = vector.broadcast %cst_497 : f32 to vector<8x384xf32>
    %363 = arith.mulf %362, %361 : vector<8x384xf32>
    %364 = arith.addf %363, %360 : vector<8x384xf32>
    %cst_498 = arith.constant 1.000000e+00 : f32
    %365 = vector.broadcast %cst_498 : f32 to vector<8x384xf32>
    %366 = arith.cmpf oge, %364, %365 : vector<8x384xf32>
    %367 = arith.extui %366 : vector<8x384xi1> to vector<8x384xi32>
    %368 = arith.sitofp %367 : vector<8x384xi32> to vector<8x384xf32>
    %cst_499 = arith.constant 1.000000e+00 : f32
    %369 = vector.broadcast %cst_499 : f32 to vector<8x384xf32>
    %370 = arith.mulf %368, %369 : vector<8x384xf32>
    %371 = arith.subf %364, %370 : vector<8x384xf32>
    %c0_500 = arith.constant 0 : index
    %c0_501 = arith.constant 0 : index
    %372 = vector.load %arg9[%c0_500, %c0_501] : memref<8x384xf32, #tpu.memory_space<vmem>>, vector<8x384xf32>
    tpu.vector_store %arg9[%c0_500, %c0_501], %371 {strides = array<i32>} : memref<8x384xf32, #tpu.memory_space<vmem>>, vector<8x384xf32>,
    %c8_i32_502 = arith.constant 8 : i32
    %373 = arith.muli %c5_i32, %c8_i32_502 : i32
    %374 = tpu.assume_multiple %373, 8 : i32
    %375 = arith.truncf %368 : vector<8x384xf32> to vector<8x384xbf16>
    %c0_503 = arith.constant 0 : index
    %c0_504 = arith.constant 0 : index
    %376 = arith.index_cast %374 : i32 to index
    %c0_505 = arith.constant 0 : index
    %377 = vector.load %arg5[%c0_503, %c0_504, %376, %c0_505] : memref<1x1x64x384xbf16, #tpu.memory_space<vmem>>, vector<1x1x8x384xbf16>
    %378 = vector.shape_cast %377 : vector<1x1x8x384xbf16> to vector<8x384xbf16>
    %379 = vector.shape_cast %375 : vector<8x384xbf16> to vector<1x1x8x384xbf16>
    tpu.vector_store %arg5[%c0_503, %c0_504, %376, %c0_505], %379 {strides = array<i32>} : memref<1x1x64x384xbf16, #tpu.memory_space<vmem>>, vector<1x1x8x384xbf16>,
    %c6_i32 = arith.constant 6 : i32
    %c384_i32_506 = arith.constant 384 : i32
    %380 = arith.muli %c6_i32, %c384_i32_506 : i32
    %381 = tpu.assume_multiple %380, 128 : i32
    %c0_507 = arith.constant 0 : index
    %382 = arith.index_cast %381 : i32 to index
    %383 = vector.load %arg8[%c0_507, %382] : memref<8x3072xf32, #tpu.memory_space<vmem>>, vector<8x384xf32>
    %c0_508 = arith.constant 0 : index
    %c0_509 = arith.constant 0 : index
    %384 = vector.load %arg9[%c0_508, %c0_509] : memref<8x384xf32, #tpu.memory_space<vmem>>, vector<8x384xf32>
    %cst_510 = arith.constant 0.899999976 : f32
    %385 = vector.broadcast %cst_510 : f32 to vector<8x384xf32>
    %386 = arith.mulf %385, %384 : vector<8x384xf32>
    %387 = arith.addf %386, %383 : vector<8x384xf32>
    %cst_511 = arith.constant 1.000000e+00 : f32
    %388 = vector.broadcast %cst_511 : f32 to vector<8x384xf32>
    %389 = arith.cmpf oge, %387, %388 : vector<8x384xf32>
    %390 = arith.extui %389 : vector<8x384xi1> to vector<8x384xi32>
    %391 = arith.sitofp %390 : vector<8x384xi32> to vector<8x384xf32>
    %cst_512 = arith.constant 1.000000e+00 : f32
    %392 = vector.broadcast %cst_512 : f32 to vector<8x384xf32>
    %393 = arith.mulf %391, %392 : vector<8x384xf32>
    %394 = arith.subf %387, %393 : vector<8x384xf32>
    %c0_513 = arith.constant 0 : index
    %c0_514 = arith.constant 0 : index
    %395 = vector.load %arg9[%c0_513, %c0_514] : memref<8x384xf32, #tpu.memory_space<vmem>>, vector<8x384xf32>
    tpu.vector_store %arg9[%c0_513, %c0_514], %394 {strides = array<i32>} : memref<8x384xf32, #tpu.memory_space<vmem>>, vector<8x384xf32>,
    %c8_i32_515 = arith.constant 8 : i32
    %396 = arith.muli %c6_i32, %c8_i32_515 : i32
    %397 = tpu.assume_multiple %396, 8 : i32
    %398 = arith.truncf %391 : vector<8x384xf32> to vector<8x384xbf16>
    %c0_516 = arith.constant 0 : index
    %c0_517 = arith.constant 0 : index
    %399 = arith.index_cast %397 : i32 to index
    %c0_518 = arith.constant 0 : index
    %400 = vector.load %arg5[%c0_516, %c0_517, %399, %c0_518] : memref<1x1x64x384xbf16, #tpu.memory_space<vmem>>, vector<1x1x8x384xbf16>
    %401 = vector.shape_cast %400 : vector<1x1x8x384xbf16> to vector<8x384xbf16>
    %402 = vector.shape_cast %398 : vector<8x384xbf16> to vector<1x1x8x384xbf16>
    tpu.vector_store %arg5[%c0_516, %c0_517, %399, %c0_518], %402 {strides = array<i32>} : memref<1x1x64x384xbf16, #tpu.memory_space<vmem>>, vector<1x1x8x384xbf16>,
    %c7_i32 = arith.constant 7 : i32
    %c384_i32_519 = arith.constant 384 : i32
    %403 = arith.muli %c7_i32, %c384_i32_519 : i32
    %404 = tpu.assume_multiple %403, 128 : i32
    %c0_520 = arith.constant 0 : index
    %405 = arith.index_cast %404 : i32 to index
    %406 = vector.load %arg8[%c0_520, %405] : memref<8x3072xf32, #tpu.memory_space<vmem>>, vector<8x384xf32>
    %c0_521 = arith.constant 0 : index
    %c0_522 = arith.constant 0 : index
    %407 = vector.load %arg9[%c0_521, %c0_522] : memref<8x384xf32, #tpu.memory_space<vmem>>, vector<8x384xf32>
    %cst_523 = arith.constant 0.899999976 : f32
    %408 = vector.broadcast %cst_523 : f32 to vector<8x384xf32>
    %409 = arith.mulf %408, %407 : vector<8x384xf32>
    %410 = arith.addf %409, %406 : vector<8x384xf32>
    %cst_524 = arith.constant 1.000000e+00 : f32
    %411 = vector.broadcast %cst_524 : f32 to vector<8x384xf32>
    %412 = arith.cmpf oge, %410, %411 : vector<8x384xf32>
    %413 = arith.extui %412 : vector<8x384xi1> to vector<8x384xi32>
    %414 = arith.sitofp %413 : vector<8x384xi32> to vector<8x384xf32>
    %cst_525 = arith.constant 1.000000e+00 : f32
    %415 = vector.broadcast %cst_525 : f32 to vector<8x384xf32>
    %416 = arith.mulf %414, %415 : vector<8x384xf32>
    %417 = arith.subf %410, %416 : vector<8x384xf32>
    %c0_526 = arith.constant 0 : index
    %c0_527 = arith.constant 0 : index
    %418 = vector.load %arg9[%c0_526, %c0_527] : memref<8x384xf32, #tpu.memory_space<vmem>>, vector<8x384xf32>
    tpu.vector_store %arg9[%c0_526, %c0_527], %417 {strides = array<i32>} : memref<8x384xf32, #tpu.memory_space<vmem>>, vector<8x384xf32>,
    %c8_i32_528 = arith.constant 8 : i32
    %419 = arith.muli %c7_i32, %c8_i32_528 : i32
    %420 = tpu.assume_multiple %419, 8 : i32
    %421 = arith.truncf %414 : vector<8x384xf32> to vector<8x384xbf16>
    %c0_529 = arith.constant 0 : index
    %c0_530 = arith.constant 0 : index
    %422 = arith.index_cast %420 : i32 to index
    %c0_531 = arith.constant 0 : index
    %423 = vector.load %arg5[%c0_529, %c0_530, %422, %c0_531] : memref<1x1x64x384xbf16, #tpu.memory_space<vmem>>, vector<1x1x8x384xbf16>
    %424 = vector.shape_cast %423 : vector<1x1x8x384xbf16> to vector<8x384xbf16>
    %425 = vector.shape_cast %421 : vector<8x384xbf16> to vector<1x1x8x384xbf16>
    tpu.vector_store %arg5[%c0_529, %c0_530, %422, %c0_531], %425 {strides = array<i32>} : memref<1x1x64x384xbf16, #tpu.memory_space<vmem>>, vector<1x1x8x384xbf16>,
    %c8_i32_532 = arith.constant 8 : i32
    return
  }
  func.func @transform_0(%arg0: i32, %arg1: i32) -> (i32, i32, i32, i32) {
    %c0_i32 = arith.constant 0 : i32
    %c0_i32_0 = arith.constant 0 : i32
    %c0_i32_1 = arith.constant 0 : i32
    return %arg0, %arg1, %c0_i32, %c0_i32_0 : i32, i32, i32, i32
  }
  func.func @transform_1(%arg0: i32, %arg1: i32) -> (i32, i32) {
    %c0_i32 = arith.constant 0 : i32
    %c0_i32_0 = arith.constant 0 : i32
    %c0_i32_1 = arith.constant 0 : i32
    return %c0_i32, %c0_i32_0 : i32, i32
  }
  func.func @transform_2(%arg0: i32, %arg1: i32) -> (i32, i32) {
    %c0_i32 = arith.constant 0 : i32
    %c0_i32_0 = arith.constant 0 : i32
    %c0_i32_1 = arith.constant 0 : i32
    return %c0_i32, %c0_i32_0 : i32, i32
  }
  func.func @transform_3(%arg0: i32, %arg1: i32) -> (i32, i32, i32, i32) {
    %c0_i32 = arith.constant 0 : i32
    %c0_i32_0 = arith.constant 0 : i32
    %c0_i32_1 = arith.constant 0 : i32
    return %arg0, %arg1, %c0_i32, %c0_i32_0 : i32, i32, i32, i32
  }
  func.func @transform_4(%arg0: i32, %arg1: i32) -> (i32, i32, i32) {
    %c0_i32 = arith.constant 0 : i32
    %c0_i32_0 = arith.constant 0 : i32
    %c0_i32_1 = arith.constant 0 : i32
    return %arg0, %c0_i32, %c0_i32_0 : i32, i32, i32
  }
}

</mosaic_0001>

<llo_original>
// kernel: tpu_custom_call.1
$region0: #{tpu_custom_call.1}
  #allocation0 [shape = 'u32[]', space=smem, size = 0x4, offset = 0x4, fixed_abs, tag = 'smem constant byte address 0x4 - core index']
  #allocation1 [shape = 'u32[72,128]{1,0:T(1,128)}', space=vmem, size = 0x9000, scoped, tag = 'internal scratch']
  #allocation2 [shape = 'bf16[36,3072]{1,0:T(8,128)(2,1)}', space=vmem, size = 0x3c000, scoped, tag = 'scratch operand']
  #allocation3 [shape = 'f32[8,3072]{1,0:T(8,128)}', space=vmem, size = 0x18000, scoped, tag = 'scratch operand']
  #allocation4 [shape = 'f32[8,384]{1,0:T(8,128)}', space=vmem, size = 0x3000, scoped, tag = 'scratch operand']
  %s0 = inlined_call_operand.hbm [shape: bf16[2,1,32,512], index: 0, kind: input, shape index: {}]
  %s1 = inlined_call_operand.hbm [shape: bf16[8,36], index: 1, kind: input, shape index: {}]
  %s2 = inlined_call_operand.hbm [shape: f32[1,3072], index: 2, kind: input, shape index: {}]
  %s3 = inlined_call_operand.hbm [shape: bf16[2,1,64,384], index: 3, kind: output, shape index: {0}]
  %s4 = inlined_call_operand.vmem [shape: f32[2,1,1], index: 4, kind: output, shape index: {1}]
  %5 = xla_tuple %s3, %s4
  %s6 = sld [smem:[#allocation0]]
  $region69: #{tpu_custom_call.1} parent=0
    _
  %s8 = ssub.s32 1, %s6
  %s9 = scalar_select 0, %s8, %s6
  $region1: #{tpu_custom_call.1} parent=0
    #allocation5 [shape = 'u8[65536]{0}', space=vmem, size = 0x10000, scoped, tag = 'input window, operand 0']
    #allocation6 [shape = 's32[2]{0}', space=sflag, size = 0x8, scoped, tag = 'scoped memory for tpu_custom_call.1']
    #allocation7 [shape = 's32[2]{0}', space=sflag, size = 0x8, scoped, tag = 'scoped memory for tpu_custom_call.1']
    #allocation8 [shape = 'u8[2048]{0}', space=vmem, size = 0x800, scoped, tag = 'input window, operand 1, single buffered']
    #allocation9 [shape = 's32[1]{0}', space=sflag, size = 0x4, scoped, tag = 'scoped memory for tpu_custom_call.1']
    #allocation10 [shape = 'u8[12288]{0}', space=vmem, size = 0x3000, scoped, tag = 'input window, operand 2, single buffered']
    #allocation11 [shape = 'u8[98304]{0}', space=vmem, size = 0x18000, scoped, tag = 'output window, operand 0']
    %10 = vsyncpa [#allocation6], 0
    %s11 = scalar_lea.sflag [#allocation6], 1
    %12 = vsyncpa %s11, 0
    %13 = vsyncpa [#allocation9], 0
    %14 = vsyncpa [#allocation7], 0
    %s15 = scalar_lea.sflag [#allocation7], 1
    %16 = vsyncpa %s15, 0
    loop: start=0, step=1, limit=4
    $region2: #{tpu_custom_call.1} parent=1 // loop_pre_header
      _
    $region3: #{tpu_custom_call.1} parent=1 // loop_header
      %s18 = sphi 0, %s22
      %p19 = scmp.ge.s32.totalorder %s18, 4
      %s25 = sphi 0, %s37
      %s26 = sphi 0, %s33
      %s27 = sphi 0, %s25
      %s28 = sphi 0, %s26
      %s29 = sphi 0, %s27
      %s30 = sphi 0, %s28
      %s42 = sphi 0, %s44
      %s45 = sphi 0, %s42
      %s46 = sphi 0, %s45
      %s62 = sphi 0, %s46
      %s66 = sphi 0, %s66
      %s68 = sphi 0, %s66
      %s69 = sphi 0, %s68
      %s83 = sphi 0, %s69
      %s87 = sphi 0, %s87
      %s89 = sphi 0, %s87
      %s90 = sphi 0, %s89
      %s104 = sphi 0, %s90
      %s112 = sphi 0, %s114
      %s115 = sphi 0, %s112
      %s116 = sphi 0, %s115
      %s132 = sphi 0, %s116
      %s138 = sphi 0, %s140
      %s141 = sphi 0, %s138
      %s142 = sphi 0, %s141
      %s158 = sphi 0, %s142
    $region4: #{tpu_custom_call.1} parent=1 // loop_header_branch
      %21 = sbr.rel (%p19) target = $region8
    $region5: #{tpu_custom_call.1} parent=1 // loop_body
      %s23 = ssub.s32 %s18, 1
      %s24 = ssub.s32 %s18, 2
      %s31 = sadd.s32 1, %s26
      %p32 = scmp.ge.s32.totalorder %s31, 1
      %s33 = scalar_select %p32, 0, %s31
      %s34 = sadd.s32 1, %s25
      %s35 = scalar_select %p32, %s34, %s25
      %p36 = scmp.ge.s32.totalorder %s35, 2
      %s37 = scalar_select %p36, 0, %s35
      %s38 = ssub.s32 %s25, %s37
      %s39 = ssub.s32 %s26, %s33
      %s40 = sor.u32 %s38, %s39
      %p41 = scmp.eq.s32.totalorder %s40, 0
      %s43 = sadd.s32 %s42, 1
      %s44 = scalar_select %p41, %s42, %s43
      %p47 = pneg %p41
      %p48 = scmp.eq.s32.totalorder %s18, 1
      %p49 = por %p47, %p48
      %p50 = scmp.ne.s32.totalorder %s42, %s45
      %p51 = scmp.eq.s32.totalorder %s18, 0
      %p52 = por %p50, %p51
      %p53 = scmp.ne.s32.totalorder %s42, %s45
      %p54 = scmp.eq.s32.totalorder %s23, 1
      %p55 = por %p53, %p54
      %p56 = scmp.ne.s32.totalorder %s45, %s46
      %p57 = scmp.eq.s32.totalorder %s23, 0
      %p58 = por %p56, %p57
      %p59 = scmp.ne.s32.totalorder %s45, %s46
      %p60 = scmp.eq.s32.totalorder %s24, 1
      %p61 = por %p59, %p60
      %p63 = scmp.ne.s32.totalorder %s46, %s62
      %p64 = scmp.eq.s32.totalorder %s24, 0
      %p65 = por %p63, %p64
      %s67 = sadd.s32 %s66, 1
      %p70 = scmp.eq.s32.totalorder %s18, 1
      %p71 = scmp.ne.s32.totalorder %s66, %s68
      %p72 = scmp.eq.s32.totalorder %s18, 0
      %p73 = por %p71, %p72
      %p74 = scmp.ne.s32.totalorder %s66, %s68
      %p75 = scmp.eq.s32.totalorder %s23, 1
      %p76 = por %p74, %p75
      %p77 = scmp.ne.s32.totalorder %s68, %s69
      %p78 = scmp.eq.s32.totalorder %s23, 0
      %p79 = por %p77, %p78
      %p80 = scmp.ne.s32.totalorder %s68, %s69
      %p81 = scmp.eq.s32.totalorder %s24, 1
      %p82 = por %p80, %p81
      %p84 = scmp.ne.s32.totalorder %s69, %s83
      %p85 = scmp.eq.s32.totalorder %s24, 0
      %p86 = por %p84, %p85
      %s88 = sadd.s32 %s87, 1
      %p91 = scmp.eq.s32.totalorder %s18, 1
      %p92 = scmp.ne.s32.totalorder %s87, %s89
      %p93 = scmp.eq.s32.totalorder %s18, 0
      %p94 = por %p92, %p93
      %p95 = scmp.ne.s32.totalorder %s87, %s89
      %p96 = scmp.eq.s32.totalorder %s23, 1
      %p97 = por %p95, %p96
      %p98 = scmp.ne.s32.totalorder %s89, %s90
      %p99 = scmp.eq.s32.totalorder %s23, 0
      %p100 = por %p98, %p99
      %p101 = scmp.ne.s32.totalorder %s89, %s90
      %p102 = scmp.eq.s32.totalorder %s24, 1
      %p103 = por %p101, %p102
      %p105 = scmp.ne.s32.totalorder %s90, %s104
      %p106 = scmp.eq.s32.totalorder %s24, 0
      %p107 = por %p105, %p106
      %s108 = ssub.s32 %s25, %s37
      %s109 = ssub.s32 %s26, %s33
      %s110 = sor.u32 %s108, %s109
      %p111 = scmp.eq.s32.totalorder %s110, 0
      %s113 = sadd.s32 %s112, 1
      %s114 = scalar_select %p111, %s112, %s113
      %p117 = pneg %p111
      %p118 = scmp.eq.s32.totalorder %s18, 1
      %p119 = por %p117, %p118
      %p120 = scmp.ne.s32.totalorder %s112, %s115
      %p121 = scmp.eq.s32.totalorder %s18, 0
      %p122 = por %p120, %p121
      %p123 = scmp.ne.s32.totalorder %s112, %s115
      %p124 = scmp.eq.s32.totalorder %s23, 1
      %p125 = por %p123, %p124
      %p126 = scmp.ne.s32.totalorder %s115, %s116
      %p127 = scmp.eq.s32.totalorder %s23, 0
      %p128 = por %p126, %p127
      %p129 = scmp.ne.s32.totalorder %s115, %s116
      %p130 = scmp.eq.s32.totalorder %s24, 1
      %p131 = por %p129, %p130
      %p133 = scmp.ne.s32.totalorder %s116, %s132
      %p134 = scmp.eq.s32.totalorder %s24, 0
      %p135 = por %p133, %p134
      %s136 = ssub.s32 %s25, %s37
      %p137 = scmp.eq.s32.totalorder %s136, 0
      %s139 = sadd.s32 %s138, 1
      %s140 = scalar_select %p137, %s138, %s139
      %p143 = pneg %p137
      %p144 = scmp.eq.s32.totalorder %s18, 1
      %p145 = por %p143, %p144
      %p146 = scmp.ne.s32.totalorder %s138, %s141
      %p147 = scmp.eq.s32.totalorder %s18, 0
      %p148 = por %p146, %p147
      %p149 = scmp.ne.s32.totalorder %s138, %s141
      %p150 = scmp.eq.s32.totalorder %s23, 1
      %p151 = por %p149, %p150
      %p152 = scmp.ne.s32.totalorder %s141, %s142
      %p153 = scmp.eq.s32.totalorder %s23, 0
      %p154 = por %p152, %p153
      %p155 = scmp.ne.s32.totalorder %s141, %s142
      %p156 = scmp.eq.s32.totalorder %s24, 1
      %p157 = por %p155, %p156
      %p159 = scmp.ne.s32.totalorder %s142, %s158
      %p160 = scmp.eq.s32.totalorder %s24, 0
      %p161 = por %p159, %p160
      %p162 = scmp.le.s32.totalorder 1, %s18
      %p163 = scmp.lt.s32.totalorder %s18, 3
      %p164 = pnand %p162, %p163
      %p165 = pneg %p164
      // Predicated region
      $region9: #{tpu_custom_call.1} parent=5 // pred_check
        _
      $region10: #{tpu_custom_call.1} parent=5 // pred_check_branch
        %167 = sbr.rel (%p164) target = $region12
      $region11: #{tpu_custom_call.1} parent=5 // pred_region
        %s168 = ssub.s32 %s18, 1
        // Predicated region
        $region13: #{tpu_custom_call.1} parent=11 // pred_check
          %p169 = pneg %p79
        $region14: #{tpu_custom_call.1} parent=11 // pred_check_branch
          %171 = sbr.rel (%p169) target = $region16
        $region15: #{tpu_custom_call.1} parent=11 // pred_region
          %173 = vsyncadd [#allocation9], 0
          %s175 = sshll.u32 %s1, 4
          %s176 = int_to_ptr.hbm [resolvable:$true] %s175
          %s177 = sshll.u32 [#allocation8], 4
          %s178 = int_to_ptr.vmem [resolvable:$true] %s177
          %180 = dma.hbm_to_vmem [thread:$0]  %s176, 64, %s178, [#allocation9]
        $region16: #{tpu_custom_call.1} parent=11 // pred_fallthru
          _
        // Predicated region
        $region17: #{tpu_custom_call.1} parent=11 // pred_check
          %p181 = pneg %p100
        $region18: #{tpu_custom_call.1} parent=11 // pred_check_branch
          %183 = sbr.rel (%p181) target = $region20
        $region19: #{tpu_custom_call.1} parent=11 // pred_region
          %185 = vsyncadd [#allocation9], 0
          %s187 = sshll.u32 %s2, 4
          %s188 = int_to_ptr.hbm [resolvable:$true] %s187
          %s189 = sshll.u32 [#allocation10], 4
          %s190 = int_to_ptr.vmem [resolvable:$true] %s189
          %192 = dma.hbm_to_vmem [thread:$0]  %s188, 384, %s190, [#allocation9]
        $region20: #{tpu_custom_call.1} parent=11 // pred_fallthru
          _
      $region12: #{tpu_custom_call.1} parent=5 // pred_fallthru
        _
      %p193 = scmp.lt.s32.totalorder %s18, 2
      // Predicated region
      $region21: #{tpu_custom_call.1} parent=5 // pred_check
        %p194 = pneg %p193
      $region22: #{tpu_custom_call.1} parent=5 // pred_check_branch
        %196 = sbr.rel (%p194) target = $region24
      $region23: #{tpu_custom_call.1} parent=5 // pred_region
        // Predicated region
        $region25: #{tpu_custom_call.1} parent=23 // pred_check
          %p197 = pneg %p52
        $region26: #{tpu_custom_call.1} parent=23 // pred_check_branch
          %199 = sbr.rel (%p197) target = $region28
        $region27: #{tpu_custom_call.1} parent=23 // pred_region
          %s200 = sand.u32 %s42, 1
          %s201 = scalar_lea.sflag [#allocation6], %s200
          %s202 = sand.u32 %s42, 1
          %s203 = smul.addr %s202, 64
          %s204 = scalar_lea.vmem [#allocation5], %s203
          %206 = vsyncadd %s201, 0
          %s207 = smul.addr %s26, 16
          %s208 = smul.addr %s25, 16
          %s209 = sadd.s32 %s207, %s208
          %s210 = smul.addr %s209, 4
          %s211 = scalar_lea.hbm %s0, %s210
          %s212 = sshll.u32 %s211, 4
          %s213 = int_to_ptr.hbm [resolvable:$true] %s212
          %s214 = sshll.u32 %s204, 4
          %s215 = int_to_ptr.vmem [resolvable:$true] %s214
          %220 = dma.hbm_to_vmem [thread:$0]  %s213, 1024, %s215, %s201, 256, 256, 16
        $region28: #{tpu_custom_call.1} parent=23 // pred_fallthru
          _
      $region24: #{tpu_custom_call.1} parent=5 // pred_fallthru
        _
      %p221 = scmp.le.s32.totalorder 1, %s18
      %p222 = scmp.lt.s32.totalorder %s18, 3
      %p223 = pnand %p221, %p222
      %p224 = pneg %p223
      // Predicated region
      $region29: #{tpu_custom_call.1} parent=5 // pred_check
        _
      $region30: #{tpu_custom_call.1} parent=5 // pred_check_branch
        %226 = sbr.rel (%p223) target = $region32
      $region31: #{tpu_custom_call.1} parent=5 // pred_region
        %s227 = ssub.s32 %s18, 1
        %s228 = sand.u32 %s45, 1
        %s229 = scalar_lea.sflag [#allocation6], %s228
        %s230 = sand.u32 %s45, 1
        %s231 = smul.addr %s230, 64
        %s232 = scalar_lea.vmem [#allocation5], %s231
        // Predicated region
        $region33: #{tpu_custom_call.1} parent=31 // pred_check
          %p233 = pneg %p58
        $region34: #{tpu_custom_call.1} parent=31 // pred_check_branch
          %235 = sbr.rel (%p233) target = $region36
        $region35: #{tpu_custom_call.1} parent=31 // pred_region
          %237 = dma.done %s229, 1024
        $region36: #{tpu_custom_call.1} parent=31 // pred_fallthru
          _
        // Predicated region
        $region37: #{tpu_custom_call.1} parent=31 // pred_check
          %p238 = pneg %p79
        $region38: #{tpu_custom_call.1} parent=31 // pred_check_branch
          %240 = sbr.rel (%p238) target = $region40
        $region39: #{tpu_custom_call.1} parent=31 // pred_region
          %242 = dma.done [#allocation9], 64
        $region40: #{tpu_custom_call.1} parent=31 // pred_fallthru
          _
        // Predicated region
        $region41: #{tpu_custom_call.1} parent=31 // pred_check
          %p243 = pneg %p100
        $region42: #{tpu_custom_call.1} parent=31 // pred_check_branch
          %245 = sbr.rel (%p243) target = $region44
        $region43: #{tpu_custom_call.1} parent=31 // pred_region
          %247 = dma.done [#allocation9], 384
        $region44: #{tpu_custom_call.1} parent=31 // pred_fallthru
          _
        %s248 = sand.u32 %s45, 1
        %s249 = scalar_lea.sflag [#allocation6], %s248
        %s250 = sand.u32 %s45, 1
        %s251 = smul.addr %s250, 64
        %s252 = scalar_lea.vmem [#allocation5], %s251
        %p253 = pneg %p58
        %p254 = pneg %p55
        %p255 = pneg %p79
        %p256 = pneg %p76
        %p257 = pneg %p100
        %p258 = pneg %p97
        %p259 = pneg %p128
        %p260 = pneg %p125
        %s261 = sand.u32 %s115, 1
        %s262 = scalar_lea.sflag [#allocation7], %s261
        %s263 = sand.u32 %s115, 1
        %s264 = smul.addr %s263, 96
        %s265 = scalar_lea.vmem [#allocation11], %s264
        %p266 = pneg %p154
        %p267 = pneg %p151
        %p268 = scmp.lt.s32.totalorder %s27, 1
        %s269 = scalar_select %p268, %s27, 1
        %s270 = scalar_lea.vmem %s4, %s269
        %p271 = scmp.lt.s32.totalorder %s27, 1
        %s272 = scalar_select %p271, %s27, 1
        %s273 = scalar_lea.vmem %s4, %s272
        %p275 = scmp.eq.s32.totalorder %s28, 0
        // Predicated region
        $region45: #{tpu_custom_call.1} parent=31 // pred_check
          %p276 = pneg %p275
        $region46: #{tpu_custom_call.1} parent=31 // pred_check_branch
          %278 = sbr.rel (%p276) target = $region48
        $region47: #{tpu_custom_call.1} parent=31 // pred_region
          %279 = vst [vmem:[#allocation4] sm:$0xff] 0.0
          %280 = vst [vmem:[#allocation4 + $0x8] sm:$0xff] 0.0
          %281 = vst [vmem:[#allocation4 + $0x10] sm:$0xff] 0.0
          %vm282 = vcmask 0
          %283 = vst.msk [vmem:[%s273] sm:$0x1] %vm282, -inf
        $region48: #{tpu_custom_call.1} parent=31 // pred_fallthru
          _
        %v284 = vld [vmem:[%s232] sm:$0x33]
        %v285 = vld [vmem:[%s232 + $0x8] sm:$0x3]
        %286 = vst [vmem:[#allocation2] sm:$0x33] %v284
        %287 = vst [vmem:[#allocation2 + $0x8] sm:$0x3] %v285
        %v288 = vld [vmem:[%s232] sm:$0x33]
        %v289 = vld [vmem:[%s232 + $0x8] sm:$0x33]
        %v292 = vrot.slane %v288, 6
        %v293 = vrot.slane %v289, 6
        %294 = vrot.lane.b32.xlu0 %v292, 127
        %v295 = vpop.permute.xlu0 %294
        %296 = vrot.lane.b32.xlu0 %v293, 127
        %v297 = vpop.permute.xlu0 %296
        %v298 = vrot.slane %v295, 4
        %v299 = vrot.slane %v297, 4
        %vm300 = vcmask 1043456
        %v301 = vsel %vm300, %v298, %v299
        %vm302 = vcmask 1039360
        %v303 = vsel %vm302, %v295, %v301
        %v304 = vsel %vm302, %v297, %v299
        %307 = vst [vmem:[#allocation2] sm:$0xcc] %v303
        %308 = vst [vmem:[#allocation2 + $0x8] sm:$0xc] %v304
        %v309 = vld [vmem:[%s232] sm:$0x33]
        %v310 = vld [vmem:[%s232 + $0x8] sm:$0x33]
        %313 = vrot.lane.b32.xlu0 %v309, 126
        %v314 = vpop.permute.xlu0 %313
        %315 = vrot.lane.b32.xlu0 %v310, 126
        %v316 = vpop.permute.xlu0 %315
        %v317 = vrot.slane %v314, 4
        %v318 = vrot.slane %v316, 4
        %v319 = vsel %vm300, %v317, %v318
        %vm320 = vcmask 1031168
        %v321 = vsel %vm320, %v314, %v319
        %v322 = vsel %vm320, %v316, %v318
        %325 = vst [vmem:[#allocation2 + $0x60] sm:$0x33] %v321
        %326 = vst [vmem:[#allocation2 + $0x68] sm:$0x3] %v322
        %v327 = vld [vmem:[%s232] sm:$0x33]
        %v328 = vld [vmem:[%s232 + $0x8] sm:$0x33]
        %v331 = vrot.slane %v327, 6
        %v332 = vrot.slane %v328, 6
        %333 = vrot.lane.b32.xlu0 %v331, 110
        %v334 = vpop.permute.xlu0 %333
        %335 = vrot.lane.b32.xlu0 %v332, 110
        %v336 = vpop.permute.xlu0 %335
        %v337 = vrot.slane %v334, 4
        %v338 = vrot.slane %v336, 4
        %v339 = vsel %vm300, %v337, %v338
        %vm340 = vcmask 900096
        %v341 = vsel %vm340, %v334, %v339
        %v342 = vsel %vm340, %v336, %v338
        %345 = vst [vmem:[#allocation2 + $0x60] sm:$0xcc] %v341
        %346 = vst [vmem:[#allocation2 + $0x68] sm:$0xc] %v342
        %v347 = vld [vmem:[%s232] sm:$0x33]
        %v348 = vld [vmem:[%s232 + $0x8] sm:$0x33]
        %351 = vrot.lane.b32.xlu0 %v347, 109
        %v352 = vpop.permute.xlu0 %351
        %353 = vrot.lane.b32.xlu0 %v348, 109
        %v354 = vpop.permute.xlu0 %353
        %v355 = vrot.slane %v352, 4
        %v356 = vrot.slane %v354, 4
        %v357 = vsel %vm300, %v355, %v356
        %vm358 = vcmask 891904
        %v359 = vsel %vm358, %v352, %v357
        %v360 = vsel %vm358, %v354, %v356
        %363 = vst [vmem:[#allocation2 + $0xc0] sm:$0x33] %v359
        %364 = vst [vmem:[#allocation2 + $0xc8] sm:$0x3] %v360
        %v365 = vld [vmem:[%s232] sm:$0x33]
        %v366 = vld [vmem:[%s232 + $0x8] sm:$0x33]
        %v369 = vrot.slane %v365, 6
        %v370 = vrot.slane %v366, 6
        %371 = vrot.lane.b32.xlu0 %v369, 108
        %v372 = vpop.permute.xlu0 %371
        %373 = vrot.lane.b32.xlu0 %v370, 108
        %v374 = vpop.permute.xlu0 %373
        %v375 = vrot.slane %v372, 4
        %v376 = vrot.slane %v374, 4
        %v377 = vsel %vm300, %v375, %v376
        %vm378 = vcmask 883712
        %v379 = vsel %vm378, %v372, %v377
        %v380 = vsel %vm378, %v374, %v376
        %383 = vst [vmem:[#allocation2 + $0xc0] sm:$0xcc] %v379
        %384 = vst [vmem:[#allocation2 + $0xc8] sm:$0xc] %v380
        %v385 = vld [vmem:[%s232] sm:$0x33]
        %v386 = vld [vmem:[%s232 + $0x8] sm:$0x33]
        %389 = vrot.lane.b32.xlu0 %v385, 92
        %v390 = vpop.permute.xlu0 %389
        %391 = vrot.lane.b32.xlu0 %v386, 92
        %v392 = vpop.permute.xlu0 %391
        %v393 = vrot.slane %v390, 4
        %v394 = vrot.slane %v392, 4
        %v395 = vsel %vm300, %v393, %v394
        %vm396 = vcmask 752640
        %v397 = vsel %vm396, %v390, %v395
        %v398 = vsel %vm396, %v392, %v394
        %401 = vst [vmem:[#allocation2 + $0x120] sm:$0x33] %v397
        %402 = vst [vmem:[#allocation2 + $0x128] sm:$0x3] %v398
        %v403 = vld [vmem:[%s232] sm:$0x33]
        %v404 = vld [vmem:[%s232 + $0x8] sm:$0x33]
        %v407 = vrot.slane %v403, 6
        %v408 = vrot.slane %v404, 6
        %409 = vrot.lane.b32.xlu0 %v407, 91
        %v410 = vpop.permute.xlu0 %409
        %411 = vrot.lane.b32.xlu0 %v408, 91
        %v412 = vpop.permute.xlu0 %411
        %v413 = vrot.slane %v410, 4
        %v414 = vrot.slane %v412, 4
        %v415 = vsel %vm300, %v413, %v414
        %vm416 = vcmask 744448
        %v417 = vsel %vm416, %v410, %v415
        %v418 = vsel %vm416, %v412, %v414
        %421 = vst [vmem:[#allocation2 + $0x120] sm:$0xcc] %v417
        %422 = vst [vmem:[#allocation2 + $0x128] sm:$0xc] %v418
        %v423 = vld [vmem:[%s232] sm:$0x33]
        %v424 = vld [vmem:[%s232 + $0x8] sm:$0x33]
        %427 = vrot.lane.b32.xlu0 %v423, 90
        %v428 = vpop.permute.xlu0 %427
        %429 = vrot.lane.b32.xlu0 %v424, 90
        %v430 = vpop.permute.xlu0 %429
        %v431 = vrot.slane %v428, 4
        %v432 = vrot.slane %v430, 4
        %v433 = vsel %vm300, %v431, %v432
        %vm434 = vcmask 736256
        %v435 = vsel %vm434, %v428, %v433
        %v436 = vsel %vm434, %v430, %v432
        %439 = vst [vmem:[#allocation2 + $0x180] sm:$0x33] %v435
        %440 = vst [vmem:[#allocation2 + $0x188] sm:$0x3] %v436
        %v441 = vld [vmem:[%s232] sm:$0xcc]
        %v442 = vld [vmem:[%s232 + $0x8] sm:$0xc]
        %v445 = vrot.slane %v441, 6
        %v446 = vrot.slane %v445, 4
        %v447 = vrot.slane %v442, 6
        %v448 = vrot.slane %v447, 4
        %451 = vst [vmem:[#allocation2 + $0xc] sm:$0x33] %v446
        %452 = vst [vmem:[#allocation2 + $0x14] sm:$0x3] %v448
        %v453 = vld [vmem:[%s232] sm:$0xcc]
        %v454 = vld [vmem:[%s232 + $0x8] sm:$0xcc]
        %457 = vrot.lane.b32.xlu0 %v453, 127
        %v458 = vpop.permute.xlu0 %457
        %459 = vrot.lane.b32.xlu0 %v454, 127
        %v460 = vpop.permute.xlu0 %459
        %v461 = vrot.slane %v458, 4
        %v462 = vrot.slane %v460, 4
        %v463 = vsel %vm300, %v461, %v462
        %v464 = vsel %vm302, %v458, %v463
        %v465 = vsel %vm302, %v460, %v462
        %468 = vst [vmem:[#allocation2 + $0xc] sm:$0xcc] %v464
        %469 = vst [vmem:[#allocation2 + $0x14] sm:$0xc] %v465
        %v470 = vld [vmem:[%s232] sm:$0xcc]
        %v471 = vld [vmem:[%s232 + $0x8] sm:$0xcc]
        %v474 = vrot.slane %v470, 6
        %v475 = vrot.slane %v474, 4
        %v476 = vrot.slane %v471, 6
        %v477 = vrot.slane %v476, 4
        %478 = vrot.lane.b32.xlu0 %v475, 126
        %v479 = vpop.permute.xlu0 %478
        %480 = vrot.lane.b32.xlu0 %v477, 126
        %v481 = vpop.permute.xlu0 %480
        %v482 = vrot.slane %v479, 4
        %v483 = vrot.slane %v481, 4
        %v484 = vsel %vm300, %v482, %v483
        %v485 = vsel %vm320, %v479, %v484
        %v486 = vsel %vm320, %v481, %v483
        %489 = vst [vmem:[#allocation2 + $0x6c] sm:$0x33] %v485
        %490 = vst [vmem:[#allocation2 + $0x74] sm:$0x3] %v486
        %v491 = vld [vmem:[%s232] sm:$0xcc]
        %v492 = vld [vmem:[%s232 + $0x8] sm:$0xcc]
        %495 = vrot.lane.b32.xlu0 %v491, 110
        %v496 = vpop.permute.xlu0 %495
        %497 = vrot.lane.b32.xlu0 %v492, 110
        %v498 = vpop.permute.xlu0 %497
        %v499 = vrot.slane %v496, 4
        %v500 = vrot.slane %v498, 4
        %v501 = vsel %vm300, %v499, %v500
        %v502 = vsel %vm340, %v496, %v501
        %v503 = vsel %vm340, %v498, %v500
        %506 = vst [vmem:[#allocation2 + $0x6c] sm:$0xcc] %v502
        %507 = vst [vmem:[#allocation2 + $0x74] sm:$0xc] %v503
        %v508 = vld [vmem:[%s232] sm:$0xcc]
        %v509 = vld [vmem:[%s232 + $0x8] sm:$0xcc]
        %v512 = vrot.slane %v508, 6
        %v513 = vrot.slane %v512, 4
        %v514 = vrot.slane %v509, 6
        %v515 = vrot.slane %v514, 4
        %516 = vrot.lane.b32.xlu0 %v513, 109
        %v517 = vpop.permute.xlu0 %516
        %518 = vrot.lane.b32.xlu0 %v515, 109
        %v519 = vpop.permute.xlu0 %518
        %v520 = vrot.slane %v517, 4
        %v521 = vrot.slane %v519, 4
        %v522 = vsel %vm300, %v520, %v521
        %v523 = vsel %vm358, %v517, %v522
        %v524 = vsel %vm358, %v519, %v521
        %527 = vst [vmem:[#allocation2 + $0xcc] sm:$0x33] %v523
        %528 = vst [vmem:[#allocation2 + $0xd4] sm:$0x3] %v524
        %v529 = vld [vmem:[%s232] sm:$0xcc]
        %v530 = vld [vmem:[%s232 + $0x8] sm:$0xcc]
        %533 = vrot.lane.b32.xlu0 %v529, 108
        %v534 = vpop.permute.xlu0 %533
        %535 = vrot.lane.b32.xlu0 %v530, 108
        %v536 = vpop.permute.xlu0 %535
        %v537 = vrot.slane %v534, 4
        %v538 = vrot.slane %v536, 4
        %v539 = vsel %vm300, %v537, %v538
        %v540 = vsel %vm378, %v534, %v539
        %v541 = vsel %vm378, %v536, %v538
        %544 = vst [vmem:[#allocation2 + $0xcc] sm:$0xcc] %v540
        %545 = vst [vmem:[#allocation2 + $0xd4] sm:$0xc] %v541
        %v546 = vld [vmem:[%s232] sm:$0xcc]
        %v547 = vld [vmem:[%s232 + $0x8] sm:$0xcc]
        %v550 = vrot.slane %v546, 6
        %v551 = vrot.slane %v550, 4
        %v552 = vrot.slane %v547, 6
        %v553 = vrot.slane %v552, 4
        %554 = vrot.lane.b32.xlu0 %v551, 92
        %v555 = vpop.permute.xlu0 %554
        %556 = vrot.lane.b32.xlu0 %v553, 92
        %v557 = vpop.permute.xlu0 %556
        %v558 = vrot.slane %v555, 4
        %v559 = vrot.slane %v557, 4
        %v560 = vsel %vm300, %v558, %v559
        %v561 = vsel %vm396, %v555, %v560
        %v562 = vsel %vm396, %v557, %v559
        %565 = vst [vmem:[#allocation2 + $0x12c] sm:$0x33] %v561
        %566 = vst [vmem:[#allocation2 + $0x134] sm:$0x3] %v562
        %v567 = vld [vmem:[%s232] sm:$0xcc]
        %v568 = vld [vmem:[%s232 + $0x8] sm:$0xcc]
        %571 = vrot.lane.b32.xlu0 %v567, 91
        %v572 = vpop.permute.xlu0 %571
        %573 = vrot.lane.b32.xlu0 %v568, 91
        %v574 = vpop.permute.xlu0 %573
        %v575 = vrot.slane %v572, 4
        %v576 = vrot.slane %v574, 4
        %v577 = vsel %vm300, %v575, %v576
        %v578 = vsel %vm416, %v572, %v577
        %v579 = vsel %vm416, %v574, %v576
        %582 = vst [vmem:[#allocation2 + $0x12c] sm:$0xcc] %v578
        %583 = vst [vmem:[#allocation2 + $0x134] sm:$0xc] %v579
        %v584 = vld [vmem:[%s232] sm:$0xcc]
        %v585 = vld [vmem:[%s232 + $0x8] sm:$0xcc]
        %v588 = vrot.slane %v584, 6
        %v589 = vrot.slane %v588, 4
        %v590 = vrot.slane %v585, 6
        %v591 = vrot.slane %v590, 4
        %592 = vrot.lane.b32.xlu0 %v589, 90
        %v593 = vpop.permute.xlu0 %592
        %594 = vrot.lane.b32.xlu0 %v591, 90
        %v595 = vpop.permute.xlu0 %594
        %v596 = vrot.slane %v593, 4
        %v597 = vrot.slane %v595, 4
        %v598 = vsel %vm300, %v596, %v597
        %v599 = vsel %vm434, %v593, %v598
        %v600 = vsel %vm434, %v595, %v597
        %603 = vst [vmem:[#allocation2 + $0x18c] sm:$0x33] %v599
        %604 = vst [vmem:[#allocation2 + $0x194] sm:$0x3] %v600
        %v605 = vld [vmem:[%s232 + $0x10] sm:$0x33]
        %v606 = vld [vmem:[%s232 + $0x18] sm:$0x3]
        %607 = vst [vmem:[#allocation2 + $0x18] sm:$0x33] %v605
        %608 = vst [vmem:[#allocation2 + $0x20] sm:$0x3] %v606
        %v609 = vld [vmem:[%s232 + $0x10] sm:$0x33]
        %v610 = vld [vmem:[%s232 + $0x18] sm:$0x33]
        %v613 = vrot.slane %v609, 6
        %v614 = vrot.slane %v610, 6
        %615 = vrot.lane.b32.xlu0 %v613, 127
        %v616 = vpop.permute.xlu0 %615
        %617 = vrot.lane.b32.xlu0 %v614, 127
        %v618 = vpop.permute.xlu0 %617
        %v619 = vrot.slane %v616, 4
        %v620 = vrot.slane %v618, 4
        %v621 = vsel %vm300, %v619, %v620
        %v622 = vsel %vm302, %v616, %v621
        %v623 = vsel %vm302, %v618, %v620
        %626 = vst [vmem:[#allocation2 + $0x18] sm:$0xcc] %v622
        %627 = vst [vmem:[#allocation2 + $0x20] sm:$0xc] %v623
        %v628 = vld [vmem:[%s232 + $0x10] sm:$0x33]
        %v629 = vld [vmem:[%s232 + $0x18] sm:$0x33]
        %632 = vrot.lane.b32.xlu0 %v628, 126
        %v633 = vpop.permute.xlu0 %632
        %634 = vrot.lane.b32.xlu0 %v629, 126
        %v635 = vpop.permute.xlu0 %634
        %v636 = vrot.slane %v633, 4
        %v637 = vrot.slane %v635, 4
        %v638 = vsel %vm300, %v636, %v637
        %v639 = vsel %vm320, %v633, %v638
        %v640 = vsel %vm320, %v635, %v637
        %643 = vst [vmem:[#allocation2 + $0x78] sm:$0x33] %v639
        %644 = vst [vmem:[#allocation2 + $0x80] sm:$0x3] %v640
        %v645 = vld [vmem:[%s232 + $0x10] sm:$0x33]
        %v646 = vld [vmem:[%s232 + $0x18] sm:$0x33]
        %v649 = vrot.slane %v645, 6
        %v650 = vrot.slane %v646, 6
        %651 = vrot.lane.b32.xlu0 %v649, 110
        %v652 = vpop.permute.xlu0 %651
        %653 = vrot.lane.b32.xlu0 %v650, 110
        %v654 = vpop.permute.xlu0 %653
        %v655 = vrot.slane %v652, 4
        %v656 = vrot.slane %v654, 4
        %v657 = vsel %vm300, %v655, %v656
        %v658 = vsel %vm340, %v652, %v657
        %v659 = vsel %vm340, %v654, %v656
        %662 = vst [vmem:[#allocation2 + $0x78] sm:$0xcc] %v658
        %663 = vst [vmem:[#allocation2 + $0x80] sm:$0xc] %v659
        %v664 = vld [vmem:[%s232 + $0x10] sm:$0x33]
        %v665 = vld [vmem:[%s232 + $0x18] sm:$0x33]
        %668 = vrot.lane.b32.xlu0 %v664, 109
        %v669 = vpop.permute.xlu0 %668
        %670 = vrot.lane.b32.xlu0 %v665, 109
        %v671 = vpop.permute.xlu0 %670
        %v672 = vrot.slane %v669, 4
        %v673 = vrot.slane %v671, 4
        %v674 = vsel %vm300, %v672, %v673
        %v675 = vsel %vm358, %v669, %v674
        %v676 = vsel %vm358, %v671, %v673
        %679 = vst [vmem:[#allocation2 + $0xd8] sm:$0x33] %v675
        %680 = vst [vmem:[#allocation2 + $0xe0] sm:$0x3] %v676
        %v681 = vld [vmem:[%s232 + $0x10] sm:$0x33]
        %v682 = vld [vmem:[%s232 + $0x18] sm:$0x33]
        %v685 = vrot.slane %v681, 6
        %v686 = vrot.slane %v682, 6
        %687 = vrot.lane.b32.xlu0 %v685, 108
        %v688 = vpop.permute.xlu0 %687
        %689 = vrot.lane.b32.xlu0 %v686, 108
        %v690 = vpop.permute.xlu0 %689
        %v691 = vrot.slane %v688, 4
        %v692 = vrot.slane %v690, 4
        %v693 = vsel %vm300, %v691, %v692
        %v694 = vsel %vm378, %v688, %v693
        %v695 = vsel %vm378, %v690, %v692
        %698 = vst [vmem:[#allocation2 + $0xd8] sm:$0xcc] %v694
        %699 = vst [vmem:[#allocation2 + $0xe0] sm:$0xc] %v695
        %v700 = vld [vmem:[%s232 + $0x10] sm:$0x33]
        %v701 = vld [vmem:[%s232 + $0x18] sm:$0x33]
        %704 = vrot.lane.b32.xlu0 %v700, 92
        %v705 = vpop.permute.xlu0 %704
        %706 = vrot.lane.b32.xlu0 %v701, 92
        %v707 = vpop.permute.xlu0 %706
        %v708 = vrot.slane %v705, 4
        %v709 = vrot.slane %v707, 4
        %v710 = vsel %vm300, %v708, %v709
        %v711 = vsel %vm396, %v705, %v710
        %v712 = vsel %vm396, %v707, %v709
        %715 = vst [vmem:[#allocation2 + $0x138] sm:$0x33] %v711
        %716 = vst [vmem:[#allocation2 + $0x140] sm:$0x3] %v712
        %v717 = vld [vmem:[%s232 + $0x10] sm:$0x33]
        %v718 = vld [vmem:[%s232 + $0x18] sm:$0x33]
        %v721 = vrot.slane %v717, 6
        %v722 = vrot.slane %v718, 6
        %723 = vrot.lane.b32.xlu0 %v721, 91
        %v724 = vpop.permute.xlu0 %723
        %725 = vrot.lane.b32.xlu0 %v722, 91
        %v726 = vpop.permute.xlu0 %725
        %v727 = vrot.slane %v724, 4
        %v728 = vrot.slane %v726, 4
        %v729 = vsel %vm300, %v727, %v728
        %v730 = vsel %vm416, %v724, %v729
        %v731 = vsel %vm416, %v726, %v728
        %734 = vst [vmem:[#allocation2 + $0x138] sm:$0xcc] %v730
        %735 = vst [vmem:[#allocation2 + $0x140] sm:$0xc] %v731
        %v736 = vld [vmem:[%s232 + $0x10] sm:$0x33]
        %v737 = vld [vmem:[%s232 + $0x18] sm:$0x33]
        %740 = vrot.lane.b32.xlu0 %v736, 90
        %v741 = vpop.permute.xlu0 %740
        %742 = vrot.lane.b32.xlu0 %v737, 90
        %v743 = vpop.permute.xlu0 %742
        %v744 = vrot.slane %v741, 4
        %v745 = vrot.slane %v743, 4
        %v746 = vsel %vm300, %v744, %v745
        %v747 = vsel %vm434, %v741, %v746
        %v748 = vsel %vm434, %v743, %v745
        %751 = vst [vmem:[#allocation2 + $0x198] sm:$0x33] %v747
        %752 = vst [vmem:[#allocation2 + $0x1a0] sm:$0x3] %v748
        %v753 = vld [vmem:[%s232 + $0x10] sm:$0xcc]
        %v754 = vld [vmem:[%s232 + $0x18] sm:$0xc]
        %v757 = vrot.slane %v753, 6
        %v758 = vrot.slane %v757, 4
        %v759 = vrot.slane %v754, 6
        %v760 = vrot.slane %v759, 4
        %763 = vst [vmem:[#allocation2 + $0x24] sm:$0x33] %v758
        %764 = vst [vmem:[#allocation2 + $0x2c] sm:$0x3] %v760
        %v765 = vld [vmem:[%s232 + $0x10] sm:$0xcc]
        %v766 = vld [vmem:[%s232 + $0x18] sm:$0xcc]
        %769 = vrot.lane.b32.xlu0 %v765, 127
        %v770 = vpop.permute.xlu0 %769
        %771 = vrot.lane.b32.xlu0 %v766, 127
        %v772 = vpop.permute.xlu0 %771
        %v773 = vrot.slane %v770, 4
        %v774 = vrot.slane %v772, 4
        %v775 = vsel %vm300, %v773, %v774
        %v776 = vsel %vm302, %v770, %v775
        %v777 = vsel %vm302, %v772, %v774
        %780 = vst [vmem:[#allocation2 + $0x24] sm:$0xcc] %v776
        %781 = vst [vmem:[#allocation2 + $0x2c] sm:$0xc] %v777
        %v782 = vld [vmem:[%s232 + $0x10] sm:$0xcc]
        %v783 = vld [vmem:[%s232 + $0x18] sm:$0xcc]
        %v786 = vrot.slane %v782, 6
        %v787 = vrot.slane %v786, 4
        %v788 = vrot.slane %v783, 6
        %v789 = vrot.slane %v788, 4
        %790 = vrot.lane.b32.xlu0 %v787, 126
        %v791 = vpop.permute.xlu0 %790
        %792 = vrot.lane.b32.xlu0 %v789, 126
        %v793 = vpop.permute.xlu0 %792
        %v794 = vrot.slane %v791, 4
        %v795 = vrot.slane %v793, 4
        %v796 = vsel %vm300, %v794, %v795
        %v797 = vsel %vm320, %v791, %v796
        %v798 = vsel %vm320, %v793, %v795
        %801 = vst [vmem:[#allocation2 + $0x84] sm:$0x33] %v797
        %802 = vst [vmem:[#allocation2 + $0x8c] sm:$0x3] %v798
        %v803 = vld [vmem:[%s232 + $0x10] sm:$0xcc]
        %v804 = vld [vmem:[%s232 + $0x18] sm:$0xcc]
        %807 = vrot.lane.b32.xlu0 %v803, 110
        %v808 = vpop.permute.xlu0 %807
        %809 = vrot.lane.b32.xlu0 %v804, 110
        %v810 = vpop.permute.xlu0 %809
        %v811 = vrot.slane %v808, 4
        %v812 = vrot.slane %v810, 4
        %v813 = vsel %vm300, %v811, %v812
        %v814 = vsel %vm340, %v808, %v813
        %v815 = vsel %vm340, %v810, %v812
        %818 = vst [vmem:[#allocation2 + $0x84] sm:$0xcc] %v814
        %819 = vst [vmem:[#allocation2 + $0x8c] sm:$0xc] %v815
        %v820 = vld [vmem:[%s232 + $0x10] sm:$0xcc]
        %v821 = vld [vmem:[%s232 + $0x18] sm:$0xcc]
        %v824 = vrot.slane %v820, 6
        %v825 = vrot.slane %v824, 4
        %v826 = vrot.slane %v821, 6
        %v827 = vrot.slane %v826, 4
        %828 = vrot.lane.b32.xlu0 %v825, 109
        %v829 = vpop.permute.xlu0 %828
        %830 = vrot.lane.b32.xlu0 %v827, 109
        %v831 = vpop.permute.xlu0 %830
        %v832 = vrot.slane %v829, 4
        %v833 = vrot.slane %v831, 4
        %v834 = vsel %vm300, %v832, %v833
        %v835 = vsel %vm358, %v829, %v834
        %v836 = vsel %vm358, %v831, %v833
        %839 = vst [vmem:[#allocation2 + $0xe4] sm:$0x33] %v835
        %840 = vst [vmem:[#allocation2 + $0xec] sm:$0x3] %v836
        %v841 = vld [vmem:[%s232 + $0x10] sm:$0xcc]
        %v842 = vld [vmem:[%s232 + $0x18] sm:$0xcc]
        %845 = vrot.lane.b32.xlu0 %v841, 108
        %v846 = vpop.permute.xlu0 %845
        %847 = vrot.lane.b32.xlu0 %v842, 108
        %v848 = vpop.permute.xlu0 %847
        %v849 = vrot.slane %v846, 4
        %v850 = vrot.slane %v848, 4
        %v851 = vsel %vm300, %v849, %v850
        %v852 = vsel %vm378, %v846, %v851
        %v853 = vsel %vm378, %v848, %v850
        %856 = vst [vmem:[#allocation2 + $0xe4] sm:$0xcc] %v852
        %857 = vst [vmem:[#allocation2 + $0xec] sm:$0xc] %v853
        %v858 = vld [vmem:[%s232 + $0x10] sm:$0xcc]
        %v859 = vld [vmem:[%s232 + $0x18] sm:$0xcc]
        %v862 = vrot.slane %v858, 6
        %v863 = vrot.slane %v862, 4
        %v864 = vrot.slane %v859, 6
        %v865 = vrot.slane %v864, 4
        %866 = vrot.lane.b32.xlu0 %v863, 92
        %v867 = vpop.permute.xlu0 %866
        %868 = vrot.lane.b32.xlu0 %v865, 92
        %v869 = vpop.permute.xlu0 %868
        %v870 = vrot.slane %v867, 4
        %v871 = vrot.slane %v869, 4
        %v872 = vsel %vm300, %v870, %v871
        %v873 = vsel %vm396, %v867, %v872
        %v874 = vsel %vm396, %v869, %v871
        %877 = vst [vmem:[#allocation2 + $0x144] sm:$0x33] %v873
        %878 = vst [vmem:[#allocation2 + $0x14c] sm:$0x3] %v874
        %v879 = vld [vmem:[%s232 + $0x10] sm:$0xcc]
        %v880 = vld [vmem:[%s232 + $0x18] sm:$0xcc]
        %883 = vrot.lane.b32.xlu0 %v879, 91
        %v884 = vpop.permute.xlu0 %883
        %885 = vrot.lane.b32.xlu0 %v880, 91
        %v886 = vpop.permute.xlu0 %885
        %v887 = vrot.slane %v884, 4
        %v888 = vrot.slane %v886, 4
        %v889 = vsel %vm300, %v887, %v888
        %v890 = vsel %vm416, %v884, %v889
        %v891 = vsel %vm416, %v886, %v888
        %894 = vst [vmem:[#allocation2 + $0x144] sm:$0xcc] %v890
        %895 = vst [vmem:[#allocation2 + $0x14c] sm:$0xc] %v891
        %v896 = vld [vmem:[%s232 + $0x10] sm:$0xcc]
        %v897 = vld [vmem:[%s232 + $0x18] sm:$0xcc]
        %v900 = vrot.slane %v896, 6
        %v901 = vrot.slane %v900, 4
        %v902 = vrot.slane %v897, 6
        %v903 = vrot.slane %v902, 4
        %904 = vrot.lane.b32.xlu0 %v901, 90
        %v905 = vpop.permute.xlu0 %904
        %906 = vrot.lane.b32.xlu0 %v903, 90
        %v907 = vpop.permute.xlu0 %906
        %v908 = vrot.slane %v905, 4
        %v909 = vrot.slane %v907, 4
        %v910 = vsel %vm300, %v908, %v909
        %v911 = vsel %vm434, %v905, %v910
        %v912 = vsel %vm434, %v907, %v909
        %915 = vst [vmem:[#allocation2 + $0x1a4] sm:$0x33] %v911
        %916 = vst [vmem:[#allocation2 + $0x1ac] sm:$0x3] %v912
        %v917 = vld [vmem:[%s232 + $0x20] sm:$0x33]
        %v918 = vld [vmem:[%s232 + $0x28] sm:$0x3]
        %919 = vst [vmem:[#allocation2 + $0x30] sm:$0x33] %v917
        %920 = vst [vmem:[#allocation2 + $0x38] sm:$0x3] %v918
        %v921 = vld [vmem:[%s232 + $0x20] sm:$0x33]
        %v922 = vld [vmem:[%s232 + $0x28] sm:$0x33]
        %v925 = vrot.slane %v921, 6
        %v926 = vrot.slane %v922, 6
        %927 = vrot.lane.b32.xlu0 %v925, 127
        %v928 = vpop.permute.xlu0 %927
        %929 = vrot.lane.b32.xlu0 %v926, 127
        %v930 = vpop.permute.xlu0 %929
        %v931 = vrot.slane %v928, 4
        %v932 = vrot.slane %v930, 4
        %v933 = vsel %vm300, %v931, %v932
        %v934 = vsel %vm302, %v928, %v933
        %v935 = vsel %vm302, %v930, %v932
        %938 = vst [vmem:[#allocation2 + $0x30] sm:$0xcc] %v934
        %939 = vst [vmem:[#allocation2 + $0x38] sm:$0xc] %v935
        %v940 = vld [vmem:[%s232 + $0x20] sm:$0x33]
        %v941 = vld [vmem:[%s232 + $0x28] sm:$0x33]
        %944 = vrot.lane.b32.xlu0 %v940, 126
        %v945 = vpop.permute.xlu0 %944
        %946 = vrot.lane.b32.xlu0 %v941, 126
        %v947 = vpop.permute.xlu0 %946
        %v948 = vrot.slane %v945, 4
        %v949 = vrot.slane %v947, 4
        %v950 = vsel %vm300, %v948, %v949
        %v951 = vsel %vm320, %v945, %v950
        %v952 = vsel %vm320, %v947, %v949
        %955 = vst [vmem:[#allocation2 + $0x90] sm:$0x33] %v951
        %956 = vst [vmem:[#allocation2 + $0x98] sm:$0x3] %v952
        %v957 = vld [vmem:[%s232 + $0x20] sm:$0x33]
        %v958 = vld [vmem:[%s232 + $0x28] sm:$0x33]
        %v961 = vrot.slane %v957, 6
        %v962 = vrot.slane %v958, 6
        %963 = vrot.lane.b32.xlu0 %v961, 110
        %v964 = vpop.permute.xlu0 %963
        %965 = vrot.lane.b32.xlu0 %v962, 110
        %v966 = vpop.permute.xlu0 %965
        %v967 = vrot.slane %v964, 4
        %v968 = vrot.slane %v966, 4
        %v969 = vsel %vm300, %v967, %v968
        %v970 = vsel %vm340, %v964, %v969
        %v971 = vsel %vm340, %v966, %v968
        %974 = vst [vmem:[#allocation2 + $0x90] sm:$0xcc] %v970
        %975 = vst [vmem:[#allocation2 + $0x98] sm:$0xc] %v971
        %v976 = vld [vmem:[%s232 + $0x20] sm:$0x33]
        %v977 = vld [vmem:[%s232 + $0x28] sm:$0x33]
        %980 = vrot.lane.b32.xlu0 %v976, 109
        %v981 = vpop.permute.xlu0 %980
        %982 = vrot.lane.b32.xlu0 %v977, 109
        %v983 = vpop.permute.xlu0 %982
        %v984 = vrot.slane %v981, 4
        %v985 = vrot.slane %v983, 4
        %v986 = vsel %vm300, %v984, %v985
        %v987 = vsel %vm358, %v981, %v986
        %v988 = vsel %vm358, %v983, %v985
        %991 = vst [vmem:[#allocation2 + $0xf0] sm:$0x33] %v987
        %992 = vst [vmem:[#allocation2 + $0xf8] sm:$0x3] %v988
        %v993 = vld [vmem:[%s232 + $0x20] sm:$0x33]
        %v994 = vld [vmem:[%s232 + $0x28] sm:$0x33]
        %v997 = vrot.slane %v993, 6
        %v998 = vrot.slane %v994, 6
        %999 = vrot.lane.b32.xlu0 %v997, 108
        %v1000 = vpop.permute.xlu0 %999
        %1001 = vrot.lane.b32.xlu0 %v998, 108
        %v1002 = vpop.permute.xlu0 %1001
        %v1003 = vrot.slane %v1000, 4
        %v1004 = vrot.slane %v1002, 4
        %v1005 = vsel %vm300, %v1003, %v1004
        %v1006 = vsel %vm378, %v1000, %v1005
        %v1007 = vsel %vm378, %v1002, %v1004
        %1010 = vst [vmem:[#allocation2 + $0xf0] sm:$0xcc] %v1006
        %1011 = vst [vmem:[#allocation2 + $0xf8] sm:$0xc] %v1007
        %v1012 = vld [vmem:[%s232 + $0x20] sm:$0x33]
        %v1013 = vld [vmem:[%s232 + $0x28] sm:$0x33]
        %1016 = vrot.lane.b32.xlu0 %v1012, 92
        %v1017 = vpop.permute.xlu0 %1016
        %1018 = vrot.lane.b32.xlu0 %v1013, 92
        %v1019 = vpop.permute.xlu0 %1018
        %v1020 = vrot.slane %v1017, 4
        %v1021 = vrot.slane %v1019, 4
        %v1022 = vsel %vm300, %v1020, %v1021
        %v1023 = vsel %vm396, %v1017, %v1022
        %v1024 = vsel %vm396, %v1019, %v1021
        %1027 = vst [vmem:[#allocation2 + $0x150] sm:$0x33] %v1023
        %1028 = vst [vmem:[#allocation2 + $0x158] sm:$0x3] %v1024
        %v1029 = vld [vmem:[%s232 + $0x20] sm:$0x33]
        %v1030 = vld [vmem:[%s232 + $0x28] sm:$0x33]
        %v1033 = vrot.slane %v1029, 6
        %v1034 = vrot.slane %v1030, 6
        %1035 = vrot.lane.b32.xlu0 %v1033, 91
        %v1036 = vpop.permute.xlu0 %1035
        %1037 = vrot.lane.b32.xlu0 %v1034, 91
        %v1038 = vpop.permute.xlu0 %1037
        %v1039 = vrot.slane %v1036, 4
        %v1040 = vrot.slane %v1038, 4
        %v1041 = vsel %vm300, %v1039, %v1040
        %v1042 = vsel %vm416, %v1036, %v1041
        %v1043 = vsel %vm416, %v1038, %v1040
        %1046 = vst [vmem:[#allocation2 + $0x150] sm:$0xcc] %v1042
        %1047 = vst [vmem:[#allocation2 + $0x158] sm:$0xc] %v1043
        %v1048 = vld [vmem:[%s232 + $0x20] sm:$0x33]
        %v1049 = vld [vmem:[%s232 + $0x28] sm:$0x33]
        %1052 = vrot.lane.b32.xlu0 %v1048, 90
        %v1053 = vpop.permute.xlu0 %1052
        %1054 = vrot.lane.b32.xlu0 %v1049, 90
        %v1055 = vpop.permute.xlu0 %1054
        %v1056 = vrot.slane %v1053, 4
        %v1057 = vrot.slane %v1055, 4
        %v1058 = vsel %vm300, %v1056, %v1057
        %v1059 = vsel %vm434, %v1053, %v1058
        %v1060 = vsel %vm434, %v1055, %v1057
        %1063 = vst [vmem:[#allocation2 + $0x1b0] sm:$0x33] %v1059
        %1064 = vst [vmem:[#allocation2 + $0x1b8] sm:$0x3] %v1060
        %v1065 = vld [vmem:[%s232 + $0x20] sm:$0xcc]
        %v1066 = vld [vmem:[%s232 + $0x28] sm:$0xc]
        %v1069 = vrot.slane %v1065, 6
        %v1070 = vrot.slane %v1069, 4
        %v1071 = vrot.slane %v1066, 6
        %v1072 = vrot.slane %v1071, 4
        %1075 = vst [vmem:[#allocation2 + $0x3c] sm:$0x33] %v1070
        %1076 = vst [vmem:[#allocation2 + $0x44] sm:$0x3] %v1072
        %v1077 = vld [vmem:[%s232 + $0x20] sm:$0xcc]
        %v1078 = vld [vmem:[%s232 + $0x28] sm:$0xcc]
        %1081 = vrot.lane.b32.xlu0 %v1077, 127
        %v1082 = vpop.permute.xlu0 %1081
        %1083 = vrot.lane.b32.xlu0 %v1078, 127
        %v1084 = vpop.permute.xlu0 %1083
        %v1085 = vrot.slane %v1082, 4
        %v1086 = vrot.slane %v1084, 4
        %v1087 = vsel %vm300, %v1085, %v1086
        %v1088 = vsel %vm302, %v1082, %v1087
        %v1089 = vsel %vm302, %v1084, %v1086
        %1092 = vst [vmem:[#allocation2 + $0x3c] sm:$0xcc] %v1088
        %1093 = vst [vmem:[#allocation2 + $0x44] sm:$0xc] %v1089
        %v1094 = vld [vmem:[%s232 + $0x20] sm:$0xcc]
        %v1095 = vld [vmem:[%s232 + $0x28] sm:$0xcc]
        %v1098 = vrot.slane %v1094, 6
        %v1099 = vrot.slane %v1098, 4
        %v1100 = vrot.slane %v1095, 6
        %v1101 = vrot.slane %v1100, 4
        %1102 = vrot.lane.b32.xlu0 %v1099, 126
        %v1103 = vpop.permute.xlu0 %1102
        %1104 = vrot.lane.b32.xlu0 %v1101, 126
        %v1105 = vpop.permute.xlu0 %1104
        %v1106 = vrot.slane %v1103, 4
        %v1107 = vrot.slane %v1105, 4
        %v1108 = vsel %vm300, %v1106, %v1107
        %v1109 = vsel %vm320, %v1103, %v1108
        %v1110 = vsel %vm320, %v1105, %v1107
        %1113 = vst [vmem:[#allocation2 + $0x9c] sm:$0x33] %v1109
        %1114 = vst [vmem:[#allocation2 + $0xa4] sm:$0x3] %v1110
        %v1115 = vld [vmem:[%s232 + $0x20] sm:$0xcc]
        %v1116 = vld [vmem:[%s232 + $0x28] sm:$0xcc]
        %1119 = vrot.lane.b32.xlu0 %v1115, 110
        %v1120 = vpop.permute.xlu0 %1119
        %1121 = vrot.lane.b32.xlu0 %v1116, 110
        %v1122 = vpop.permute.xlu0 %1121
        %v1123 = vrot.slane %v1120, 4
        %v1124 = vrot.slane %v1122, 4
        %v1125 = vsel %vm300, %v1123, %v1124
        %v1126 = vsel %vm340, %v1120, %v1125
        %v1127 = vsel %vm340, %v1122, %v1124
        %1130 = vst [vmem:[#allocation2 + $0x9c] sm:$0xcc] %v1126
        %1131 = vst [vmem:[#allocation2 + $0xa4] sm:$0xc] %v1127
        %v1132 = vld [vmem:[%s232 + $0x20] sm:$0xcc]
        %v1133 = vld [vmem:[%s232 + $0x28] sm:$0xcc]
        %v1136 = vrot.slane %v1132, 6
        %v1137 = vrot.slane %v1136, 4
        %v1138 = vrot.slane %v1133, 6
        %v1139 = vrot.slane %v1138, 4
        %1140 = vrot.lane.b32.xlu0 %v1137, 109
        %v1141 = vpop.permute.xlu0 %1140
        %1142 = vrot.lane.b32.xlu0 %v1139, 109
        %v1143 = vpop.permute.xlu0 %1142
        %v1144 = vrot.slane %v1141, 4
        %v1145 = vrot.slane %v1143, 4
        %v1146 = vsel %vm300, %v1144, %v1145
        %v1147 = vsel %vm358, %v1141, %v1146
        %v1148 = vsel %vm358, %v1143, %v1145
        %1151 = vst [vmem:[#allocation2 + $0xfc] sm:$0x33] %v1147
        %1152 = vst [vmem:[#allocation2 + $0x104] sm:$0x3] %v1148
        %v1153 = vld [vmem:[%s232 + $0x20] sm:$0xcc]
        %v1154 = vld [vmem:[%s232 + $0x28] sm:$0xcc]
        %1157 = vrot.lane.b32.xlu0 %v1153, 108
        %v1158 = vpop.permute.xlu0 %1157
        %1159 = vrot.lane.b32.xlu0 %v1154, 108
        %v1160 = vpop.permute.xlu0 %1159
        %v1161 = vrot.slane %v1158, 4
        %v1162 = vrot.slane %v1160, 4
        %v1163 = vsel %vm300, %v1161, %v1162
        %v1164 = vsel %vm378, %v1158, %v1163
        %v1165 = vsel %vm378, %v1160, %v1162
        %1168 = vst [vmem:[#allocation2 + $0xfc] sm:$0xcc] %v1164
        %1169 = vst [vmem:[#allocation2 + $0x104] sm:$0xc] %v1165
        %v1170 = vld [vmem:[%s232 + $0x20] sm:$0xcc]
        %v1171 = vld [vmem:[%s232 + $0x28] sm:$0xcc]
        %v1174 = vrot.slane %v1170, 6
        %v1175 = vrot.slane %v1174, 4
        %v1176 = vrot.slane %v1171, 6
        %v1177 = vrot.slane %v1176, 4
        %1178 = vrot.lane.b32.xlu0 %v1175, 92
        %v1179 = vpop.permute.xlu0 %1178
        %1180 = vrot.lane.b32.xlu0 %v1177, 92
        %v1181 = vpop.permute.xlu0 %1180
        %v1182 = vrot.slane %v1179, 4
        %v1183 = vrot.slane %v1181, 4
        %v1184 = vsel %vm300, %v1182, %v1183
        %v1185 = vsel %vm396, %v1179, %v1184
        %v1186 = vsel %vm396, %v1181, %v1183
        %1189 = vst [vmem:[#allocation2 + $0x15c] sm:$0x33] %v1185
        %1190 = vst [vmem:[#allocation2 + $0x164] sm:$0x3] %v1186
        %v1191 = vld [vmem:[%s232 + $0x20] sm:$0xcc]
        %v1192 = vld [vmem:[%s232 + $0x28] sm:$0xcc]
        %1195 = vrot.lane.b32.xlu0 %v1191, 91
        %v1196 = vpop.permute.xlu0 %1195
        %1197 = vrot.lane.b32.xlu0 %v1192, 91
        %v1198 = vpop.permute.xlu0 %1197
        %v1199 = vrot.slane %v1196, 4
        %v1200 = vrot.slane %v1198, 4
        %v1201 = vsel %vm300, %v1199, %v1200
        %v1202 = vsel %vm416, %v1196, %v1201
        %v1203 = vsel %vm416, %v1198, %v1200
        %1206 = vst [vmem:[#allocation2 + $0x15c] sm:$0xcc] %v1202
        %1207 = vst [vmem:[#allocation2 + $0x164] sm:$0xc] %v1203
        %v1208 = vld [vmem:[%s232 + $0x20] sm:$0xcc]
        %v1209 = vld [vmem:[%s232 + $0x28] sm:$0xcc]
        %v1212 = vrot.slane %v1208, 6
        %v1213 = vrot.slane %v1212, 4
        %v1214 = vrot.slane %v1209, 6
        %v1215 = vrot.slane %v1214, 4
        %1216 = vrot.lane.b32.xlu0 %v1213, 90
        %v1217 = vpop.permute.xlu0 %1216
        %1218 = vrot.lane.b32.xlu0 %v1215, 90
        %v1219 = vpop.permute.xlu0 %1218
        %v1220 = vrot.slane %v1217, 4
        %v1221 = vrot.slane %v1219, 4
        %v1222 = vsel %vm300, %v1220, %v1221
        %v1223 = vsel %vm434, %v1217, %v1222
        %v1224 = vsel %vm434, %v1219, %v1221
        %1227 = vst [vmem:[#allocation2 + $0x1bc] sm:$0x33] %v1223
        %1228 = vst [vmem:[#allocation2 + $0x1c4] sm:$0x3] %v1224
        %v1229 = vld [vmem:[%s232 + $0x30] sm:$0x33]
        %v1230 = vld [vmem:[%s232 + $0x38] sm:$0x3]
        %1231 = vst [vmem:[#allocation2 + $0x48] sm:$0x33] %v1229
        %1232 = vst [vmem:[#allocation2 + $0x50] sm:$0x3] %v1230
        %v1233 = vld [vmem:[%s232 + $0x30] sm:$0x33]
        %v1234 = vld [vmem:[%s232 + $0x38] sm:$0x33]
        %v1237 = vrot.slane %v1233, 6
        %v1238 = vrot.slane %v1234, 6
        %1239 = vrot.lane.b32.xlu0 %v1237, 127
        %v1240 = vpop.permute.xlu0 %1239
        %1241 = vrot.lane.b32.xlu0 %v1238, 127
        %v1242 = vpop.permute.xlu0 %1241
        %v1243 = vrot.slane %v1240, 4
        %v1244 = vrot.slane %v1242, 4
        %v1245 = vsel %vm300, %v1243, %v1244
        %v1246 = vsel %vm302, %v1240, %v1245
        %v1247 = vsel %vm302, %v1242, %v1244
        %1250 = vst [vmem:[#allocation2 + $0x48] sm:$0xcc] %v1246
        %1251 = vst [vmem:[#allocation2 + $0x50] sm:$0xc] %v1247
        %v1252 = vld [vmem:[%s232 + $0x30] sm:$0x33]
        %v1253 = vld [vmem:[%s232 + $0x38] sm:$0x33]
        %1256 = vrot.lane.b32.xlu0 %v1252, 126
        %v1257 = vpop.permute.xlu0 %1256
        %1258 = vrot.lane.b32.xlu0 %v1253, 126
        %v1259 = vpop.permute.xlu0 %1258
        %v1260 = vrot.slane %v1257, 4
        %v1261 = vrot.slane %v1259, 4
        %v1262 = vsel %vm300, %v1260, %v1261
        %v1263 = vsel %vm320, %v1257, %v1262
        %v1264 = vsel %vm320, %v1259, %v1261
        %1267 = vst [vmem:[#allocation2 + $0xa8] sm:$0x33] %v1263
        %1268 = vst [vmem:[#allocation2 + $0xb0] sm:$0x3] %v1264
        %v1269 = vld [vmem:[%s232 + $0x30] sm:$0x33]
        %v1270 = vld [vmem:[%s232 + $0x38] sm:$0x33]
        %v1273 = vrot.slane %v1269, 6
        %v1274 = vrot.slane %v1270, 6
        %1275 = vrot.lane.b32.xlu0 %v1273, 110
        %v1276 = vpop.permute.xlu0 %1275
        %1277 = vrot.lane.b32.xlu0 %v1274, 110
        %v1278 = vpop.permute.xlu0 %1277
        %v1279 = vrot.slane %v1276, 4
        %v1280 = vrot.slane %v1278, 4
        %v1281 = vsel %vm300, %v1279, %v1280
        %v1282 = vsel %vm340, %v1276, %v1281
        %v1283 = vsel %vm340, %v1278, %v1280
        %1286 = vst [vmem:[#allocation2 + $0xa8] sm:$0xcc] %v1282
        %1287 = vst [vmem:[#allocation2 + $0xb0] sm:$0xc] %v1283
        %v1288 = vld [vmem:[%s232 + $0x30] sm:$0x33]
        %v1289 = vld [vmem:[%s232 + $0x38] sm:$0x33]
        %1292 = vrot.lane.b32.xlu0 %v1288, 109
        %v1293 = vpop.permute.xlu0 %1292
        %1294 = vrot.lane.b32.xlu0 %v1289, 109
        %v1295 = vpop.permute.xlu0 %1294
        %v1296 = vrot.slane %v1293, 4
        %v1297 = vrot.slane %v1295, 4
        %v1298 = vsel %vm300, %v1296, %v1297
        %v1299 = vsel %vm358, %v1293, %v1298
        %v1300 = vsel %vm358, %v1295, %v1297
        %1303 = vst [vmem:[#allocation2 + $0x108] sm:$0x33] %v1299
        %1304 = vst [vmem:[#allocation2 + $0x110] sm:$0x3] %v1300
        %v1305 = vld [vmem:[%s232 + $0x30] sm:$0x33]
        %v1306 = vld [vmem:[%s232 + $0x38] sm:$0x33]
        %v1309 = vrot.slane %v1305, 6
        %v1310 = vrot.slane %v1306, 6
        %1311 = vrot.lane.b32.xlu0 %v1309, 108
        %v1312 = vpop.permute.xlu0 %1311
        %1313 = vrot.lane.b32.xlu0 %v1310, 108
        %v1314 = vpop.permute.xlu0 %1313
        %v1315 = vrot.slane %v1312, 4
        %v1316 = vrot.slane %v1314, 4
        %v1317 = vsel %vm300, %v1315, %v1316
        %v1318 = vsel %vm378, %v1312, %v1317
        %v1319 = vsel %vm378, %v1314, %v1316
        %1322 = vst [vmem:[#allocation2 + $0x108] sm:$0xcc] %v1318
        %1323 = vst [vmem:[#allocation2 + $0x110] sm:$0xc] %v1319
        %v1324 = vld [vmem:[%s232 + $0x30] sm:$0x33]
        %v1325 = vld [vmem:[%s232 + $0x38] sm:$0x33]
        %1328 = vrot.lane.b32.xlu0 %v1324, 92
        %v1329 = vpop.permute.xlu0 %1328
        %1330 = vrot.lane.b32.xlu0 %v1325, 92
        %v1331 = vpop.permute.xlu0 %1330
        %v1332 = vrot.slane %v1329, 4
        %v1333 = vrot.slane %v1331, 4
        %v1334 = vsel %vm300, %v1332, %v1333
        %v1335 = vsel %vm396, %v1329, %v1334
        %v1336 = vsel %vm396, %v1331, %v1333
        %1339 = vst [vmem:[#allocation2 + $0x168] sm:$0x33] %v1335
        %1340 = vst [vmem:[#allocation2 + $0x170] sm:$0x3] %v1336
        %v1341 = vld [vmem:[%s232 + $0x30] sm:$0x33]
        %v1342 = vld [vmem:[%s232 + $0x38] sm:$0x33]
        %v1345 = vrot.slane %v1341, 6
        %v1346 = vrot.slane %v1342, 6
        %1347 = vrot.lane.b32.xlu0 %v1345, 91
        %v1348 = vpop.permute.xlu0 %1347
        %1349 = vrot.lane.b32.xlu0 %v1346, 91
        %v1350 = vpop.permute.xlu0 %1349
        %v1351 = vrot.slane %v1348, 4
        %v1352 = vrot.slane %v1350, 4
        %v1353 = vsel %vm300, %v1351, %v1352
        %v1354 = vsel %vm416, %v1348, %v1353
        %v1355 = vsel %vm416, %v1350, %v1352
        %1358 = vst [vmem:[#allocation2 + $0x168] sm:$0xcc] %v1354
        %1359 = vst [vmem:[#allocation2 + $0x170] sm:$0xc] %v1355
        %v1360 = vld [vmem:[%s232 + $0x30] sm:$0x33]
        %v1361 = vld [vmem:[%s232 + $0x38] sm:$0x33]
        %1364 = vrot.lane.b32.xlu0 %v1360, 90
        %v1365 = vpop.permute.xlu0 %1364
        %1366 = vrot.lane.b32.xlu0 %v1361, 90
        %v1367 = vpop.permute.xlu0 %1366
        %v1368 = vrot.slane %v1365, 4
        %v1369 = vrot.slane %v1367, 4
        %v1370 = vsel %vm300, %v1368, %v1369
        %v1371 = vsel %vm434, %v1365, %v1370
        %v1372 = vsel %vm434, %v1367, %v1369
        %1375 = vst [vmem:[#allocation2 + $0x1c8] sm:$0x33] %v1371
        %1376 = vst [vmem:[#allocation2 + $0x1d0] sm:$0x3] %v1372
        %v1377 = vld [vmem:[%s232 + $0x30] sm:$0xcc]
        %v1378 = vld [vmem:[%s232 + $0x38] sm:$0xc]
        %v1381 = vrot.slane %v1377, 6
        %v1382 = vrot.slane %v1381, 4
        %v1383 = vrot.slane %v1378, 6
        %v1384 = vrot.slane %v1383, 4
        %1387 = vst [vmem:[#allocation2 + $0x54] sm:$0x33] %v1382
        %1388 = vst [vmem:[#allocation2 + $0x5c] sm:$0x3] %v1384
        %v1389 = vld [vmem:[%s232 + $0x30] sm:$0xcc]
        %v1390 = vld [vmem:[%s232 + $0x38] sm:$0xcc]
        %1393 = vrot.lane.b32.xlu0 %v1389, 127
        %v1394 = vpop.permute.xlu0 %1393
        %1395 = vrot.lane.b32.xlu0 %v1390, 127
        %v1396 = vpop.permute.xlu0 %1395
        %v1397 = vrot.slane %v1394, 4
        %v1398 = vrot.slane %v1396, 4
        %v1399 = vsel %vm300, %v1397, %v1398
        %v1400 = vsel %vm302, %v1394, %v1399
        %v1401 = vsel %vm302, %v1396, %v1398
        %1404 = vst [vmem:[#allocation2 + $0x54] sm:$0xcc] %v1400
        %1405 = vst [vmem:[#allocation2 + $0x5c] sm:$0xc] %v1401
        %v1406 = vld [vmem:[%s232 + $0x30] sm:$0xcc]
        %v1407 = vld [vmem:[%s232 + $0x38] sm:$0xcc]
        %v1410 = vrot.slane %v1406, 6
        %v1411 = vrot.slane %v1410, 4
        %v1412 = vrot.slane %v1407, 6
        %v1413 = vrot.slane %v1412, 4
        %1414 = vrot.lane.b32.xlu0 %v1411, 126
        %v1415 = vpop.permute.xlu0 %1414
        %1416 = vrot.lane.b32.xlu0 %v1413, 126
        %v1417 = vpop.permute.xlu0 %1416
        %v1418 = vrot.slane %v1415, 4
        %v1419 = vrot.slane %v1417, 4
        %v1420 = vsel %vm300, %v1418, %v1419
        %v1421 = vsel %vm320, %v1415, %v1420
        %v1422 = vsel %vm320, %v1417, %v1419
        %1425 = vst [vmem:[#allocation2 + $0xb4] sm:$0x33] %v1421
        %1426 = vst [vmem:[#allocation2 + $0xbc] sm:$0x3] %v1422
        %v1427 = vld [vmem:[%s232 + $0x30] sm:$0xcc]
        %v1428 = vld [vmem:[%s232 + $0x38] sm:$0xcc]
        %1431 = vrot.lane.b32.xlu0 %v1427, 110
        %v1432 = vpop.permute.xlu0 %1431
        %1433 = vrot.lane.b32.xlu0 %v1428, 110
        %v1434 = vpop.permute.xlu0 %1433
        %v1435 = vrot.slane %v1432, 4
        %v1436 = vrot.slane %v1434, 4
        %v1437 = vsel %vm300, %v1435, %v1436
        %v1438 = vsel %vm340, %v1432, %v1437
        %v1439 = vsel %vm340, %v1434, %v1436
        %1442 = vst [vmem:[#allocation2 + $0xb4] sm:$0xcc] %v1438
        %1443 = vst [vmem:[#allocation2 + $0xbc] sm:$0xc] %v1439
        %v1444 = vld [vmem:[%s232 + $0x30] sm:$0xcc]
        %v1445 = vld [vmem:[%s232 + $0x38] sm:$0xcc]
        %v1448 = vrot.slane %v1444, 6
        %v1449 = vrot.slane %v1448, 4
        %v1450 = vrot.slane %v1445, 6
        %v1451 = vrot.slane %v1450, 4
        %1452 = vrot.lane.b32.xlu0 %v1449, 109
        %v1453 = vpop.permute.xlu0 %1452
        %1454 = vrot.lane.b32.xlu0 %v1451, 109
        %v1455 = vpop.permute.xlu0 %1454
        %v1456 = vrot.slane %v1453, 4
        %v1457 = vrot.slane %v1455, 4
        %v1458 = vsel %vm300, %v1456, %v1457
        %v1459 = vsel %vm358, %v1453, %v1458
        %v1460 = vsel %vm358, %v1455, %v1457
        %1463 = vst [vmem:[#allocation2 + $0x114] sm:$0x33] %v1459
        %1464 = vst [vmem:[#allocation2 + $0x11c] sm:$0x3] %v1460
        %v1465 = vld [vmem:[%s232 + $0x30] sm:$0xcc]
        %v1466 = vld [vmem:[%s232 + $0x38] sm:$0xcc]
        %1469 = vrot.lane.b32.xlu0 %v1465, 108
        %v1470 = vpop.permute.xlu0 %1469
        %1471 = vrot.lane.b32.xlu0 %v1466, 108
        %v1472 = vpop.permute.xlu0 %1471
        %v1473 = vrot.slane %v1470, 4
        %v1474 = vrot.slane %v1472, 4
        %v1475 = vsel %vm300, %v1473, %v1474
        %v1476 = vsel %vm378, %v1470, %v1475
        %v1477 = vsel %vm378, %v1472, %v1474
        %1480 = vst [vmem:[#allocation2 + $0x114] sm:$0xcc] %v1476
        %1481 = vst [vmem:[#allocation2 + $0x11c] sm:$0xc] %v1477
        %v1482 = vld [vmem:[%s232 + $0x30] sm:$0xcc]
        %v1483 = vld [vmem:[%s232 + $0x38] sm:$0xcc]
        %v1486 = vrot.slane %v1482, 6
        %v1487 = vrot.slane %v1486, 4
        %v1488 = vrot.slane %v1483, 6
        %v1489 = vrot.slane %v1488, 4
        %1490 = vrot.lane.b32.xlu0 %v1487, 92
        %v1491 = vpop.permute.xlu0 %1490
        %1492 = vrot.lane.b32.xlu0 %v1489, 92
        %v1493 = vpop.permute.xlu0 %1492
        %v1494 = vrot.slane %v1491, 4
        %v1495 = vrot.slane %v1493, 4
        %v1496 = vsel %vm300, %v1494, %v1495
        %v1497 = vsel %vm396, %v1491, %v1496
        %v1498 = vsel %vm396, %v1493, %v1495
        %1501 = vst [vmem:[#allocation2 + $0x174] sm:$0x33] %v1497
        %1502 = vst [vmem:[#allocation2 + $0x17c] sm:$0x3] %v1498
        %v1503 = vld [vmem:[%s232 + $0x30] sm:$0xcc]
        %v1504 = vld [vmem:[%s232 + $0x38] sm:$0xcc]
        %1507 = vrot.lane.b32.xlu0 %v1503, 91
        %v1508 = vpop.permute.xlu0 %1507
        %1509 = vrot.lane.b32.xlu0 %v1504, 91
        %v1510 = vpop.permute.xlu0 %1509
        %v1511 = vrot.slane %v1508, 4
        %v1512 = vrot.slane %v1510, 4
        %v1513 = vsel %vm300, %v1511, %v1512
        %v1514 = vsel %vm416, %v1508, %v1513
        %v1515 = vsel %vm416, %v1510, %v1512
        %1518 = vst [vmem:[#allocation2 + $0x174] sm:$0xcc] %v1514
        %1519 = vst [vmem:[#allocation2 + $0x17c] sm:$0xc] %v1515
        %v1520 = vld [vmem:[%s232 + $0x30] sm:$0xcc]
        %v1521 = vld [vmem:[%s232 + $0x38] sm:$0xcc]
        %v1524 = vrot.slane %v1520, 6
        %v1525 = vrot.slane %v1524, 4
        %v1526 = vrot.slane %v1521, 6
        %v1527 = vrot.slane %v1526, 4
        %1528 = vrot.lane.b32.xlu0 %v1525, 90
        %v1529 = vpop.permute.xlu0 %1528
        %1530 = vrot.lane.b32.xlu0 %v1527, 90
        %v1531 = vpop.permute.xlu0 %1530
        %v1532 = vrot.slane %v1529, 4
        %v1533 = vrot.slane %v1531, 4
        %v1534 = vsel %vm300, %v1532, %v1533
        %v1535 = vsel %vm434, %v1529, %v1534
        %v1536 = vsel %vm434, %v1531, %v1533
        %1539 = vst [vmem:[#allocation2 + $0x1d4] sm:$0x33] %v1535
        %1540 = vst [vmem:[#allocation2 + $0x1dc] sm:$0x3] %v1536
        %v1541 = vld [vmem:[#allocation8] sm:$0xf]
        %v1542 = vld [vmem:[#allocation2] sm:$0xff]
        %v1543 = vld [vmem:[#allocation2 + $0x8] sm:$0xff]
        %v1544 = vld [vmem:[#allocation2 + $0x10] sm:$0xff]
        %v1545 = vld [vmem:[#allocation2 + $0x18] sm:$0xff]
        %v1546 = vld [vmem:[#allocation2 + $0x20] sm:$0xff]
        %v1547 = vld [vmem:[#allocation2 + $0x28] sm:$0xff]
        %v1548 = vld [vmem:[#allocation2 + $0x30] sm:$0xff]
        %v1549 = vld [vmem:[#allocation2 + $0x38] sm:$0xff]
        %v1550 = vld [vmem:[#allocation2 + $0x40] sm:$0xff]
        %v1551 = vld [vmem:[#allocation2 + $0x48] sm:$0xff]
        %v1552 = vld [vmem:[#allocation2 + $0x50] sm:$0xff]
        %v1553 = vld [vmem:[#allocation2 + $0x58] sm:$0xff]
        %v1554 = vld [vmem:[#allocation2 + $0x60] sm:$0xff]
        %v1555 = vld [vmem:[#allocation2 + $0x68] sm:$0xff]
        %v1556 = vld [vmem:[#allocation2 + $0x70] sm:$0xff]
        %v1557 = vld [vmem:[#allocation2 + $0x78] sm:$0xff]
        %v1558 = vld [vmem:[#allocation2 + $0x80] sm:$0xff]
        %v1559 = vld [vmem:[#allocation2 + $0x88] sm:$0xff]
        %v1560 = vld [vmem:[#allocation2 + $0x90] sm:$0xff]
        %v1561 = vld [vmem:[#allocation2 + $0x98] sm:$0xff]
        %v1562 = vld [vmem:[#allocation2 + $0xa0] sm:$0xff]
        %v1563 = vld [vmem:[#allocation2 + $0xa8] sm:$0xff]
        %v1564 = vld [vmem:[#allocation2 + $0xb0] sm:$0xff]
        %v1565 = vld [vmem:[#allocation2 + $0xb8] sm:$0xff]
        %v1566 = vld [vmem:[#allocation2 + $0xc0] sm:$0xff]
        %v1567 = vld [vmem:[#allocation2 + $0xc8] sm:$0xff]
        %v1568 = vld [vmem:[#allocation2 + $0xd0] sm:$0xff]
        %v1569 = vld [vmem:[#allocation2 + $0xd8] sm:$0xff]
        %v1570 = vld [vmem:[#allocation2 + $0xe0] sm:$0xff]
        %v1571 = vld [vmem:[#allocation2 + $0xe8] sm:$0xff]
        %v1572 = vld [vmem:[#allocation2 + $0xf0] sm:$0xff]
        %v1573 = vld [vmem:[#allocation2 + $0xf8] sm:$0xff]
        %v1574 = vld [vmem:[#allocation2 + $0x100] sm:$0xff]
        %v1575 = vld [vmem:[#allocation2 + $0x108] sm:$0xff]
        %v1576 = vld [vmem:[#allocation2 + $0x110] sm:$0xff]
        %v1577 = vld [vmem:[#allocation2 + $0x118] sm:$0xff]
        %v1578 = vld [vmem:[#allocation2 + $0x120] sm:$0xff]
        %v1579 = vld [vmem:[#allocation2 + $0x128] sm:$0xff]
        %v1580 = vld [vmem:[#allocation2 + $0x130] sm:$0xff]
        %v1581 = vld [vmem:[#allocation2 + $0x138] sm:$0xff]
        %v1582 = vld [vmem:[#allocation2 + $0x140] sm:$0xff]
        %v1583 = vld [vmem:[#allocation2 + $0x148] sm:$0xff]
        %v1584 = vld [vmem:[#allocation2 + $0x150] sm:$0xff]
        %v1585 = vld [vmem:[#allocation2 + $0x158] sm:$0xff]
        %v1586 = vld [vmem:[#allocation2 + $0x160] sm:$0xff]
        %v1587 = vld [vmem:[#allocation2 + $0x168] sm:$0xff]
        %v1588 = vld [vmem:[#allocation2 + $0x170] sm:$0xff]
        %v1589 = vld [vmem:[#allocation2 + $0x178] sm:$0xff]
        %v1590 = vld [vmem:[#allocation2 + $0x180] sm:$0x33]
        %v1591 = vld [vmem:[#allocation2 + $0x188] sm:$0x33]
        %v1592 = vld [vmem:[#allocation2 + $0x190] sm:$0x33]
        %v1593 = vld [vmem:[#allocation2 + $0x198] sm:$0x33]
        %v1594 = vld [vmem:[#allocation2 + $0x1a0] sm:$0x33]
        %v1595 = vld [vmem:[#allocation2 + $0x1a8] sm:$0x33]
        %v1596 = vld [vmem:[#allocation2 + $0x1b0] sm:$0x33]
        %v1597 = vld [vmem:[#allocation2 + $0x1b8] sm:$0x33]
        %v1598 = vld [vmem:[#allocation2 + $0x1c0] sm:$0x33]
        %v1599 = vld [vmem:[#allocation2 + $0x1c8] sm:$0x33]
        %v1600 = vld [vmem:[#allocation2 + $0x1d0] sm:$0x33]
        %v1601 = vld [vmem:[#allocation2 + $0x1d8] sm:$0x33]
        %v1662 = vunpack.c.l.b16 %v1542
        %v1663 = vunpack.c.h.b16 %v1542
        %v1664 = vunpack.c.l.b16 %v1543
        %v1665 = vunpack.c.h.b16 %v1543
        %v1666 = vunpack.c.l.b16 %v1544
        %v1667 = vunpack.c.h.b16 %v1544
        %v1668 = vunpack.c.l.b16 %v1545
        %v1669 = vunpack.c.h.b16 %v1545
        %v1670 = vunpack.c.l.b16 %v1546
        %v1671 = vunpack.c.h.b16 %v1546
        %v1672 = vunpack.c.l.b16 %v1547
        %v1673 = vunpack.c.h.b16 %v1547
        %v1674 = vunpack.c.l.b16 %v1548
        %v1675 = vunpack.c.h.b16 %v1548
        %v1676 = vunpack.c.l.b16 %v1549
        %v1677 = vunpack.c.h.b16 %v1549
        %v1678 = vunpack.c.l.b16 %v1550
        %v1679 = vunpack.c.h.b16 %v1550
        %v1680 = vunpack.c.l.b16 %v1551
        %v1681 = vunpack.c.h.b16 %v1551
        %v1682 = vunpack.c.l.b16 %v1552
        %v1683 = vunpack.c.h.b16 %v1552
        %v1684 = vunpack.c.l.b16 %v1553
        %v1685 = vunpack.c.h.b16 %v1553
        %v1686 = vunpack.c.l.b16 %v1554
        %v1687 = vunpack.c.h.b16 %v1554
        %v1688 = vunpack.c.l.b16 %v1555
        %v1689 = vunpack.c.h.b16 %v1555
        %v1690 = vunpack.c.l.b16 %v1556
        %v1691 = vunpack.c.h.b16 %v1556
        %v1692 = vunpack.c.l.b16 %v1557
        %v1693 = vunpack.c.h.b16 %v1557
        %v1694 = vunpack.c.l.b16 %v1558
        %v1695 = vunpack.c.h.b16 %v1558
        %v1696 = vunpack.c.l.b16 %v1559
        %v1697 = vunpack.c.h.b16 %v1559
        %v1698 = vunpack.c.l.b16 %v1560
        %v1699 = vunpack.c.h.b16 %v1560
        %v1700 = vunpack.c.l.b16 %v1561
        %v1701 = vunpack.c.h.b16 %v1561
        %v1702 = vunpack.c.l.b16 %v1562
        %v1703 = vunpack.c.h.b16 %v1562
        %v1704 = vunpack.c.l.b16 %v1563
        %v1705 = vunpack.c.h.b16 %v1563
        %v1706 = vunpack.c.l.b16 %v1564
        %v1707 = vunpack.c.h.b16 %v1564
        %v1708 = vunpack.c.l.b16 %v1565
        %v1709 = vunpack.c.h.b16 %v1565
        %v1710 = vunpack.c.l.b16 %v1566
        %v1711 = vunpack.c.h.b16 %v1566
        %v1712 = vunpack.c.l.b16 %v1567
        %v1713 = vunpack.c.h.b16 %v1567
        %v1714 = vunpack.c.l.b16 %v1568
        %v1715 = vunpack.c.h.b16 %v1568
        %v1716 = vunpack.c.l.b16 %v1569
        %v1717 = vunpack.c.h.b16 %v1569
        %v1718 = vunpack.c.l.b16 %v1570
        %v1719 = vunpack.c.h.b16 %v1570
        %v1720 = vunpack.c.l.b16 %v1571
        %v1721 = vunpack.c.h.b16 %v1571
        %v1722 = vunpack.c.l.b16 %v1572
        %v1723 = vunpack.c.h.b16 %v1572
        %v1724 = vunpack.c.l.b16 %v1573
        %v1725 = vunpack.c.h.b16 %v1573
        %v1726 = vunpack.c.l.b16 %v1574
        %v1727 = vunpack.c.h.b16 %v1574
        %v1728 = vunpack.c.l.b16 %v1575
        %v1729 = vunpack.c.h.b16 %v1575
        %v1730 = vunpack.c.l.b16 %v1576
        %v1731 = vunpack.c.h.b16 %v1576
        %v1732 = vunpack.c.l.b16 %v1577
        %v1733 = vunpack.c.h.b16 %v1577
        %v1734 = vunpack.c.l.b16 %v1578
        %v1735 = vunpack.c.h.b16 %v1578
        %v1736 = vunpack.c.l.b16 %v1579
        %v1737 = vunpack.c.h.b16 %v1579
        %v1738 = vunpack.c.l.b16 %v1580
        %v1739 = vunpack.c.h.b16 %v1580
        %v1740 = vunpack.c.l.b16 %v1581
        %v1741 = vunpack.c.h.b16 %v1581
        %v1742 = vunpack.c.l.b16 %v1582
        %v1743 = vunpack.c.h.b16 %v1582
        %v1744 = vunpack.c.l.b16 %v1583
        %v1745 = vunpack.c.h.b16 %v1583
        %v1746 = vunpack.c.l.b16 %v1584
        %v1747 = vunpack.c.h.b16 %v1584
        %v1748 = vunpack.c.l.b16 %v1585
        %v1749 = vunpack.c.h.b16 %v1585
        %v1750 = vunpack.c.l.b16 %v1586
        %v1751 = vunpack.c.h.b16 %v1586
        %v1752 = vunpack.c.l.b16 %v1587
        %v1753 = vunpack.c.h.b16 %v1587
        %v1754 = vunpack.c.l.b16 %v1588
        %v1755 = vunpack.c.h.b16 %v1588
        %v1756 = vunpack.c.l.b16 %v1589
        %v1757 = vunpack.c.h.b16 %v1589
        %v1758 = vunpack.c.l.b16 %v1590
        %v1759 = vunpack.c.h.b16 %v1590
        %v1760 = vunpack.c.l.b16 %v1591
        %v1761 = vunpack.c.h.b16 %v1591
        %v1762 = vunpack.c.l.b16 %v1592
        %v1763 = vunpack.c.h.b16 %v1592
        %v1764 = vunpack.c.l.b16 %v1593
        %v1765 = vunpack.c.h.b16 %v1593
        %v1766 = vunpack.c.l.b16 %v1594
        %v1767 = vunpack.c.h.b16 %v1594
        %v1768 = vunpack.c.l.b16 %v1595
        %v1769 = vunpack.c.h.b16 %v1595
        %v1770 = vunpack.c.l.b16 %v1596
        %v1771 = vunpack.c.h.b16 %v1596
        %v1772 = vunpack.c.l.b16 %v1597
        %v1773 = vunpack.c.h.b16 %v1597
        %v1774 = vunpack.c.l.b16 %v1598
        %v1775 = vunpack.c.h.b16 %v1598
        %v1776 = vunpack.c.l.b16 %v1599
        %v1777 = vunpack.c.h.b16 %v1599
        %v1778 = vunpack.c.l.b16 %v1600
        %v1779 = vunpack.c.h.b16 %v1600
        %v1780 = vunpack.c.l.b16 %v1601
        %v1781 = vunpack.c.h.b16 %v1601
        %v1782 = vpack.c.b16 %v1686, %v1662
        %v1783 = vpack.c.b16 %v1687, %v1663
        %v1784 = vpack.c.b16 %v1688, %v1664
        %v1785 = vpack.c.b16 %v1689, %v1665
        %v1786 = vpack.c.b16 %v1690, %v1666
        %v1787 = vpack.c.b16 %v1691, %v1667
        %v1788 = vpack.c.b16 %v1692, %v1668
        %v1789 = vpack.c.b16 %v1693, %v1669
        %v1790 = vpack.c.b16 %v1694, %v1670
        %v1791 = vpack.c.b16 %v1695, %v1671
        %v1792 = vpack.c.b16 %v1696, %v1672
        %v1793 = vpack.c.b16 %v1697, %v1673
        %v1794 = vpack.c.b16 %v1698, %v1674
        %v1795 = vpack.c.b16 %v1699, %v1675
        %v1796 = vpack.c.b16 %v1700, %v1676
        %v1797 = vpack.c.b16 %v1701, %v1677
        %v1798 = vpack.c.b16 %v1702, %v1678
        %v1799 = vpack.c.b16 %v1703, %v1679
        %v1800 = vpack.c.b16 %v1704, %v1680
        %v1801 = vpack.c.b16 %v1705, %v1681
        %v1802 = vpack.c.b16 %v1706, %v1682
        %v1803 = vpack.c.b16 %v1707, %v1683
        %v1804 = vpack.c.b16 %v1708, %v1684
        %v1805 = vpack.c.b16 %v1709, %v1685
        %v1806 = vpack.c.b16 %v1734, %v1710
        %v1807 = vpack.c.b16 %v1735, %v1711
        %v1808 = vpack.c.b16 %v1736, %v1712
        %v1809 = vpack.c.b16 %v1737, %v1713
        %v1810 = vpack.c.b16 %v1738, %v1714
        %v1811 = vpack.c.b16 %v1739, %v1715
        %v1812 = vpack.c.b16 %v1740, %v1716
        %v1813 = vpack.c.b16 %v1741, %v1717
        %v1814 = vpack.c.b16 %v1742, %v1718
        %v1815 = vpack.c.b16 %v1743, %v1719
        %v1816 = vpack.c.b16 %v1744, %v1720
        %v1817 = vpack.c.b16 %v1745, %v1721
        %v1818 = vpack.c.b16 %v1746, %v1722
        %v1819 = vpack.c.b16 %v1747, %v1723
        %v1820 = vpack.c.b16 %v1748, %v1724
        %v1821 = vpack.c.b16 %v1749, %v1725
        %v1822 = vpack.c.b16 %v1750, %v1726
        %v1823 = vpack.c.b16 %v1751, %v1727
        %v1824 = vpack.c.b16 %v1752, %v1728
        %v1825 = vpack.c.b16 %v1753, %v1729
        %v1826 = vpack.c.b16 %v1754, %v1730
        %v1827 = vpack.c.b16 %v1755, %v1731
        %v1828 = vpack.c.b16 %v1756, %v1732
        %v1829 = vpack.c.b16 %v1757, %v1733
        %v1830 = vpack.c.b16 %v1758, %v1758
        %v1831 = vpack.c.b16 %v1759, %v1759
        %v1832 = vpack.c.b16 %v1760, %v1760
        %v1833 = vpack.c.b16 %v1761, %v1761
        %v1834 = vpack.c.b16 %v1762, %v1762
        %v1835 = vpack.c.b16 %v1763, %v1763
        %v1836 = vpack.c.b16 %v1764, %v1764
        %v1837 = vpack.c.b16 %v1765, %v1765
        %v1838 = vpack.c.b16 %v1766, %v1766
        %v1839 = vpack.c.b16 %v1767, %v1767
        %v1840 = vpack.c.b16 %v1768, %v1768
        %v1841 = vpack.c.b16 %v1769, %v1769
        %v1842 = vpack.c.b16 %v1770, %v1770
        %v1843 = vpack.c.b16 %v1771, %v1771
        %v1844 = vpack.c.b16 %v1772, %v1772
        %v1845 = vpack.c.b16 %v1773, %v1773
        %v1846 = vpack.c.b16 %v1774, %v1774
        %v1847 = vpack.c.b16 %v1775, %v1775
        %v1848 = vpack.c.b16 %v1776, %v1776
        %v1849 = vpack.c.b16 %v1777, %v1777
        %v1850 = vpack.c.b16 %v1778, %v1778
        %v1851 = vpack.c.b16 %v1779, %v1779
        %v1852 = vpack.c.b16 %v1780, %v1780
        %v1853 = vpack.c.b16 %v1781, %v1781
        %vm1902 = vcmask 293888
        %v1904 = vsel %vm1902, %v1541, 0
        %vm1906 = vcmask 1041408
        %v1908 = vsel %vm1906, %v1830, 0
        %v1911 = vsel %vm1906, %v1831, 0
        %v1914 = vsel %vm1906, %v1832, 0
        %v1917 = vsel %vm1906, %v1833, 0
        %v1920 = vsel %vm1906, %v1834, 0
        %v1923 = vsel %vm1906, %v1835, 0
        %v1926 = vsel %vm1906, %v1836, 0
        %v1929 = vsel %vm1906, %v1837, 0
        %v1932 = vsel %vm1906, %v1838, 0
        %v1935 = vsel %vm1906, %v1839, 0
        %v1938 = vsel %vm1906, %v1840, 0
        %v1941 = vsel %vm1906, %v1841, 0
        %v1944 = vsel %vm1906, %v1842, 0
        %v1947 = vsel %vm1906, %v1843, 0
        %v1950 = vsel %vm1906, %v1844, 0
        %v1953 = vsel %vm1906, %v1845, 0
        %v1956 = vsel %vm1906, %v1846, 0
        %v1959 = vsel %vm1906, %v1847, 0
        %v1962 = vsel %vm1906, %v1848, 0
        %v1965 = vsel %vm1906, %v1849, 0
        %v1968 = vsel %vm1906, %v1850, 0
        %v1971 = vsel %vm1906, %v1851, 0
        %v1974 = vsel %vm1906, %v1852, 0
        %v1977 = vsel %vm1906, %v1853, 0
        %1979 = vmatpush.bf16.msra.mxu0 0
        %1980 = vmatpush.bf16.msra.mxu0 0
        %1981 = vmatpush.bf16.msra.mxu0 0
        %1982 = vmatpush.bf16.msra.mxu0 0
        %1983 = vmatpush.bf16.msra.mxu0 0
        %1984 = vmatpush.bf16.msra.mxu0 %v1908
        %1985 = vmatpush.bf16.msra.mxu0 %v1806
        %1986 = vmatpush.bf16.msra.mxu0 %v1782
        %1987 = vmatmul.bf16.gmra.mxu0 %v1904
        %v1988 = vpop.f32.mrf.mxu0
        %v1989 = vadd.f32 0.0, %v1988
        %v1990 = vpop.f32.mrf.mxu0
        %1991 = vdwg.mxu0
        %1992 = vmatpush.bf16.msra.mxu0 0
        %1993 = vmatpush.bf16.msra.mxu0 0
        %1994 = vmatpush.bf16.msra.mxu0 0
        %1995 = vmatpush.bf16.msra.mxu0 0
        %1996 = vmatpush.bf16.msra.mxu0 0
        %1997 = vmatpush.bf16.msra.mxu0 %v1911
        %1998 = vmatpush.bf16.msra.mxu0 %v1807
        %1999 = vmatpush.bf16.msra.mxu0 %v1783
        %2000 = vmatmul.bf16.gmra.mxu0 %v1904
        %v2001 = vpop.f32.mrf.mxu0
        %v2002 = vadd.f32 0.0, %v2001
        %v2003 = vpop.f32.mrf.mxu0
        %2004 = vdwg.mxu0
        %2005 = vmatpush.bf16.msra.mxu0 0
        %2006 = vmatpush.bf16.msra.mxu0 0
        %2007 = vmatpush.bf16.msra.mxu0 0
        %2008 = vmatpush.bf16.msra.mxu0 0
        %2009 = vmatpush.bf16.msra.mxu0 0
        %2010 = vmatpush.bf16.msra.mxu0 %v1914
        %2011 = vmatpush.bf16.msra.mxu0 %v1808
        %2012 = vmatpush.bf16.msra.mxu0 %v1784
        %2013 = vmatmul.bf16.gmra.mxu0 %v1904
        %v2014 = vpop.f32.mrf.mxu0
        %v2015 = vadd.f32 0.0, %v2014
        %v2016 = vpop.f32.mrf.mxu0
        %2017 = vdwg.mxu0
        %2018 = vmatpush.bf16.msra.mxu0 0
        %2019 = vmatpush.bf16.msra.mxu0 0
        %2020 = vmatpush.bf16.msra.mxu0 0
        %2021 = vmatpush.bf16.msra.mxu0 0
        %2022 = vmatpush.bf16.msra.mxu0 0
        %2023 = vmatpush.bf16.msra.mxu0 %v1917
        %2024 = vmatpush.bf16.msra.mxu0 %v1809
        %2025 = vmatpush.bf16.msra.mxu0 %v1785
        %2026 = vmatmul.bf16.gmra.mxu0 %v1904
        %v2027 = vpop.f32.mrf.mxu0
        %v2028 = vadd.f32 0.0, %v2027
        %v2029 = vpop.f32.mrf.mxu0
        %2030 = vdwg.mxu0
        %2031 = vmatpush.bf16.msra.mxu0 0
        %2032 = vmatpush.bf16.msra.mxu0 0
        %2033 = vmatpush.bf16.msra.mxu0 0
        %2034 = vmatpush.bf16.msra.mxu0 0
        %2035 = vmatpush.bf16.msra.mxu0 0
        %2036 = vmatpush.bf16.msra.mxu0 %v1920
        %2037 = vmatpush.bf16.msra.mxu0 %v1810
        %2038 = vmatpush.bf16.msra.mxu0 %v1786
        %2039 = vmatmul.bf16.gmra.mxu0 %v1904
        %v2040 = vpop.f32.mrf.mxu0
        %v2041 = vadd.f32 0.0, %v2040
        %v2042 = vpop.f32.mrf.mxu0
        %2043 = vdwg.mxu0
        %2044 = vmatpush.bf16.msra.mxu0 0
        %2045 = vmatpush.bf16.msra.mxu0 0
        %2046 = vmatpush.bf16.msra.mxu0 0
        %2047 = vmatpush.bf16.msra.mxu0 0
        %2048 = vmatpush.bf16.msra.mxu0 0
        %2049 = vmatpush.bf16.msra.mxu0 %v1923
        %2050 = vmatpush.bf16.msra.mxu0 %v1811
        %2051 = vmatpush.bf16.msra.mxu0 %v1787
        %2052 = vmatmul.bf16.gmra.mxu0 %v1904
        %v2053 = vpop.f32.mrf.mxu0
        %v2054 = vadd.f32 0.0, %v2053
        %v2055 = vpop.f32.mrf.mxu0
        %2056 = vdwg.mxu0
        %2057 = vmatpush.bf16.msra.mxu0 0
        %2058 = vmatpush.bf16.msra.mxu0 0
        %2059 = vmatpush.bf16.msra.mxu0 0
        %2060 = vmatpush.bf16.msra.mxu0 0
        %2061 = vmatpush.bf16.msra.mxu0 0
        %2062 = vmatpush.bf16.msra.mxu0 %v1926
        %2063 = vmatpush.bf16.msra.mxu0 %v1812
        %2064 = vmatpush.bf16.msra.mxu0 %v1788
        %2065 = vmatmul.bf16.gmra.mxu0 %v1904
        %v2066 = vpop.f32.mrf.mxu0
        %v2067 = vadd.f32 0.0, %v2066
        %v2068 = vpop.f32.mrf.mxu0
        %2069 = vdwg.mxu0
        %2070 = vmatpush.bf16.msra.mxu0 0
        %2071 = vmatpush.bf16.msra.mxu0 0
        %2072 = vmatpush.bf16.msra.mxu0 0
        %2073 = vmatpush.bf16.msra.mxu0 0
        %2074 = vmatpush.bf16.msra.mxu0 0
        %2075 = vmatpush.bf16.msra.mxu0 %v1929
        %2076 = vmatpush.bf16.msra.mxu0 %v1813
        %2077 = vmatpush.bf16.msra.mxu0 %v1789
        %2078 = vmatmul.bf16.gmra.mxu0 %v1904
        %v2079 = vpop.f32.mrf.mxu0
        %v2080 = vadd.f32 0.0, %v2079
        %v2081 = vpop.f32.mrf.mxu0
        %2082 = vdwg.mxu0
        %2083 = vmatpush.bf16.msra.mxu0 0
        %2084 = vmatpush.bf16.msra.mxu0 0
        %2085 = vmatpush.bf16.msra.mxu0 0
        %2086 = vmatpush.bf16.msra.mxu0 0
        %2087 = vmatpush.bf16.msra.mxu0 0
        %2088 = vmatpush.bf16.msra.mxu0 %v1932
        %2089 = vmatpush.bf16.msra.mxu0 %v1814
        %2090 = vmatpush.bf16.msra.mxu0 %v1790
        %2091 = vmatmul.bf16.gmra.mxu0 %v1904
        %v2092 = vpop.f32.mrf.mxu0
        %v2093 = vadd.f32 0.0, %v2092
        %v2094 = vpop.f32.mrf.mxu0
        %2095 = vdwg.mxu0
        %2096 = vmatpush.bf16.msra.mxu0 0
        %2097 = vmatpush.bf16.msra.mxu0 0
        %2098 = vmatpush.bf16.msra.mxu0 0
        %2099 = vmatpush.bf16.msra.mxu0 0
        %2100 = vmatpush.bf16.msra.mxu0 0
        %2101 = vmatpush.bf16.msra.mxu0 %v1935
        %2102 = vmatpush.bf16.msra.mxu0 %v1815
        %2103 = vmatpush.bf16.msra.mxu0 %v1791
        %2104 = vmatmul.bf16.gmra.mxu0 %v1904
        %v2105 = vpop.f32.mrf.mxu0
        %v2106 = vadd.f32 0.0, %v2105
        %v2107 = vpop.f32.mrf.mxu0
        %2108 = vdwg.mxu0
        %2109 = vmatpush.bf16.msra.mxu0 0
        %2110 = vmatpush.bf16.msra.mxu0 0
        %2111 = vmatpush.bf16.msra.mxu0 0
        %2112 = vmatpush.bf16.msra.mxu0 0
        %2113 = vmatpush.bf16.msra.mxu0 0
        %2114 = vmatpush.bf16.msra.mxu0 %v1938
        %2115 = vmatpush.bf16.msra.mxu0 %v1816
        %2116 = vmatpush.bf16.msra.mxu0 %v1792
        %2117 = vmatmul.bf16.gmra.mxu0 %v1904
        %v2118 = vpop.f32.mrf.mxu0
        %v2119 = vadd.f32 0.0, %v2118
        %v2120 = vpop.f32.mrf.mxu0
        %2121 = vdwg.mxu0
        %2122 = vmatpush.bf16.msra.mxu0 0
        %2123 = vmatpush.bf16.msra.mxu0 0
        %2124 = vmatpush.bf16.msra.mxu0 0
        %2125 = vmatpush.bf16.msra.mxu0 0
        %2126 = vmatpush.bf16.msra.mxu0 0
        %2127 = vmatpush.bf16.msra.mxu0 %v1941
        %2128 = vmatpush.bf16.msra.mxu0 %v1817
        %2129 = vmatpush.bf16.msra.mxu0 %v1793
        %2130 = vmatmul.bf16.gmra.mxu0 %v1904
        %v2131 = vpop.f32.mrf.mxu0
        %v2132 = vadd.f32 0.0, %v2131
        %v2133 = vpop.f32.mrf.mxu0
        %2134 = vdwg.mxu0
        %2135 = vmatpush.bf16.msra.mxu0 0
        %2136 = vmatpush.bf16.msra.mxu0 0
        %2137 = vmatpush.bf16.msra.mxu0 0
        %2138 = vmatpush.bf16.msra.mxu0 0
        %2139 = vmatpush.bf16.msra.mxu0 0
        %2140 = vmatpush.bf16.msra.mxu0 %v1944
        %2141 = vmatpush.bf16.msra.mxu0 %v1818
        %2142 = vmatpush.bf16.msra.mxu0 %v1794
        %2143 = vmatmul.bf16.gmra.mxu0 %v1904
        %v2144 = vpop.f32.mrf.mxu0
        %v2145 = vadd.f32 0.0, %v2144
        %v2146 = vpop.f32.mrf.mxu0
        %2147 = vdwg.mxu0
        %2148 = vmatpush.bf16.msra.mxu0 0
        %2149 = vmatpush.bf16.msra.mxu0 0
        %2150 = vmatpush.bf16.msra.mxu0 0
        %2151 = vmatpush.bf16.msra.mxu0 0
        %2152 = vmatpush.bf16.msra.mxu0 0
        %2153 = vmatpush.bf16.msra.mxu0 %v1947
        %2154 = vmatpush.bf16.msra.mxu0 %v1819
        %2155 = vmatpush.bf16.msra.mxu0 %v1795
        %2156 = vmatmul.bf16.gmra.mxu0 %v1904
        %v2157 = vpop.f32.mrf.mxu0
        %v2158 = vadd.f32 0.0, %v2157
        %v2159 = vpop.f32.mrf.mxu0
        %2160 = vdwg.mxu0
        %2161 = vmatpush.bf16.msra.mxu0 0
        %2162 = vmatpush.bf16.msra.mxu0 0
        %2163 = vmatpush.bf16.msra.mxu0 0
        %2164 = vmatpush.bf16.msra.mxu0 0
        %2165 = vmatpush.bf16.msra.mxu0 0
        %2166 = vmatpush.bf16.msra.mxu0 %v1950
        %2167 = vmatpush.bf16.msra.mxu0 %v1820
        %2168 = vmatpush.bf16.msra.mxu0 %v1796
        %2169 = vmatmul.bf16.gmra.mxu0 %v1904
        %v2170 = vpop.f32.mrf.mxu0
        %v2171 = vadd.f32 0.0, %v2170
        %v2172 = vpop.f32.mrf.mxu0
        %2173 = vdwg.mxu0
        %2174 = vmatpush.bf16.msra.mxu0 0
        %2175 = vmatpush.bf16.msra.mxu0 0
        %2176 = vmatpush.bf16.msra.mxu0 0
        %2177 = vmatpush.bf16.msra.mxu0 0
        %2178 = vmatpush.bf16.msra.mxu0 0
        %2179 = vmatpush.bf16.msra.mxu0 %v1953
        %2180 = vmatpush.bf16.msra.mxu0 %v1821
        %2181 = vmatpush.bf16.msra.mxu0 %v1797
        %2182 = vmatmul.bf16.gmra.mxu0 %v1904
        %v2183 = vpop.f32.mrf.mxu0
        %v2184 = vadd.f32 0.0, %v2183
        %v2185 = vpop.f32.mrf.mxu0
        %2186 = vdwg.mxu0
        %2187 = vmatpush.bf16.msra.mxu0 0
        %2188 = vmatpush.bf16.msra.mxu0 0
        %2189 = vmatpush.bf16.msra.mxu0 0
        %2190 = vmatpush.bf16.msra.mxu0 0
        %2191 = vmatpush.bf16.msra.mxu0 0
        %2192 = vmatpush.bf16.msra.mxu0 %v1956
        %2193 = vmatpush.bf16.msra.mxu0 %v1822
        %2194 = vmatpush.bf16.msra.mxu0 %v1798
        %2195 = vmatmul.bf16.gmra.mxu0 %v1904
        %v2196 = vpop.f32.mrf.mxu0
        %v2197 = vadd.f32 0.0, %v2196
        %v2198 = vpop.f32.mrf.mxu0
        %2199 = vdwg.mxu0
        %2200 = vmatpush.bf16.msra.mxu0 0
        %2201 = vmatpush.bf16.msra.mxu0 0
        %2202 = vmatpush.bf16.msra.mxu0 0
        %2203 = vmatpush.bf16.msra.mxu0 0
        %2204 = vmatpush.bf16.msra.mxu0 0
        %2205 = vmatpush.bf16.msra.mxu0 %v1959
        %2206 = vmatpush.bf16.msra.mxu0 %v1823
        %2207 = vmatpush.bf16.msra.mxu0 %v1799
        %2208 = vmatmul.bf16.gmra.mxu0 %v1904
        %v2209 = vpop.f32.mrf.mxu0
        %v2210 = vadd.f32 0.0, %v2209
        %v2211 = vpop.f32.mrf.mxu0
        %2212 = vdwg.mxu0
        %2213 = vmatpush.bf16.msra.mxu0 0
        %2214 = vmatpush.bf16.msra.mxu0 0
        %2215 = vmatpush.bf16.msra.mxu0 0
        %2216 = vmatpush.bf16.msra.mxu0 0
        %2217 = vmatpush.bf16.msra.mxu0 0
        %2218 = vmatpush.bf16.msra.mxu0 %v1962
        %2219 = vmatpush.bf16.msra.mxu0 %v1824
        %2220 = vmatpush.bf16.msra.mxu0 %v1800
        %2221 = vmatmul.bf16.gmra.mxu0 %v1904
        %v2222 = vpop.f32.mrf.mxu0
        %v2223 = vadd.f32 0.0, %v2222
        %v2224 = vpop.f32.mrf.mxu0
        %2225 = vdwg.mxu0
        %2226 = vmatpush.bf16.msra.mxu0 0
        %2227 = vmatpush.bf16.msra.mxu0 0
        %2228 = vmatpush.bf16.msra.mxu0 0
        %2229 = vmatpush.bf16.msra.mxu0 0
        %2230 = vmatpush.bf16.msra.mxu0 0
        %2231 = vmatpush.bf16.msra.mxu0 %v1965
        %2232 = vmatpush.bf16.msra.mxu0 %v1825
        %2233 = vmatpush.bf16.msra.mxu0 %v1801
        %2234 = vmatmul.bf16.gmra.mxu0 %v1904
        %v2235 = vpop.f32.mrf.mxu0
        %v2236 = vadd.f32 0.0, %v2235
        %v2237 = vpop.f32.mrf.mxu0
        %2238 = vdwg.mxu0
        %2239 = vmatpush.bf16.msra.mxu0 0
        %2240 = vmatpush.bf16.msra.mxu0 0
        %2241 = vmatpush.bf16.msra.mxu0 0
        %2242 = vmatpush.bf16.msra.mxu0 0
        %2243 = vmatpush.bf16.msra.mxu0 0
        %2244 = vmatpush.bf16.msra.mxu0 %v1968
        %2245 = vmatpush.bf16.msra.mxu0 %v1826
        %2246 = vmatpush.bf16.msra.mxu0 %v1802
        %2247 = vmatmul.bf16.gmra.mxu0 %v1904
        %v2248 = vpop.f32.mrf.mxu0
        %v2249 = vadd.f32 0.0, %v2248
        %v2250 = vpop.f32.mrf.mxu0
        %2251 = vdwg.mxu0
        %2252 = vmatpush.bf16.msra.mxu0 0
        %2253 = vmatpush.bf16.msra.mxu0 0
        %2254 = vmatpush.bf16.msra.mxu0 0
        %2255 = vmatpush.bf16.msra.mxu0 0
        %2256 = vmatpush.bf16.msra.mxu0 0
        %2257 = vmatpush.bf16.msra.mxu0 %v1971
        %2258 = vmatpush.bf16.msra.mxu0 %v1827
        %2259 = vmatpush.bf16.msra.mxu0 %v1803
        %2260 = vmatmul.bf16.gmra.mxu0 %v1904
        %v2261 = vpop.f32.mrf.mxu0
        %v2262 = vadd.f32 0.0, %v2261
        %v2263 = vpop.f32.mrf.mxu0
        %2264 = vdwg.mxu0
        %2265 = vmatpush.bf16.msra.mxu0 0
        %2266 = vmatpush.bf16.msra.mxu0 0
        %2267 = vmatpush.bf16.msra.mxu0 0
        %2268 = vmatpush.bf16.msra.mxu0 0
        %2269 = vmatpush.bf16.msra.mxu0 0
        %2270 = vmatpush.bf16.msra.mxu0 %v1974
        %2271 = vmatpush.bf16.msra.mxu0 %v1828
        %2272 = vmatpush.bf16.msra.mxu0 %v1804
        %2273 = vmatmul.bf16.gmra.mxu0 %v1904
        %v2274 = vpop.f32.mrf.mxu0
        %v2275 = vadd.f32 0.0, %v2274
        %v2276 = vpop.f32.mrf.mxu0
        %2277 = vdwg.mxu0
        %2278 = vmatpush.bf16.msra.mxu0 0
        %2279 = vmatpush.bf16.msra.mxu0 0
        %2280 = vmatpush.bf16.msra.mxu0 0
        %2281 = vmatpush.bf16.msra.mxu0 0
        %2282 = vmatpush.bf16.msra.mxu0 0
        %2283 = vmatpush.bf16.msra.mxu0 %v1977
        %2284 = vmatpush.bf16.msra.mxu0 %v1829
        %2285 = vmatpush.bf16.msra.mxu0 %v1805
        %2286 = vmatmul.bf16.gmra.mxu0 %v1904
        %v2287 = vpop.f32.mrf.mxu0
        %v2288 = vadd.f32 0.0, %v2287
        %v2289 = vpop.f32.mrf.mxu0
        %2290 = vdwg.mxu0
        %2291 = vst [vmem:[#allocation3] sm:$0xff] %v1989
        %2292 = vst [vmem:[#allocation3 + $0x8] sm:$0xff] %v2002
        %2293 = vst [vmem:[#allocation3 + $0x10] sm:$0xff] %v2015
        %2294 = vst [vmem:[#allocation3 + $0x18] sm:$0xff] %v2028
        %2295 = vst [vmem:[#allocation3 + $0x20] sm:$0xff] %v2041
        %2296 = vst [vmem:[#allocation3 + $0x28] sm:$0xff] %v2054
        %2297 = vst [vmem:[#allocation3 + $0x30] sm:$0xff] %v2067
        %2298 = vst [vmem:[#allocation3 + $0x38] sm:$0xff] %v2080
        %2299 = vst [vmem:[#allocation3 + $0x40] sm:$0xff] %v2093
        %2300 = vst [vmem:[#allocation3 + $0x48] sm:$0xff] %v2106
        %2301 = vst [vmem:[#allocation3 + $0x50] sm:$0xff] %v2119
        %2302 = vst [vmem:[#allocation3 + $0x58] sm:$0xff] %v2132
        %2303 = vst [vmem:[#allocation3 + $0x60] sm:$0xff] %v2145
        %2304 = vst [vmem:[#allocation3 + $0x68] sm:$0xff] %v2158
        %2305 = vst [vmem:[#allocation3 + $0x70] sm:$0xff] %v2171
        %2306 = vst [vmem:[#allocation3 + $0x78] sm:$0xff] %v2184
        %2307 = vst [vmem:[#allocation3 + $0x80] sm:$0xff] %v2197
        %2308 = vst [vmem:[#allocation3 + $0x88] sm:$0xff] %v2210
        %2309 = vst [vmem:[#allocation3 + $0x90] sm:$0xff] %v2223
        %2310 = vst [vmem:[#allocation3 + $0x98] sm:$0xff] %v2236
        %2311 = vst [vmem:[#allocation3 + $0xa0] sm:$0xff] %v2249
        %2312 = vst [vmem:[#allocation3 + $0xa8] sm:$0xff] %v2262
        %2313 = vst [vmem:[#allocation3 + $0xb0] sm:$0xff] %v2275
        %2314 = vst [vmem:[#allocation3 + $0xb8] sm:$0xff] %v2288
        %v2315 = vld [vmem:[#allocation10] sm:$0xff]
        %v2316 = vld [vmem:[#allocation10 + $0x8] sm:$0xff]
        %v2317 = vld [vmem:[#allocation10 + $0x10] sm:$0xff]
        %vm2318 = vcmp.gt.f32.partialorder %v2315, 0.5
        %vm2319 = vcmp.gt.f32.partialorder %v2316, 0.5
        %vm2320 = vcmp.gt.f32.partialorder %v2317, 0.5
        %v2321 = vld [vmem:[#allocation3] sm:$0xff]
        %v2322 = vld [vmem:[#allocation3 + $0x8] sm:$0xff]
        %v2323 = vld [vmem:[#allocation3 + $0x10] sm:$0xff]
        %v2324 = vld [vmem:[#allocation3 + $0x18] sm:$0xff]
        %v2325 = vld [vmem:[#allocation3 + $0x20] sm:$0xff]
        %v2326 = vld [vmem:[#allocation3 + $0x28] sm:$0xff]
        %v2327 = vld [vmem:[#allocation3 + $0x30] sm:$0xff]
        %v2328 = vld [vmem:[#allocation3 + $0x38] sm:$0xff]
        %v2329 = vld [vmem:[#allocation3 + $0x40] sm:$0xff]
        %v2330 = vld [vmem:[#allocation3 + $0x48] sm:$0xff]
        %v2331 = vld [vmem:[#allocation3 + $0x50] sm:$0xff]
        %v2332 = vld [vmem:[#allocation3 + $0x58] sm:$0xff]
        %v2333 = vld [vmem:[#allocation3 + $0x60] sm:$0xff]
        %v2334 = vld [vmem:[#allocation3 + $0x68] sm:$0xff]
        %v2335 = vld [vmem:[#allocation3 + $0x70] sm:$0xff]
        %v2336 = vld [vmem:[#allocation3 + $0x78] sm:$0xff]
        %v2337 = vld [vmem:[#allocation3 + $0x80] sm:$0xff]
        %v2338 = vld [vmem:[#allocation3 + $0x88] sm:$0xff]
        %v2339 = vld [vmem:[#allocation3 + $0x90] sm:$0xff]
        %v2340 = vld [vmem:[#allocation3 + $0x98] sm:$0xff]
        %v2341 = vld [vmem:[#allocation3 + $0xa0] sm:$0xff]
        %v2342 = vld [vmem:[#allocation3 + $0xa8] sm:$0xff]
        %v2343 = vld [vmem:[#allocation3 + $0xb0] sm:$0xff]
        %v2344 = vld [vmem:[#allocation3 + $0xb8] sm:$0xff]
        %v2345 = vsel %vm2318, 1, 0
        %v2346 = vsel %vm2319, 1, 0
        %v2347 = vsel %vm2320, 1, 0
        %v2348 = vperm.slane %v2345, 0
        %v2349 = vperm.slane %v2345, 1
        %v2350 = vperm.slane %v2345, 2
        %v2351 = vperm.slane %v2345, 3
        %v2352 = vperm.slane %v2345, 4
        %v2353 = vperm.slane %v2345, 5
        %v2354 = vperm.slane %v2345, 6
        %v2355 = vperm.slane %v2345, 7
        %v2356 = vperm.slane %v2346, 0
        %v2357 = vperm.slane %v2346, 1
        %v2358 = vperm.slane %v2346, 2
        %v2359 = vperm.slane %v2346, 3
        %v2360 = vperm.slane %v2346, 4
        %v2361 = vperm.slane %v2346, 5
        %v2362 = vperm.slane %v2346, 6
        %v2363 = vperm.slane %v2346, 7
        %v2364 = vperm.slane %v2347, 0
        %v2365 = vperm.slane %v2347, 1
        %v2366 = vperm.slane %v2347, 2
        %v2367 = vperm.slane %v2347, 3
        %v2368 = vperm.slane %v2347, 4
        %v2369 = vperm.slane %v2347, 5
        %v2370 = vperm.slane %v2347, 6
        %v2371 = vperm.slane %v2347, 7
        %vm2372 = vcmp.eq.s32.totalorder %v2348, 1
        %vm2373 = vcmp.eq.s32.totalorder %v2349, 1
        %vm2374 = vcmp.eq.s32.totalorder %v2350, 1
        %vm2375 = vcmp.eq.s32.totalorder %v2351, 1
        %vm2376 = vcmp.eq.s32.totalorder %v2352, 1
        %vm2377 = vcmp.eq.s32.totalorder %v2353, 1
        %vm2378 = vcmp.eq.s32.totalorder %v2354, 1
        %vm2379 = vcmp.eq.s32.totalorder %v2355, 1
        %vm2380 = vcmp.eq.s32.totalorder %v2356, 1
        %vm2381 = vcmp.eq.s32.totalorder %v2357, 1
        %vm2382 = vcmp.eq.s32.totalorder %v2358, 1
        %vm2383 = vcmp.eq.s32.totalorder %v2359, 1
        %vm2384 = vcmp.eq.s32.totalorder %v2360, 1
        %vm2385 = vcmp.eq.s32.totalorder %v2361, 1
        %vm2386 = vcmp.eq.s32.totalorder %v2362, 1
        %vm2387 = vcmp.eq.s32.totalorder %v2363, 1
        %vm2388 = vcmp.eq.s32.totalorder %v2364, 1
        %vm2389 = vcmp.eq.s32.totalorder %v2365, 1
        %vm2390 = vcmp.eq.s32.totalorder %v2366, 1
        %vm2391 = vcmp.eq.s32.totalorder %v2367, 1
        %vm2392 = vcmp.eq.s32.totalorder %v2368, 1
        %vm2393 = vcmp.eq.s32.totalorder %v2369, 1
        %vm2394 = vcmp.eq.s32.totalorder %v2370, 1
        %vm2395 = vcmp.eq.s32.totalorder %v2371, 1
        %v2396 = vsel %vm2372, %v2321, -inf
        %v2397 = vsel %vm2373, %v2322, -inf
        %v2398 = vsel %vm2374, %v2323, -inf
        %v2399 = vsel %vm2375, %v2324, -inf
        %v2400 = vsel %vm2376, %v2325, -inf
        %v2401 = vsel %vm2377, %v2326, -inf
        %v2402 = vsel %vm2378, %v2327, -inf
        %v2403 = vsel %vm2379, %v2328, -inf
        %v2404 = vsel %vm2380, %v2329, -inf
        %v2405 = vsel %vm2381, %v2330, -inf
        %v2406 = vsel %vm2382, %v2331, -inf
        %v2407 = vsel %vm2383, %v2332, -inf
        %v2408 = vsel %vm2384, %v2333, -inf
        %v2409 = vsel %vm2385, %v2334, -inf
        %v2410 = vsel %vm2386, %v2335, -inf
        %v2411 = vsel %vm2387, %v2336, -inf
        %v2412 = vsel %vm2388, %v2337, -inf
        %v2413 = vsel %vm2389, %v2338, -inf
        %v2414 = vsel %vm2390, %v2339, -inf
        %v2415 = vsel %vm2391, %v2340, -inf
        %v2416 = vsel %vm2392, %v2341, -inf
        %v2417 = vsel %vm2393, %v2342, -inf
        %v2418 = vsel %vm2394, %v2343, -inf
        %v2419 = vsel %vm2395, %v2344, -inf
        %v2420 = vld [vmem:[%s273] sm:$0x1]
        %v2421 = vmax.f32 %v2396, %v2400
        %v2422 = vmax.f32 %v2397, %v2401
        %v2423 = vmax.f32 %v2398, %v2402
        %v2424 = vmax.f32 %v2399, %v2403
        %v2425 = vmax.f32 %v2421, %v2404
        %v2426 = vmax.f32 %v2422, %v2405
        %v2427 = vmax.f32 %v2423, %v2406
        %v2428 = vmax.f32 %v2424, %v2407
        %v2429 = vmax.f32 %v2425, %v2408
        %v2430 = vmax.f32 %v2426, %v2409
        %v2431 = vmax.f32 %v2427, %v2410
        %v2432 = vmax.f32 %v2428, %v2411
        %v2433 = vmax.f32 %v2429, %v2412
        %v2434 = vmax.f32 %v2430, %v2413
        %v2435 = vmax.f32 %v2431, %v2414
        %v2436 = vmax.f32 %v2432, %v2415
        %v2437 = vmax.f32 %v2433, %v2416
        %v2438 = vmax.f32 %v2434, %v2417
        %v2439 = vmax.f32 %v2435, %v2418
        %v2440 = vmax.f32 %v2436, %v2419
        %v2441 = vmax.f32 %v2437, %v2438
        %v2442 = vmax.f32 %v2439, %v2440
        %v2443 = vmax.f32 %v2441, %v2442
        %2444 = vmax.xlane.f32.xlu0 %v2443
        %v2445 = vpop.xlane.xlu0 %2444
        %v2446 = vrot.slane %v2445, 4
        %v2447 = vmax.f32 %v2445, %v2446
        %v2448 = vrot.slane %v2447, 2
        %v2449 = vmax.f32 %v2447, %v2448
        %v2450 = vrot.slane %v2449, 1
        %v2451 = vmax.f32 %v2449, %v2450
        %s2452 = vtos %v2451
        %v2453 = vstv %s2452
        %v2454 = vmax.f32 %v2420, %v2453
        %vm2455 = vcmask 0
        %2456 = vst.msk [vmem:[%s273] sm:$0x1] %vm2455, %v2454
        %v2457 = vld [vmem:[#allocation3] sm:$0xff]
        %v2458 = vld [vmem:[#allocation3 + $0x8] sm:$0xff]
        %v2459 = vld [vmem:[#allocation3 + $0x10] sm:$0xff]
        %v2460 = vld [vmem:[#allocation4] sm:$0xff]
        %v2461 = vld [vmem:[#allocation4 + $0x8] sm:$0xff]
        %v2462 = vld [vmem:[#allocation4 + $0x10] sm:$0xff]
        %v2463 = vmul.f32 %v2460, 0.9
        %v2464 = vmul.f32 %v2461, 0.9
        %v2465 = vmul.f32 %v2462, 0.9
        %v2466 = vadd.f32 %v2463, %v2457
        %v2467 = vadd.f32 %v2464, %v2458
        %v2468 = vadd.f32 %v2465, %v2459
        %vm2469 = vcmp.ge.f32.partialorder %v2466, 1.0
        %vm2470 = vcmp.ge.f32.partialorder %v2467, 1.0
        %vm2471 = vcmp.ge.f32.partialorder %v2468, 1.0
        %v2472 = vsel %vm2469, 1, 0
        %v2473 = vsel %vm2470, 1, 0
        %v2474 = vsel %vm2471, 1, 0
        %v2475 = vcvt.s32.f32 %v2472
        %v2476 = vcvt.s32.f32 %v2473
        %v2477 = vcvt.s32.f32 %v2474
        %v2478 = vsub.f32 %v2466, %v2475
        %v2479 = vsub.f32 %v2467, %v2476
        %v2480 = vsub.f32 %v2468, %v2477
        %2481 = vst [vmem:[#allocation4] sm:$0xff] %v2478
        %2482 = vst [vmem:[#allocation4 + $0x8] sm:$0xff] %v2479
        %2483 = vst [vmem:[#allocation4 + $0x10] sm:$0xff] %v2480
        %v2484 = vpack.c.bf16 %v2476, %v2475
        %v2485 = vpack.c.bf16 %v2477, %v2477
        %s2486 = smul.u32 0, 3
        %s2487 = smul.addr %s2486, 4
        %s2488 = scalar_lea.vmem %s265, %s2487 [#allocation11]
        %2489 = vst [vmem:[%s2488] sm:$0xff] %v2484
        %2490 = vst [vmem:[%s2488 + $0x8] sm:$0xf] %v2485
        %s2491 = scalar_lea.vmem [#allocation3], 24
        %v2492 = vld [vmem:[%s2491] sm:$0xff]
        %v2493 = vld [vmem:[%s2491 + $0x8] sm:$0xff]
        %v2494 = vld [vmem:[%s2491 + $0x10] sm:$0xff]
        %v2495 = vld [vmem:[#allocation4] sm:$0xff]
        %v2496 = vld [vmem:[#allocation4 + $0x8] sm:$0xff]
        %v2497 = vld [vmem:[#allocation4 + $0x10] sm:$0xff]
        %v2498 = vmul.f32 %v2495, 0.9
        %v2499 = vmul.f32 %v2496, 0.9
        %v2500 = vmul.f32 %v2497, 0.9
        %v2501 = vadd.f32 %v2498, %v2492
        %v2502 = vadd.f32 %v2499, %v2493
        %v2503 = vadd.f32 %v2500, %v2494
        %vm2504 = vcmp.ge.f32.partialorder %v2501, 1.0
        %vm2505 = vcmp.ge.f32.partialorder %v2502, 1.0
        %vm2506 = vcmp.ge.f32.partialorder %v2503, 1.0
        %v2507 = vsel %vm2504, 1, 0
        %v2508 = vsel %vm2505, 1, 0
        %v2509 = vsel %vm2506, 1, 0
        %v2510 = vcvt.s32.f32 %v2507
        %v2511 = vcvt.s32.f32 %v2508
        %v2512 = vcvt.s32.f32 %v2509
        %v2513 = vsub.f32 %v2501, %v2510
        %v2514 = vsub.f32 %v2502, %v2511
        %v2515 = vsub.f32 %v2503, %v2512
        %2516 = vst [vmem:[#allocation4] sm:$0xff] %v2513
        %2517 = vst [vmem:[#allocation4 + $0x8] sm:$0xff] %v2514
        %2518 = vst [vmem:[#allocation4 + $0x10] sm:$0xff] %v2515
        %v2519 = vpack.c.bf16 %v2511, %v2510
        %v2520 = vpack.c.bf16 %v2512, %v2512
        %s2521 = smul.u32 1, 3
        %s2522 = smul.addr %s2521, 4
        %s2523 = scalar_lea.vmem %s265, %s2522 [#allocation11]
        %2524 = vst [vmem:[%s2523] sm:$0xff] %v2519
        %2525 = vst [vmem:[%s2523 + $0x8] sm:$0xf] %v2520
        %s2526 = scalar_lea.vmem [#allocation3], 48
        %v2527 = vld [vmem:[%s2526] sm:$0xff]
        %v2528 = vld [vmem:[%s2526 + $0x8] sm:$0xff]
        %v2529 = vld [vmem:[%s2526 + $0x10] sm:$0xff]
        %v2530 = vld [vmem:[#allocation4] sm:$0xff]
        %v2531 = vld [vmem:[#allocation4 + $0x8] sm:$0xff]
        %v2532 = vld [vmem:[#allocation4 + $0x10] sm:$0xff]
        %v2533 = vmul.f32 %v2530, 0.9
        %v2534 = vmul.f32 %v2531, 0.9
        %v2535 = vmul.f32 %v2532, 0.9
        %v2536 = vadd.f32 %v2533, %v2527
        %v2537 = vadd.f32 %v2534, %v2528
        %v2538 = vadd.f32 %v2535, %v2529
        %vm2539 = vcmp.ge.f32.partialorder %v2536, 1.0
        %vm2540 = vcmp.ge.f32.partialorder %v2537, 1.0
        %vm2541 = vcmp.ge.f32.partialorder %v2538, 1.0
        %v2542 = vsel %vm2539, 1, 0
        %v2543 = vsel %vm2540, 1, 0
        %v2544 = vsel %vm2541, 1, 0
        %v2545 = vcvt.s32.f32 %v2542
        %v2546 = vcvt.s32.f32 %v2543
        %v2547 = vcvt.s32.f32 %v2544
        %v2548 = vsub.f32 %v2536, %v2545
        %v2549 = vsub.f32 %v2537, %v2546
        %v2550 = vsub.f32 %v2538, %v2547
        %2551 = vst [vmem:[#allocation4] sm:$0xff] %v2548
        %2552 = vst [vmem:[#allocation4 + $0x8] sm:$0xff] %v2549
        %2553 = vst [vmem:[#allocation4 + $0x10] sm:$0xff] %v2550
        %v2554 = vpack.c.bf16 %v2546, %v2545
        %v2555 = vpack.c.bf16 %v2547, %v2547
        %s2556 = smul.u32 2, 3
        %s2557 = smul.addr %s2556, 4
        %s2558 = scalar_lea.vmem %s265, %s2557 [#allocation11]
        %2559 = vst [vmem:[%s2558] sm:$0xff] %v2554
        %2560 = vst [vmem:[%s2558 + $0x8] sm:$0xf] %v2555
        %s2561 = scalar_lea.vmem [#allocation3], 72
        %v2562 = vld [vmem:[%s2561] sm:$0xff]
        %v2563 = vld [vmem:[%s2561 + $0x8] sm:$0xff]
        %v2564 = vld [vmem:[%s2561 + $0x10] sm:$0xff]
        %v2565 = vld [vmem:[#allocation4] sm:$0xff]
        %v2566 = vld [vmem:[#allocation4 + $0x8] sm:$0xff]
        %v2567 = vld [vmem:[#allocation4 + $0x10] sm:$0xff]
        %v2568 = vmul.f32 %v2565, 0.9
        %v2569 = vmul.f32 %v2566, 0.9
        %v2570 = vmul.f32 %v2567, 0.9
        %v2571 = vadd.f32 %v2568, %v2562
        %v2572 = vadd.f32 %v2569, %v2563
        %v2573 = vadd.f32 %v2570, %v2564
        %vm2574 = vcmp.ge.f32.partialorder %v2571, 1.0
        %vm2575 = vcmp.ge.f32.partialorder %v2572, 1.0
        %vm2576 = vcmp.ge.f32.partialorder %v2573, 1.0
        %v2577 = vsel %vm2574, 1, 0
        %v2578 = vsel %vm2575, 1, 0
        %v2579 = vsel %vm2576, 1, 0
        %v2580 = vcvt.s32.f32 %v2577
        %v2581 = vcvt.s32.f32 %v2578
        %v2582 = vcvt.s32.f32 %v2579
        %v2583 = vsub.f32 %v2571, %v2580
        %v2584 = vsub.f32 %v2572, %v2581
        %v2585 = vsub.f32 %v2573, %v2582
        %2586 = vst [vmem:[#allocation4] sm:$0xff] %v2583
        %2587 = vst [vmem:[#allocation4 + $0x8] sm:$0xff] %v2584
        %2588 = vst [vmem:[#allocation4 + $0x10] sm:$0xff] %v2585
        %v2589 = vpack.c.bf16 %v2581, %v2580
        %v2590 = vpack.c.bf16 %v2582, %v2582
        %s2591 = smul.u32 3, 3
        %s2592 = smul.addr %s2591, 4
        %s2593 = scalar_lea.vmem %s265, %s2592 [#allocation11]
        %2594 = vst [vmem:[%s2593] sm:$0xff] %v2589
        %2595 = vst [vmem:[%s2593 + $0x8] sm:$0xf] %v2590
        %s2596 = scalar_lea.vmem [#allocation3], 96
        %v2597 = vld [vmem:[%s2596] sm:$0xff]
        %v2598 = vld [vmem:[%s2596 + $0x8] sm:$0xff]
        %v2599 = vld [vmem:[%s2596 + $0x10] sm:$0xff]
        %v2600 = vld [vmem:[#allocation4] sm:$0xff]
        %v2601 = vld [vmem:[#allocation4 + $0x8] sm:$0xff]
        %v2602 = vld [vmem:[#allocation4 + $0x10] sm:$0xff]
        %v2603 = vmul.f32 %v2600, 0.9
        %v2604 = vmul.f32 %v2601, 0.9
        %v2605 = vmul.f32 %v2602, 0.9
        %v2606 = vadd.f32 %v2603, %v2597
        %v2607 = vadd.f32 %v2604, %v2598
        %v2608 = vadd.f32 %v2605, %v2599
        %vm2609 = vcmp.ge.f32.partialorder %v2606, 1.0
        %vm2610 = vcmp.ge.f32.partialorder %v2607, 1.0
        %vm2611 = vcmp.ge.f32.partialorder %v2608, 1.0
        %v2612 = vsel %vm2609, 1, 0
        %v2613 = vsel %vm2610, 1, 0
        %v2614 = vsel %vm2611, 1, 0
        %v2615 = vcvt.s32.f32 %v2612
        %v2616 = vcvt.s32.f32 %v2613
        %v2617 = vcvt.s32.f32 %v2614
        %v2618 = vsub.f32 %v2606, %v2615
        %v2619 = vsub.f32 %v2607, %v2616
        %v2620 = vsub.f32 %v2608, %v2617
        %2621 = vst [vmem:[#allocation4] sm:$0xff] %v2618
        %2622 = vst [vmem:[#allocation4 + $0x8] sm:$0xff] %v2619
        %2623 = vst [vmem:[#allocation4 + $0x10] sm:$0xff] %v2620
        %v2624 = vpack.c.bf16 %v2616, %v2615
        %v2625 = vpack.c.bf16 %v2617, %v2617
        %s2626 = smul.u32 4, 3
        %s2627 = smul.addr %s2626, 4
        %s2628 = scalar_lea.vmem %s265, %s2627 [#allocation11]
        %2629 = vst [vmem:[%s2628] sm:$0xff] %v2624
        %2630 = vst [vmem:[%s2628 + $0x8] sm:$0xf] %v2625
        %s2631 = scalar_lea.vmem [#allocation3], 120
        %v2632 = vld [vmem:[%s2631] sm:$0xff]
        %v2633 = vld [vmem:[%s2631 + $0x8] sm:$0xff]
        %v2634 = vld [vmem:[%s2631 + $0x10] sm:$0xff]
        %v2635 = vld [vmem:[#allocation4] sm:$0xff]
        %v2636 = vld [vmem:[#allocation4 + $0x8] sm:$0xff]
        %v2637 = vld [vmem:[#allocation4 + $0x10] sm:$0xff]
        %v2638 = vmul.f32 %v2635, 0.9
        %v2639 = vmul.f32 %v2636, 0.9
        %v2640 = vmul.f32 %v2637, 0.9
        %v2641 = vadd.f32 %v2638, %v2632
        %v2642 = vadd.f32 %v2639, %v2633
        %v2643 = vadd.f32 %v2640, %v2634
        %vm2644 = vcmp.ge.f32.partialorder %v2641, 1.0
        %vm2645 = vcmp.ge.f32.partialorder %v2642, 1.0
        %vm2646 = vcmp.ge.f32.partialorder %v2643, 1.0
        %v2647 = vsel %vm2644, 1, 0
        %v2648 = vsel %vm2645, 1, 0
        %v2649 = vsel %vm2646, 1, 0
        %v2650 = vcvt.s32.f32 %v2647
        %v2651 = vcvt.s32.f32 %v2648
        %v2652 = vcvt.s32.f32 %v2649
        %v2653 = vsub.f32 %v2641, %v2650
        %v2654 = vsub.f32 %v2642, %v2651
        %v2655 = vsub.f32 %v2643, %v2652
        %2656 = vst [vmem:[#allocation4] sm:$0xff] %v2653
        %2657 = vst [vmem:[#allocation4 + $0x8] sm:$0xff] %v2654
        %2658 = vst [vmem:[#allocation4 + $0x10] sm:$0xff] %v2655
        %v2659 = vpack.c.bf16 %v2651, %v2650
        %v2660 = vpack.c.bf16 %v2652, %v2652
        %s2661 = smul.u32 5, 3
        %s2662 = smul.addr %s2661, 4
        %s2663 = scalar_lea.vmem %s265, %s2662 [#allocation11]
        %2664 = vst [vmem:[%s2663] sm:$0xff] %v2659
        %2665 = vst [vmem:[%s2663 + $0x8] sm:$0xf] %v2660
        %s2666 = scalar_lea.vmem [#allocation3], 144
        %v2667 = vld [vmem:[%s2666] sm:$0xff]
        %v2668 = vld [vmem:[%s2666 + $0x8] sm:$0xff]
        %v2669 = vld [vmem:[%s2666 + $0x10] sm:$0xff]
        %v2670 = vld [vmem:[#allocation4] sm:$0xff]
        %v2671 = vld [vmem:[#allocation4 + $0x8] sm:$0xff]
        %v2672 = vld [vmem:[#allocation4 + $0x10] sm:$0xff]
        %v2673 = vmul.f32 %v2670, 0.9
        %v2674 = vmul.f32 %v2671, 0.9
        %v2675 = vmul.f32 %v2672, 0.9
        %v2676 = vadd.f32 %v2673, %v2667
        %v2677 = vadd.f32 %v2674, %v2668
        %v2678 = vadd.f32 %v2675, %v2669
        %vm2679 = vcmp.ge.f32.partialorder %v2676, 1.0
        %vm2680 = vcmp.ge.f32.partialorder %v2677, 1.0
        %vm2681 = vcmp.ge.f32.partialorder %v2678, 1.0
        %v2682 = vsel %vm2679, 1, 0
        %v2683 = vsel %vm2680, 1, 0
        %v2684 = vsel %vm2681, 1, 0
        %v2685 = vcvt.s32.f32 %v2682
        %v2686 = vcvt.s32.f32 %v2683
        %v2687 = vcvt.s32.f32 %v2684
        %v2688 = vsub.f32 %v2676, %v2685
        %v2689 = vsub.f32 %v2677, %v2686
        %v2690 = vsub.f32 %v2678, %v2687
        %2691 = vst [vmem:[#allocation4] sm:$0xff] %v2688
        %2692 = vst [vmem:[#allocation4 + $0x8] sm:$0xff] %v2689
        %2693 = vst [vmem:[#allocation4 + $0x10] sm:$0xff] %v2690
        %v2694 = vpack.c.bf16 %v2686, %v2685
        %v2695 = vpack.c.bf16 %v2687, %v2687
        %s2696 = smul.u32 6, 3
        %s2697 = smul.addr %s2696, 4
        %s2698 = scalar_lea.vmem %s265, %s2697 [#allocation11]
        %2699 = vst [vmem:[%s2698] sm:$0xff] %v2694
        %2700 = vst [vmem:[%s2698 + $0x8] sm:$0xf] %v2695
        %s2701 = scalar_lea.vmem [#allocation3], 168
        %v2702 = vld [vmem:[%s2701] sm:$0xff]
        %v2703 = vld [vmem:[%s2701 + $0x8] sm:$0xff]
        %v2704 = vld [vmem:[%s2701 + $0x10] sm:$0xff]
        %v2705 = vld [vmem:[#allocation4] sm:$0xff]
        %v2706 = vld [vmem:[#allocation4 + $0x8] sm:$0xff]
        %v2707 = vld [vmem:[#allocation4 + $0x10] sm:$0xff]
        %v2708 = vmul.f32 %v2705, 0.9
        %v2709 = vmul.f32 %v2706, 0.9
        %v2710 = vmul.f32 %v2707, 0.9
        %v2711 = vadd.f32 %v2708, %v2702
        %v2712 = vadd.f32 %v2709, %v2703
        %v2713 = vadd.f32 %v2710, %v2704
        %vm2714 = vcmp.ge.f32.partialorder %v2711, 1.0
        %vm2715 = vcmp.ge.f32.partialorder %v2712, 1.0
        %vm2716 = vcmp.ge.f32.partialorder %v2713, 1.0
        %v2717 = vsel %vm2714, 1, 0
        %v2718 = vsel %vm2715, 1, 0
        %v2719 = vsel %vm2716, 1, 0
        %v2720 = vcvt.s32.f32 %v2717
        %v2721 = vcvt.s32.f32 %v2718
        %v2722 = vcvt.s32.f32 %v2719
        %v2723 = vsub.f32 %v2711, %v2720
        %v2724 = vsub.f32 %v2712, %v2721
        %v2725 = vsub.f32 %v2713, %v2722
        %2726 = vst [vmem:[#allocation4] sm:$0xff] %v2723
        %2727 = vst [vmem:[#allocation4 + $0x8] sm:$0xff] %v2724
        %2728 = vst [vmem:[#allocation4 + $0x10] sm:$0xff] %v2725
        %v2729 = vpack.c.bf16 %v2721, %v2720
        %v2730 = vpack.c.bf16 %v2722, %v2722
        %s2731 = smul.u32 7, 3
        %s2732 = smul.addr %s2731, 4
        %s2733 = scalar_lea.vmem %s265, %s2732 [#allocation11]
        %2734 = vst [vmem:[%s2733] sm:$0xff] %v2729
        %2735 = vst [vmem:[%s2733 + $0x8] sm:$0xf] %v2730
        %s2736 = sand.u32 %s115, 1
        %s2737 = scalar_lea.sflag [#allocation7], %s2736
        %s2738 = sand.u32 %s115, 1
        %s2739 = smul.addr %s2738, 96
        %s2740 = scalar_lea.vmem [#allocation11], %s2739
        %p2741 = scmp.lt.s32.totalorder %s27, 1
        %s2742 = scalar_select %p2741, %s27, 1
        %s2743 = scalar_lea.vmem %s4, %s2742
        // Predicated region
        $region49: #{tpu_custom_call.1} parent=31 // pred_check
          %p2744 = pneg %p125
        $region50: #{tpu_custom_call.1} parent=31 // pred_check_branch
          %2746 = sbr.rel (%p2744) target = $region52
        $region51: #{tpu_custom_call.1} parent=31 // pred_region
          %2748 = vsyncadd %s2737, 0
          %s2749 = smul.addr %s28, 24
          %s2750 = smul.addr %s27, 24
          %s2751 = sadd.s32 %s2749, %s2750
          %s2752 = smul.addr %s2751, 4
          %s2753 = scalar_lea.hbm %s3, %s2752
          %s2754 = sshll.u32 %s2740, 4
          %s2755 = int_to_ptr.vmem [resolvable:$true] %s2754
          %s2756 = sshll.u32 %s2753, 4
          %s2757 = int_to_ptr.hbm [resolvable:$true] %s2756
          %2762 = dma.vmem_to_hbm [thread:$0]  %s2755, 1536, %s2757, %s2737, 192, 192, 12
        $region52: #{tpu_custom_call.1} parent=31 // pred_fallthru
          _
        // Predicated region
        $region53: #{tpu_custom_call.1} parent=31 // pred_check
          %p2763 = pneg %p151
        $region54: #{tpu_custom_call.1} parent=31 // pred_check_branch
          %2765 = sbr.rel (%p2763) target = $region56
        $region55: #{tpu_custom_call.1} parent=31 // pred_region
          _
        $region56: #{tpu_custom_call.1} parent=31 // pred_fallthru
          _
      $region32: #{tpu_custom_call.1} parent=5 // pred_fallthru
        _
      %p2766 = scmp.le.s32.totalorder 2, %s18
      // Predicated region
      $region57: #{tpu_custom_call.1} parent=5 // pred_check
        %p2767 = pneg %p2766
      $region58: #{tpu_custom_call.1} parent=5 // pred_check_branch
        %2769 = sbr.rel (%p2767) target = $region60
      $region59: #{tpu_custom_call.1} parent=5 // pred_region
        %s2770 = ssub.s32 %s18, 2
        // Predicated region
        $region61: #{tpu_custom_call.1} parent=59 // pred_check
          %p2771 = pneg %p131
        $region62: #{tpu_custom_call.1} parent=59 // pred_check_branch
          %2773 = sbr.rel (%p2771) target = $region64
        $region63: #{tpu_custom_call.1} parent=59 // pred_region
          %s2774 = sand.u32 %s116, 1
          %s2775 = scalar_lea.sflag [#allocation7], %s2774
          %s2776 = sand.u32 %s116, 1
          %s2777 = smul.addr %s2776, 96
          %s2778 = scalar_lea.vmem [#allocation11], %s2777
          %2780 = dma.done %s2775, 1536
        $region64: #{tpu_custom_call.1} parent=59 // pred_fallthru
          _
        // Predicated region
        $region65: #{tpu_custom_call.1} parent=59 // pred_check
          %p2781 = pneg %p157
        $region66: #{tpu_custom_call.1} parent=59 // pred_check_branch
          %2783 = sbr.rel (%p2781) target = $region68
        $region67: #{tpu_custom_call.1} parent=59 // pred_region
          %p2784 = scmp.lt.s32.totalorder %s29, 1
          %s2785 = scalar_select %p2784, %s29, 1
          %s2786 = scalar_lea.vmem %s4, %s2785
        $region68: #{tpu_custom_call.1} parent=59 // pred_fallthru
          _
      $region60: #{tpu_custom_call.1} parent=5 // pred_fallthru
        _
    $region6: #{tpu_custom_call.1} parent=1 // loop_footer
      %s22 = sadd.s32 1, %s18
    $region7: #{tpu_custom_call.1} parent=1 // loop_footer_branch
      %17 = sbr.rel target = $region3
    $region8: #{tpu_custom_call.1} parent=1 // loop_exit
      _
    %2787 = vsyncpa [#allocation6], 1
    %s2788 = scalar_lea.sflag [#allocation6], 1
    %2789 = vsyncpa %s2788, 1
    %2790 = vsyncpa [#allocation9], 1
    %2791 = vsyncpa [#allocation7], 1
    %s2792 = scalar_lea.sflag [#allocation7], 1
    %2793 = vsyncpa %s2792, 1

</llo_original>
